<compile_context>
chip_gen: v6e
topology: v6e:2x2x1
jax: 0.10.0
libtpu: 0.0.40
codegen_flags: <defaults>
</compile_context>

<pallas_src>
import functools

import numpy as np
import jax
import jax.numpy as jnp
from jax.experimental import pallas as pl
from jax.experimental.pallas import tpu as pltpu

POOLS = (8, 4, 2)
_SQRT_2_OVER_PI = 0.7978845608028654
_LEAKY_SLOPE = 0.01                      # nn.LeakyReLU() default negative slope


# ----------------------------------------------------------------------------
# Generation-aware VMEM sizing
# ----------------------------------------------------------------------------
@functools.lru_cache(maxsize=None)
def _vmem_limit_bytes():
    cap = 128 * 1024 * 1024
    try:
        cap = int(pltpu.get_tpu_info().vmem_capacity_bytes)
    except Exception:                    # conservative fallback if the query fails
        pass
    # Half of physical VMEM: 32 MiB on v7x (64 MiB/TC), 64 MiB on v5e/v6e (128 MiB).
    return int(min(max(cap // 2, 32 * 1024 * 1024), 96 * 1024 * 1024))


def _tile_budget_bytes():
    return (_vmem_limit_bytes() * 3) // 4


# ----------------------------------------------------------------------------
# Wrapper-side weight / bias / activation preparation (all tiny XLA ops)
# ----------------------------------------------------------------------------
def _conv_row_weights(w, width):
    """(3, 3, Cin, Cout) HWIO -> (3, width*Cin, width*Cout) whole-row conv slabs (bf16).

    Horizontal "same" padding is folded into the matrix:
      slab[kh, jw*Cin+ci, j*Cout+c] = w[kh, jw-j+1, ci, c]  when jw-j+1 in {0,1,2}, else 0.
    """
    cin, cout = w.shape[2], w.shape[3]
    t = np.zeros((3, width, width), np.float32)          # t[kw, jw, j] = 1 iff jw == j+kw-1
    for kw in range(3):
        for j in range(width):
            jw = j + kw - 1
            if 0 <= jw < width:
                t[kw, jw, j] = 1.0
    slab = jnp.einsum("hkic,kwj->hwijc", w, jnp.asarray(t))
    return slab.reshape(3, width * cin, width * cout).astype(jnp.bfloat16)


def _row_bias(b, width):
    """(Cout,) -> (1, width*Cout) lane-dense bias row (f32), column order (j, c)."""
    return jnp.tile(b.reshape(1, -1), (1, width)).astype(jnp.float32)


def _vpad_rows(x):
    """NHWC f32 -> vertically zero-padded, lane-dense bf16 rows (N, H+2, W*C)."""
    n, h, w, c = x.shape
    xp = jnp.pad(x, ((0, 0), (1, 1), (0, 0), (0, 0)))
    return xp.astype(jnp.bfloat16).reshape(n, h + 2, w * c)


def _resident_spec(shape):
    zeros = (0,) * len(shape)
    return pl.BlockSpec(shape, lambda *_: zeros)


# ----------------------------------------------------------------------------
# Pallas kernel 1: fused 3x3 "same" conv (+ optional GELU prologue / epilogue)
# ----------------------------------------------------------------------------
def _conv3x3_kernel(xp_ref, w_ref, b_ref, *rest, pre_act, act, post_op, th, h):
    """One (batch, row-block) tile.

    xp_ref : (1, H+2, W*Cin)  vertically padded lane-dense activation (bf16), resident.
    w_ref  : (3, W*Cin, W*Cout) whole-row conv slabs (bf16), resident.
    b_ref  : (1, W*Cout)      lane-dense bias row (f32), resident.
    rest   : (post_ref?, out_ref); their blocks are (1, th, W*Cout).
    """
    if post_op is None:
        (o_ref,) = rest
        p_ref = None
    else:
        p_ref, o_ref = rest

    if th == h:
        rows = xp_ref[0].astype(jnp.float32)                       # (H+2, W*Cin)
    else:
        r0 = pl.multiple_of(pl.program_id(1) * th, th)
        rows = xp_ref[0, pl.ds(r0, th + 2), :].astype(jnp.float32)  # (th+2, W*Cin)

    if pre_act == "gelu":
        # Applied once per element (not per tap); GELU(0)=0 keeps the zero padding intact.
        # TODO(synk): tanh-approximate GELU; PyTorch nn.GELU() defaults to the erf form.
        rows = 0.5 * rows * (1.0 + jnp.tanh(
            _SQRT_2_OVER_PI * (rows + 0.044715 * rows * rows * rows)))

    acc = None                                                      # (th, W*Cout) f32
    for kh in range(3):                                             # 3 MXU matmuls, K = W*Cin
        part = jnp.dot(rows[kh:kh + th].astype(jnp.bfloat16), w_ref[kh],
                       preferred_element_type=jnp.float32)
        acc = part if acc is None else acc + part
    acc = acc + b_ref[...]                                          # lane-dense bias

    if act == "leaky_relu":
        acc = jnp.where(acc >= 0.0, acc, _LEAKY_SLOPE * acc)
    elif act == "sigmoid":
        acc = pl.reciprocal(1.0 + jnp.exp(-acc), approx=True)       # EUP exp + vrcp

    if post_op == "mul":
        acc = acc * p_ref[0]
    elif post_op == "add":
        acc = acc + p_ref[0]

    o_ref[0] = acc.astype(o_ref.dtype)


def _pick_row_tile(n, h, lanes_in, lanes_out, has_post, budget):
    """Output-row tile height.  Prefers the whole image per batch element; otherwise
    the largest multiple-of-8 divisor of h whose double-buffered blocks fit `budget`."""
    resident = 2 * (h + 2) * lanes_in * 2            # padded image (bf16, 2 buffers)
    resident += 2 * 3 * lanes_in * lanes_out * 2     # weight slabs (bf16)
    resident += 2 * lanes_out * 4                    # bias row (f32)

    def fits(th):
        blk = th * lanes_out * 4 * (2 if has_post else 1)   # f32 out (+ post) blocks
        return resident + 2 * blk <= budget                 # x2 double buffering

    if fits(h):
        th = h
    else:
        th = next((c for c in range(h, 0, -1)
                   if h % c == 0 and c % 8 == 0 and fits(c)), h)
    # v7x megacore: ensure >= 2 parallel programs even at batch == 1.
    if n == 1 and th == h and h % 16 == 0:
        th = h // 2
    return th


def conv3x3(x, w, b, *, act=None, pre_act=None, post=None, post_op=None):
    """3x3 stride-1 pad-1 conv (PyTorch cross-correlation semantics), NHWC.

    x: (N, H, W, Cin) f32, w: (3, 3, Cin, Cout) HWIO, b: (Cout,).
    Optional fused GELU prologue and (activation, elementwise post) epilogue.
    """
    n, h, wdim, cin = x.shape
    cout = w.shape[-1]
    lanes_in, lanes_out = wdim * cin, wdim * cout
    # Whole-row matmul formulation targets MICM's small W*C regime.
    assert lanes_in <= 4096 and lanes_out <= 4096, "conv3x3: feature map too wide"

    xp = _vpad_rows(x)                               # (N, H+2, W*Cin) bf16
    wstack = _conv_row_weights(w, wdim)              # (3, W*Cin, W*Cout) bf16
    brow = _row_bias(b, wdim)                        # (1, W*Cout) f32

    th = _pick_row_tile(n, h, lanes_in, lanes_out, post_op is not None,
                        _tile_budget_bytes())
    grid = (n, h // th)

    in_specs = [
        pl.BlockSpec((1, h + 2, lanes_in), lambda i, r: (i, 0, 0)),   # resident per batch
        _resident_spec(wstack.shape),
        _resident_spec(brow.shape),
    ]
    args = [xp, wstack, brow]
    if post_op is not None:
        in_specs.append(pl.BlockSpec((1, th, lanes_out), lambda i, r: (i, r, 0)))
        args.append(post.reshape(n, h, lanes_out).astype(jnp.float32))

    out = pl.pallas_call(
        functools.partial(_conv3x3_kernel, pre_act=pre_act, act=act,
                          post_op=post_op, th=th, h=h),
        grid=grid,
        in_specs=in_specs,
        out_specs=pl.BlockSpec((1, th, lanes_out), lambda i, r: (i, r, 0)),
        out_shape=jax.ShapeDtypeStruct((n, h, lanes_out), jnp.float32),
        compiler_params=pltpu.CompilerParams(
            dimension_semantics=("parallel", "parallel"),
            vmem_limit_bytes=_vmem_limit_bytes()),
    )(*args)
    return out.reshape(n, h, wdim, cout)


# ----------------------------------------------------------------------------
# Pallas kernel 2: one fused pyramid level (3 convs + LeakyReLU + sigmoid + gate)
# ----------------------------------------------------------------------------
def _level_kernel(xp_ref, w0_ref, b0_ref, w1_ref, b1_ref, w2_ref, b2_ref,
                  o_ref, pad1_ref, pad2_ref, *, hs):
    """One batch element of a full pyramid level, entirely in VMEM:
       f_cat = convs_x|convs_y(pooled)
       feats = LeakyReLU(attn.conv1(f_cat))
       out   = sigmoid(attn.conv2_1|conv2_2(feats)) * f_cat
    All activations stay lane-dense (rows, W*C)."""

    def conv(rows, w_ref):
        acc = None
        for kh in range(3):
            part = jnp.dot(rows[kh:kh + hs].astype(jnp.bfloat16), w_ref[kh],
                           preferred_element_type=jnp.float32)
            acc = part if acc is None else acc + part
        return acc

    def repad(pref, v):
        # Re-create the vertically zero-padded rows of an intermediate in VMEM scratch.
        pref[...] = jnp.zeros_like(pref)
        pref[1:hs + 1, :] = v
        return pref[...]

    f_cat = conv(xp_ref[0].astype(jnp.float32), w0_ref) + b0_ref[...]   # convs_x | convs_y
    feats = conv(repad(pad1_ref, f_cat), w1_ref) + b1_ref[...]          # attn conv1
    feats = jnp.where(feats >= 0.0, feats, _LEAKY_SLOPE * feats)        # LeakyReLU
    attn = conv(repad(pad2_ref, feats), w2_ref) + b2_ref[...]           # conv2_1 | conv2_2
    gate = pl.reciprocal(1.0 + jnp.exp(-attn), approx=True)             # sigmoid (EUP)
    o_ref[0] = (gate * f_cat).astype(o_ref.dtype)                       # x*attn1 | y*attn2


def attention_level(pooled, w0, b0, w1, b1, w2, b2):
    """Fused pyramid level.  pooled: (N, hs, ws, 2*dim) NHWC -> gated (N, hs, ws, 2*dim)."""
    n, hs, ws, c2 = pooled.shape
    d = c2 // 2

    xp = _vpad_rows(pooled)                                    # (N, hs+2, ws*c2) bf16
    args = [xp,
            _conv_row_weights(w0, ws), _row_bias(b0, ws),
            _conv_row_weights(w1, ws), _row_bias(b1, ws),
            _conv_row_weights(w2, ws), _row_bias(b2, ws)]
    in_specs = [pl.BlockSpec((1, hs + 2, ws * c2), lambda i: (i, 0, 0))]
    in_specs += [_resident_spec(a.shape) for a in args[1:]]

    out = pl.pallas_call(
        functools.partial(_level_kernel, hs=hs),
        grid=(n,),
        in_specs=in_specs,
        out_specs=pl.BlockSpec((1, hs, ws * c2), lambda i: (i, 0, 0)),
        out_shape=jax.ShapeDtypeStruct((n, hs, ws * c2), jnp.float32),
        scratch_shapes=[pltpu.VMEM((hs + 2, ws * c2), jnp.float32),
                        pltpu.VMEM((hs + 2, ws * d), jnp.float32)],
        compiler_params=pltpu.CompilerParams(
            dimension_semantics=("parallel",),
            vmem_limit_bytes=_vmem_limit_bytes()),
    )(*args)
    return out.reshape(n, hs, ws, c2)


# ----------------------------------------------------------------------------
# Plain-JAX glue: avg-pool and bilinear (align_corners=True) resize
# ----------------------------------------------------------------------------
def avg_pool(x, k):
    n, h, w, c = x.shape
    return x.reshape(n, h // k, k, w // k, k, c).mean(axis=(2, 4))


@functools.lru_cache(maxsize=None)
def _interp_matrix(out_size, in_size):
    """PyTorch F.interpolate(mode='bilinear', align_corners=True), one axis (cached const)."""
    if in_size == 1:
        return jnp.ones((out_size, 1), jnp.float32)
    if out_size == 1:
        m = np.zeros((1, in_size), np.float32)
        m[0, 0] = 1.0
        return jnp.asarray(m)
    src = np.arange(out_size, dtype=np.float64) * (in_size - 1) / (out_size - 1)
    lo = np.clip(np.floor(src).astype(np.int64), 0, in_size - 2)
    frac = (src - lo).astype(np.float32)
    m = np.zeros((out_size, in_size), np.float32)
    rows = np.arange(out_size)
    m[rows, lo] = 1.0 - frac
    m[rows, lo + 1] += frac
    return jnp.asarray(m)


def bilinear_resize(x, out_h, out_w):
    n, h, w, c = x.shape
    ah = _interp_matrix(out_h, h)
    aw = _interp_matrix(out_w, w)
    return jnp.einsum("oh,nhwc,pw->nopc", ah, x, aw)


# ----------------------------------------------------------------------------
# MICM forward (NHWC, x/y streams carried channel-concatenated)
# ----------------------------------------------------------------------------
def micm_forward(xy, p):
    """xy = concat([x, y], channel), NHWC f32.  Returns (out_x, out_y) in NHWC."""
    n, h, w, c2 = xy.shape
    dim = c2 // 2

    res = conv3x3(xy, p["in_w"], p["in_b"])                     # [in_x(x) | in_y(y)]

    up = None
    for i, k in enumerate(POOLS):
        pooled = avg_pool(xy, k)
        if i > 0:
            pooled = pooled + up
        gated = attention_level(                                # whole level in one kernel
            pooled,
            p[f"cxy{i}_w"], p[f"cxy{i}_b"],
            p[f"a{i}_c1_w"], p[f"a{i}_c1_b"],
            p[f"a{i}_c2_w"], p[f"a{i}_c2_b"])
        res = res + bilinear_resize(gated, h, w)
        if i != len(POOLS) - 1:
            up = bilinear_resize(gated, 2 * gated.shape[1], 2 * gated.shape[2])

    # fused sum_x|sum_y with in-kernel GELU prologue and residual add of the inputs
    out = conv3x3(res, p["sum_w"], p["sum_b"], pre_act="gelu", post=xy, post_op="add")
    return out[..., :dim], out[..., dim:]


# ----------------------------------------------------------------------------
# Deterministic parameter initialization (weights stored in HWIO, siblings fused)
# ----------------------------------------------------------------------------
def init_params(key, dim):
    def conv_param(k, cin, cout):
        kw_, kb_ = jax.random.split(k)
        fan_in = 3 * 3 * cin
        w = jax.random.normal(kw_, (3, 3, cin, cout), jnp.float32) / jnp.sqrt(fan_in)
        b = 0.1 * jax.random.normal(kb_, (cout,), jnp.float32)
        return w, b

    def block_diag(wa, wb):
        ca, coa = wa.shape[2], wa.shape[3]
        cb, cob = wb.shape[2], wb.shape[3]
        top = jnp.concatenate([wa, jnp.zeros((3, 3, ca, cob), wa.dtype)], axis=3)
        bot = jnp.concatenate([jnp.zeros((3, 3, cb, coa), wb.dtype), wb], axis=3)
        return jnp.concatenate([top, bot], axis=2)

    keys = iter(jax.random.split(key, 19))
    p = {}

    wx, bx = conv_param(next(keys), dim, dim)            # in_x
    wy, by = conv_param(next(keys), dim, dim)            # in_y
    p["in_w"], p["in_b"] = block_diag(wx, wy), jnp.concatenate([bx, by])

    for i in range(len(POOLS)):
        wcx, bcx = conv_param(next(keys), dim, dim)      # convs_x[i]
        wcy, bcy = conv_param(next(keys), dim, dim)      # convs_y[i]
        p[f"cxy{i}_w"] = block_diag(wcx, wcy)
        p[f"cxy{i}_b"] = jnp.concatenate([bcx, bcy])
        w1, b1 = conv_param(next(keys), 2 * dim, dim)    # attn conv1
        p[f"a{i}_c1_w"], p[f"a{i}_c1_b"] = w1, b1
        w21, b21 = conv_param(next(keys), dim, dim)      # attn conv2_1
        w22, b22 = conv_param(next(keys), dim, dim)      # attn conv2_2
        p[f"a{i}_c2_w"] = jnp.concatenate([w21, w22], axis=3)
        p[f"a{i}_c2_b"] = jnp.concatenate([b21, b22])

    wsx, bsx = conv_param(next(keys), dim, dim)          # sum_x
    wsy, bsy = conv_param(next(keys), dim, dim)          # sum_y
    p["sum_w"], p["sum_b"] = block_diag(wsx, wsy), jnp.concatenate([bsx, bsy])
    return p


if __name__ == "__main__":
    key = jax.random.PRNGKey(0)
    dim = 4
    kx, ky, kp = jax.random.split(key, 3)

    # PyTorch-style NCHW inputs
    x_nchw = jax.random.normal(kx, (2, dim, 16, 16), jnp.float32)
    y_nchw = jax.random.normal(ky, (2, dim, 16, 16), jnp.float32)
    params = init_params(kp, dim)

    # kernels run in NHWC with x/y channel-concatenated; transpose at the boundary.
    x = jnp.transpose(x_nchw, (0, 2, 3, 1))
    y = jnp.transpose(y_nchw, (0, 2, 3, 1))
    xy = jnp.concatenate([x, y], axis=-1)

    fwd = jax.jit(micm_forward)
    out_x, out_y = fwd(xy, params)
    out_x = jnp.transpose(out_x, (0, 3, 1, 2))
    out_y = jnp.transpose(out_y, (0, 3, 1, 2))
    jax.block_until_ready((out_x, out_y))

    assert out_x.shape == x_nchw.shape and out_y.shape == y_nchw.shape
    assert bool(jnp.all(jnp.isfinite(out_x))) and bool(jnp.all(jnp.isfinite(out_y)))
    print("KERNEL_OK")
</pallas_src>

<mosaic_0001>
module attributes {stable_mosaic.version = 11 : i64} {
  func.func @_level_kernel(%arg0: i32, %arg1: memref<1x4x16xbf16, #tpu.memory_space<vmem>>, %arg2: memref<3x16x16xbf16, #tpu.memory_space<vmem>>, %arg3: memref<1x16xf32, #tpu.memory_space<vmem>>, %arg4: memref<3x16x8xbf16, #tpu.memory_space<vmem>>, %arg5: memref<1x8xf32, #tpu.memory_space<vmem>>, %arg6: memref<3x8x16xbf16, #tpu.memory_space<vmem>>, %arg7: memref<1x16xf32, #tpu.memory_space<vmem>>, %arg8: memref<1x2x16xf32, #tpu.memory_space<vmem>>, %arg9: memref<4x16xf32, #tpu.memory_space<vmem>>, %arg10: memref<4x8xf32, #tpu.memory_space<vmem>>) attributes {dimension_semantics = [#tpu.dimension_semantics<parallel>], iteration_bounds = array<i64: 2>, scalar_prefetch = 0 : i64, scratch_operands = 2 : i64, tpu.core_type = #tpu.core_type<tc>, window_params = [{transform_indices = @transform_0, window_bounds = array<i64: 1, 4, 16>}, {pipeline_mode = #tpu.pipeline_mode<synchronous>, transform_indices = @transform_1, window_bounds = array<i64: 3, 16, 16>}, {pipeline_mode = #tpu.pipeline_mode<synchronous>, transform_indices = @transform_2, window_bounds = array<i64: 1, 16>}, {pipeline_mode = #tpu.pipeline_mode<synchronous>, transform_indices = @transform_3, window_bounds = array<i64: 3, 16, 8>}, {pipeline_mode = #tpu.pipeline_mode<synchronous>, transform_indices = @transform_4, window_bounds = array<i64: 1, 8>}, {pipeline_mode = #tpu.pipeline_mode<synchronous>, transform_indices = @transform_5, window_bounds = array<i64: 3, 8, 16>}, {pipeline_mode = #tpu.pipeline_mode<synchronous>, transform_indices = @transform_6, window_bounds = array<i64: 1, 16>}, {transform_indices = @transform_7, window_bounds = array<i64: 1, 2, 16>}]} {
    %c0 = arith.constant 0 : index
    %c0_0 = arith.constant 0 : index
    %c0_1 = arith.constant 0 : index
    %0 = vector.load %arg1[%c0, %c0_0, %c0_1] : memref<1x4x16xbf16, #tpu.memory_space<vmem>>, vector<1x4x16xbf16>
    %1 = vector.shape_cast %0 : vector<1x4x16xbf16> to vector<4x16xbf16>
    %2 = arith.extf %1 : vector<4x16xbf16> to vector<4x16xf32>
    %3 = vector.extract_strided_slice %2 {offsets = [0, 0], sizes = [2, 16], strides = [1, 1]} : vector<4x16xf32> to vector<2x16xf32>
    %4 = arith.truncf %3 : vector<2x16xf32> to vector<2x16xbf16>
    %c0_2 = arith.constant 0 : index
    %c0_3 = arith.constant 0 : index
    %c0_4 = arith.constant 0 : index
    %5 = vector.load %arg2[%c0_2, %c0_3, %c0_4] : memref<3x16x16xbf16, #tpu.memory_space<vmem>>, vector<1x16x16xbf16>
    %6 = vector.shape_cast %5 : vector<1x16x16xbf16> to vector<16x16xbf16>
    %cst = arith.constant dense<0.000000e+00> : vector<2x16xf32>
    %7 = tpu.matmul %4, %6, %cst {dimension_numbers = #tpu.dot_dimension_numbers<[1], [0], [0], [1], [0, 0, 1, 1], [], []>} : vector<2x16xbf16>, vector<16x16xbf16>, vector<2x16xf32> -> vector<2x16xf32>
    %8 = vector.extract_strided_slice %2 {offsets = [1, 0], sizes = [2, 16], strides = [1, 1]} : vector<4x16xf32> to vector<2x16xf32>
    %9 = arith.truncf %8 : vector<2x16xf32> to vector<2x16xbf16>
    %c1 = arith.constant 1 : index
    %c0_5 = arith.constant 0 : index
    %c0_6 = arith.constant 0 : index
    %10 = vector.load %arg2[%c1, %c0_5, %c0_6] : memref<3x16x16xbf16, #tpu.memory_space<vmem>>, vector<1x16x16xbf16>
    %11 = vector.shape_cast %10 : vector<1x16x16xbf16> to vector<16x16xbf16>
    %cst_7 = arith.constant dense<0.000000e+00> : vector<2x16xf32>
    %12 = tpu.matmul %9, %11, %cst_7 {dimension_numbers = #tpu.dot_dimension_numbers<[1], [0], [0], [1], [0, 0, 1, 1], [], []>} : vector<2x16xbf16>, vector<16x16xbf16>, vector<2x16xf32> -> vector<2x16xf32>
    %13 = arith.addf %7, %12 : vector<2x16xf32>
    %14 = vector.extract_strided_slice %2 {offsets = [2, 0], sizes = [2, 16], strides = [1, 1]} : vector<4x16xf32> to vector<2x16xf32>
    %15 = arith.truncf %14 : vector<2x16xf32> to vector<2x16xbf16>
    %c2 = arith.constant 2 : index
    %c0_8 = arith.constant 0 : index
    %c0_9 = arith.constant 0 : index
    %16 = vector.load %arg2[%c2, %c0_8, %c0_9] : memref<3x16x16xbf16, #tpu.memory_space<vmem>>, vector<1x16x16xbf16>
    %17 = vector.shape_cast %16 : vector<1x16x16xbf16> to vector<16x16xbf16>
    %cst_10 = arith.constant dense<0.000000e+00> : vector<2x16xf32>
    %18 = tpu.matmul %15, %17, %cst_10 {dimension_numbers = #tpu.dot_dimension_numbers<[1], [0], [0], [1], [0, 0, 1, 1], [], []>} : vector<2x16xbf16>, vector<16x16xbf16>, vector<2x16xf32> -> vector<2x16xf32>
    %19 = arith.addf %13, %18 : vector<2x16xf32>
    %c0_11 = arith.constant 0 : index
    %c0_12 = arith.constant 0 : index
    %20 = vector.load %arg3[%c0_11, %c0_12] : memref<1x16xf32, #tpu.memory_space<vmem>>, vector<1x16xf32>
    %21 = vector.broadcast %20 : vector<1x16xf32> to vector<2x16xf32>
    %22 = arith.addf %19, %21 : vector<2x16xf32>
    %cst_13 = arith.constant 0.000000e+00 : f32
    %23 = vector.broadcast %cst_13 : f32 to vector<4x16xf32>
    %c0_14 = arith.constant 0 : index
    %c0_15 = arith.constant 0 : index
    %24 = vector.load %arg9[%c0_14, %c0_15] : memref<4x16xf32, #tpu.memory_space<vmem>>, vector<4x16xf32>
    tpu.vector_store %arg9[%c0_14, %c0_15], %23 {strides = array<i32>} : memref<4x16xf32, #tpu.memory_space<vmem>>, vector<4x16xf32>,
    %c1_16 = arith.constant 1 : index
    %c0_17 = arith.constant 0 : index
    %25 = vector.load %arg9[%c1_16, %c0_17] : memref<4x16xf32, #tpu.memory_space<vmem>>, vector<2x16xf32>
    tpu.vector_store %arg9[%c1_16, %c0_17], %22 {strides = array<i32>} : memref<4x16xf32, #tpu.memory_space<vmem>>, vector<2x16xf32>,
    %c0_18 = arith.constant 0 : index
    %c0_19 = arith.constant 0 : index
    %26 = vector.load %arg9[%c0_18, %c0_19] : memref<4x16xf32, #tpu.memory_space<vmem>>, vector<4x16xf32>
    %27 = vector.extract_strided_slice %26 {offsets = [0, 0], sizes = [2, 16], strides = [1, 1]} : vector<4x16xf32> to vector<2x16xf32>
    %28 = arith.truncf %27 : vector<2x16xf32> to vector<2x16xbf16>
    %c0_20 = arith.constant 0 : index
    %c0_21 = arith.constant 0 : index
    %c0_22 = arith.constant 0 : index
    %29 = vector.load %arg4[%c0_20, %c0_21, %c0_22] : memref<3x16x8xbf16, #tpu.memory_space<vmem>>, vector<1x16x8xbf16>
    %30 = vector.shape_cast %29 : vector<1x16x8xbf16> to vector<16x8xbf16>
    %cst_23 = arith.constant dense<0.000000e+00> : vector<2x8xf32>
    %31 = tpu.matmul %28, %30, %cst_23 {dimension_numbers = #tpu.dot_dimension_numbers<[1], [0], [0], [1], [0, 0, 1, 1], [], []>} : vector<2x16xbf16>, vector<16x8xbf16>, vector<2x8xf32> -> vector<2x8xf32>
    %32 = vector.extract_strided_slice %26 {offsets = [1, 0], sizes = [2, 16], strides = [1, 1]} : vector<4x16xf32> to vector<2x16xf32>
    %33 = arith.truncf %32 : vector<2x16xf32> to vector<2x16xbf16>
    %c1_24 = arith.constant 1 : index
    %c0_25 = arith.constant 0 : index
    %c0_26 = arith.constant 0 : index
    %34 = vector.load %arg4[%c1_24, %c0_25, %c0_26] : memref<3x16x8xbf16, #tpu.memory_space<vmem>>, vector<1x16x8xbf16>
    %35 = vector.shape_cast %34 : vector<1x16x8xbf16> to vector<16x8xbf16>
    %cst_27 = arith.constant dense<0.000000e+00> : vector<2x8xf32>
    %36 = tpu.matmul %33, %35, %cst_27 {dimension_numbers = #tpu.dot_dimension_numbers<[1], [0], [0], [1], [0, 0, 1, 1], [], []>} : vector<2x16xbf16>, vector<16x8xbf16>, vector<2x8xf32> -> vector<2x8xf32>
    %37 = arith.addf %31, %36 : vector<2x8xf32>
    %38 = vector.extract_strided_slice %26 {offsets = [2, 0], sizes = [2, 16], strides = [1, 1]} : vector<4x16xf32> to vector<2x16xf32>
    %39 = arith.truncf %38 : vector<2x16xf32> to vector<2x16xbf16>
    %c2_28 = arith.constant 2 : index
    %c0_29 = arith.constant 0 : index
    %c0_30 = arith.constant 0 : index
    %40 = vector.load %arg4[%c2_28, %c0_29, %c0_30] : memref<3x16x8xbf16, #tpu.memory_space<vmem>>, vector<1x16x8xbf16>
    %41 = vector.shape_cast %40 : vector<1x16x8xbf16> to vector<16x8xbf16>
    %cst_31 = arith.constant dense<0.000000e+00> : vector<2x8xf32>
    %42 = tpu.matmul %39, %41, %cst_31 {dimension_numbers = #tpu.dot_dimension_numbers<[1], [0], [0], [1], [0, 0, 1, 1], [], []>} : vector<2x16xbf16>, vector<16x8xbf16>, vector<2x8xf32> -> vector<2x8xf32>
    %43 = arith.addf %37, %42 : vector<2x8xf32>
    %c0_32 = arith.constant 0 : index
    %c0_33 = arith.constant 0 : index
    %44 = vector.load %arg5[%c0_32, %c0_33] : memref<1x8xf32, #tpu.memory_space<vmem>>, vector<1x8xf32>
    %45 = vector.broadcast %44 : vector<1x8xf32> to vector<2x8xf32>
    %46 = arith.addf %43, %45 : vector<2x8xf32>
    %cst_34 = arith.constant 0.000000e+00 : f32
    %47 = vector.broadcast %cst_34 : f32 to vector<2x8xf32>
    %48 = arith.cmpf oge, %46, %47 : vector<2x8xf32>
    %cst_35 = arith.constant 0.00999999977 : f32
    %49 = vector.broadcast %cst_35 : f32 to vector<2x8xf32>
    %50 = arith.mulf %49, %46 : vector<2x8xf32>
    %51 = arith.select %48, %46, %50 : vector<2x8xi1>, vector<2x8xf32>
    %cst_36 = arith.constant 0.000000e+00 : f32
    %52 = vector.broadcast %cst_36 : f32 to vector<4x8xf32>
    %c0_37 = arith.constant 0 : index
    %c0_38 = arith.constant 0 : index
    %53 = vector.load %arg10[%c0_37, %c0_38] : memref<4x8xf32, #tpu.memory_space<vmem>>, vector<4x8xf32>
    tpu.vector_store %arg10[%c0_37, %c0_38], %52 {strides = array<i32>} : memref<4x8xf32, #tpu.memory_space<vmem>>, vector<4x8xf32>,
    %c1_39 = arith.constant 1 : index
    %c0_40 = arith.constant 0 : index
    %54 = vector.load %arg10[%c1_39, %c0_40] : memref<4x8xf32, #tpu.memory_space<vmem>>, vector<2x8xf32>
    tpu.vector_store %arg10[%c1_39, %c0_40], %51 {strides = array<i32>} : memref<4x8xf32, #tpu.memory_space<vmem>>, vector<2x8xf32>,
    %c0_41 = arith.constant 0 : index
    %c0_42 = arith.constant 0 : index
    %55 = vector.load %arg10[%c0_41, %c0_42] : memref<4x8xf32, #tpu.memory_space<vmem>>, vector<4x8xf32>
    %56 = vector.extract_strided_slice %55 {offsets = [0, 0], sizes = [2, 8], strides = [1, 1]} : vector<4x8xf32> to vector<2x8xf32>
    %57 = arith.truncf %56 : vector<2x8xf32> to vector<2x8xbf16>
    %c0_43 = arith.constant 0 : index
    %c0_44 = arith.constant 0 : index
    %c0_45 = arith.constant 0 : index
    %58 = vector.load %arg6[%c0_43, %c0_44, %c0_45] : memref<3x8x16xbf16, #tpu.memory_space<vmem>>, vector<1x8x16xbf16>
    %59 = vector.shape_cast %58 : vector<1x8x16xbf16> to vector<8x16xbf16>
    %cst_46 = arith.constant dense<0.000000e+00> : vector<2x16xf32>
    %60 = tpu.matmul %57, %59, %cst_46 {dimension_numbers = #tpu.dot_dimension_numbers<[1], [0], [0], [1], [0, 0, 1, 1], [], []>} : vector<2x8xbf16>, vector<8x16xbf16>, vector<2x16xf32> -> vector<2x16xf32>
    %61 = vector.extract_strided_slice %55 {offsets = [1, 0], sizes = [2, 8], strides = [1, 1]} : vector<4x8xf32> to vector<2x8xf32>
    %62 = arith.truncf %61 : vector<2x8xf32> to vector<2x8xbf16>
    %c1_47 = arith.constant 1 : index
    %c0_48 = arith.constant 0 : index
    %c0_49 = arith.constant 0 : index
    %63 = vector.load %arg6[%c1_47, %c0_48, %c0_49] : memref<3x8x16xbf16, #tpu.memory_space<vmem>>, vector<1x8x16xbf16>
    %64 = vector.shape_cast %63 : vector<1x8x16xbf16> to vector<8x16xbf16>
    %cst_50 = arith.constant dense<0.000000e+00> : vector<2x16xf32>
    %65 = tpu.matmul %62, %64, %cst_50 {dimension_numbers = #tpu.dot_dimension_numbers<[1], [0], [0], [1], [0, 0, 1, 1], [], []>} : vector<2x8xbf16>, vector<8x16xbf16>, vector<2x16xf32> -> vector<2x16xf32>
    %66 = arith.addf %60, %65 : vector<2x16xf32>
    %67 = vector.extract_strided_slice %55 {offsets = [2, 0], sizes = [2, 8], strides = [1, 1]} : vector<4x8xf32> to vector<2x8xf32>
    %68 = arith.truncf %67 : vector<2x8xf32> to vector<2x8xbf16>
    %c2_51 = arith.constant 2 : index
    %c0_52 = arith.constant 0 : index
    %c0_53 = arith.constant 0 : index
    %69 = vector.load %arg6[%c2_51, %c0_52, %c0_53] : memref<3x8x16xbf16, #tpu.memory_space<vmem>>, vector<1x8x16xbf16>
    %70 = vector.shape_cast %69 : vector<1x8x16xbf16> to vector<8x16xbf16>
    %cst_54 = arith.constant dense<0.000000e+00> : vector<2x16xf32>
    %71 = tpu.matmul %68, %70, %cst_54 {dimension_numbers = #tpu.dot_dimension_numbers<[1], [0], [0], [1], [0, 0, 1, 1], [], []>} : vector<2x8xbf16>, vector<8x16xbf16>, vector<2x16xf32> -> vector<2x16xf32>
    %72 = arith.addf %66, %71 : vector<2x16xf32>
    %c0_55 = arith.constant 0 : index
    %c0_56 = arith.constant 0 : index
    %73 = vector.load %arg7[%c0_55, %c0_56] : memref<1x16xf32, #tpu.memory_space<vmem>>, vector<1x16xf32>
    %74 = vector.broadcast %73 : vector<1x16xf32> to vector<2x16xf32>
    %75 = arith.addf %72, %74 : vector<2x16xf32>
    %cst_57 = arith.constant 0.000000e+00 : f32
    %76 = vector.broadcast %cst_57 : f32 to vector<2x16xf32>
    %77 = arith.subf %76, %75 : vector<2x16xf32>
    %78 = math.exp %77 : vector<2x16xf32>
    %cst_58 = arith.constant 1.000000e+00 : f32
    %79 = vector.broadcast %cst_58 : f32 to vector<2x16xf32>
    %80 = arith.addf %79, %78 : vector<2x16xf32>
    %81 = tpu.reciprocal %80 {approx = true} : vector<2x16xf32> -> vector<2x16xf32>
    %82 = arith.mulf %81, %22 : vector<2x16xf32>
    %c0_59 = arith.constant 0 : index
    %c0_60 = arith.constant 0 : index
    %c0_61 = arith.constant 0 : index
    %83 = vector.load %arg8[%c0_59, %c0_60, %c0_61] : memref<1x2x16xf32, #tpu.memory_space<vmem>>, vector<1x2x16xf32>
    %84 = vector.shape_cast %83 : vector<1x2x16xf32> to vector<2x16xf32>
    %85 = vector.shape_cast %82 : vector<2x16xf32> to vector<1x2x16xf32>
    tpu.vector_store %arg8[%c0_59, %c0_60, %c0_61], %85 {strides = array<i32>} : memref<1x2x16xf32, #tpu.memory_space<vmem>>, vector<1x2x16xf32>,
    return
  }
  func.func @transform_0(%arg0: i32) -> (i32, i32, i32) {
    %c0_i32 = arith.constant 0 : i32
    %c0_i32_0 = arith.constant 0 : i32
    %c0_i32_1 = arith.constant 0 : i32
    return %arg0, %c0_i32, %c0_i32_0 : i32, i32, i32
  }
  func.func @transform_1(%arg0: i32) -> (i32, i32, i32) {
    %c0_i32 = arith.constant 0 : i32
    %c0_i32_0 = arith.constant 0 : i32
    %c0_i32_1 = arith.constant 0 : i32
    %c0_i32_2 = arith.constant 0 : i32
    return %c0_i32, %c0_i32_0, %c0_i32_1 : i32, i32, i32
  }
  func.func @transform_2(%arg0: i32) -> (i32, i32) {
    %c0_i32 = arith.constant 0 : i32
    %c0_i32_0 = arith.constant 0 : i32
    %c0_i32_1 = arith.constant 0 : i32
    return %c0_i32, %c0_i32_0 : i32, i32
  }
  func.func @transform_3(%arg0: i32) -> (i32, i32, i32) {
    %c0_i32 = arith.constant 0 : i32
    %c0_i32_0 = arith.constant 0 : i32
    %c0_i32_1 = arith.constant 0 : i32
    %c0_i32_2 = arith.constant 0 : i32
    return %c0_i32, %c0_i32_0, %c0_i32_1 : i32, i32, i32
  }
  func.func @transform_4(%arg0: i32) -> (i32, i32) {
    %c0_i32 = arith.constant 0 : i32
    %c0_i32_0 = arith.constant 0 : i32
    %c0_i32_1 = arith.constant 0 : i32
    return %c0_i32, %c0_i32_0 : i32, i32
  }
  func.func @transform_5(%arg0: i32) -> (i32, i32, i32) {
    %c0_i32 = arith.constant 0 : i32
    %c0_i32_0 = arith.constant 0 : i32
    %c0_i32_1 = arith.constant 0 : i32
    %c0_i32_2 = arith.constant 0 : i32
    return %c0_i32, %c0_i32_0, %c0_i32_1 : i32, i32, i32
  }
  func.func @transform_6(%arg0: i32) -> (i32, i32) {
    %c0_i32 = arith.constant 0 : i32
    %c0_i32_0 = arith.constant 0 : i32
    %c0_i32_1 = arith.constant 0 : i32
    return %c0_i32, %c0_i32_0 : i32, i32
  }
  func.func @transform_7(%arg0: i32) -> (i32, i32, i32) {
    %c0_i32 = arith.constant 0 : i32
    %c0_i32_0 = arith.constant 0 : i32
    %c0_i32_1 = arith.constant 0 : i32
    return %arg0, %c0_i32, %c0_i32_0 : i32, i32, i32
  }
}

module attributes {stable_mosaic.version = 11 : i64} {
  func.func @_level_kernel(%arg0: i32, %arg1: memref<1x6x32xbf16, #tpu.memory_space<vmem>>, %arg2: memref<3x32x32xbf16, #tpu.memory_space<vmem>>, %arg3: memref<1x32xf32, #tpu.memory_space<vmem>>, %arg4: memref<3x32x16xbf16, #tpu.memory_space<vmem>>, %arg5: memref<1x16xf32, #tpu.memory_space<vmem>>, %arg6: memref<3x16x32xbf16, #tpu.memory_space<vmem>>, %arg7: memref<1x32xf32, #tpu.memory_space<vmem>>, %arg8: memref<1x4x32xf32, #tpu.memory_space<vmem>>, %arg9: memref<6x32xf32, #tpu.memory_space<vmem>>, %arg10: memref<6x16xf32, #tpu.memory_space<vmem>>) attributes {dimension_semantics = [#tpu.dimension_semantics<parallel>], iteration_bounds = array<i64: 2>, scalar_prefetch = 0 : i64, scratch_operands = 2 : i64, tpu.core_type = #tpu.core_type<tc>, window_params = [{transform_indices = @transform_0, window_bounds = array<i64: 1, 6, 32>}, {pipeline_mode = #tpu.pipeline_mode<synchronous>, transform_indices = @transform_1, window_bounds = array<i64: 3, 32, 32>}, {pipeline_mode = #tpu.pipeline_mode<synchronous>, transform_indices = @transform_2, window_bounds = array<i64: 1, 32>}, {pipeline_mode = #tpu.pipeline_mode<synchronous>, transform_indices = @transform_3, window_bounds = array<i64: 3, 32, 16>}, {pipeline_mode = #tpu.pipeline_mode<synchronous>, transform_indices = @transform_4, window_bounds = array<i64: 1, 16>}, {pipeline_mode = #tpu.pipeline_mode<synchronous>, transform_indices = @transform_5, window_bounds = array<i64: 3, 16, 32>}, {pipeline_mode = #tpu.pipeline_mode<synchronous>, transform_indices = @transform_6, window_bounds = array<i64: 1, 32>}, {transform_indices = @transform_7, window_bounds = array<i64: 1, 4, 32>}]} {
    %c0 = arith.constant 0 : index
    %c0_0 = arith.constant 0 : index
    %c0_1 = arith.constant 0 : index
    %0 = vector.load %arg1[%c0, %c0_0, %c0_1] : memref<1x6x32xbf16, #tpu.memory_space<vmem>>, vector<1x6x32xbf16>
    %1 = vector.shape_cast %0 : vector<1x6x32xbf16> to vector<6x32xbf16>
    %2 = arith.extf %1 : vector<6x32xbf16> to vector<6x32xf32>
    %3 = vector.extract_strided_slice %2 {offsets = [0, 0], sizes = [4, 32], strides = [1, 1]} : vector<6x32xf32> to vector<4x32xf32>
    %4 = arith.truncf %3 : vector<4x32xf32> to vector<4x32xbf16>
    %c0_2 = arith.constant 0 : index
    %c0_3 = arith.constant 0 : index
    %c0_4 = arith.constant 0 : index
    %5 = vector.load %arg2[%c0_2, %c0_3, %c0_4] : memref<3x32x32xbf16, #tpu.memory_space<vmem>>, vector<1x32x32xbf16>
    %6 = vector.shape_cast %5 : vector<1x32x32xbf16> to vector<32x32xbf16>
    %cst = arith.constant dense<0.000000e+00> : vector<4x32xf32>
    %7 = tpu.matmul %4, %6, %cst {dimension_numbers = #tpu.dot_dimension_numbers<[1], [0], [0], [1], [0, 0, 1, 1], [], []>} : vector<4x32xbf16>, vector<32x32xbf16>, vector<4x32xf32> -> vector<4x32xf32>
    %8 = vector.extract_strided_slice %2 {offsets = [1, 0], sizes = [4, 32], strides = [1, 1]} : vector<6x32xf32> to vector<4x32xf32>
    %9 = arith.truncf %8 : vector<4x32xf32> to vector<4x32xbf16>
    %c1 = arith.constant 1 : index
    %c0_5 = arith.constant 0 : index
    %c0_6 = arith.constant 0 : index
    %10 = vector.load %arg2[%c1, %c0_5, %c0_6] : memref<3x32x32xbf16, #tpu.memory_space<vmem>>, vector<1x32x32xbf16>
    %11 = vector.shape_cast %10 : vector<1x32x32xbf16> to vector<32x32xbf16>
    %cst_7 = arith.constant dense<0.000000e+00> : vector<4x32xf32>
    %12 = tpu.matmul %9, %11, %cst_7 {dimension_numbers = #tpu.dot_dimension_numbers<[1], [0], [0], [1], [0, 0, 1, 1], [], []>} : vector<4x32xbf16>, vector<32x32xbf16>, vector<4x32xf32> -> vector<4x32xf32>
    %13 = arith.addf %7, %12 : vector<4x32xf32>
    %14 = vector.extract_strided_slice %2 {offsets = [2, 0], sizes = [4, 32], strides = [1, 1]} : vector<6x32xf32> to vector<4x32xf32>
    %15 = arith.truncf %14 : vector<4x32xf32> to vector<4x32xbf16>
    %c2 = arith.constant 2 : index
    %c0_8 = arith.constant 0 : index
    %c0_9 = arith.constant 0 : index
    %16 = vector.load %arg2[%c2, %c0_8, %c0_9] : memref<3x32x32xbf16, #tpu.memory_space<vmem>>, vector<1x32x32xbf16>
    %17 = vector.shape_cast %16 : vector<1x32x32xbf16> to vector<32x32xbf16>
    %cst_10 = arith.constant dense<0.000000e+00> : vector<4x32xf32>
    %18 = tpu.matmul %15, %17, %cst_10 {dimension_numbers = #tpu.dot_dimension_numbers<[1], [0], [0], [1], [0, 0, 1, 1], [], []>} : vector<4x32xbf16>, vector<32x32xbf16>, vector<4x32xf32> -> vector<4x32xf32>
    %19 = arith.addf %13, %18 : vector<4x32xf32>
    %c0_11 = arith.constant 0 : index
    %c0_12 = arith.constant 0 : index
    %20 = vector.load %arg3[%c0_11, %c0_12] : memref<1x32xf32, #tpu.memory_space<vmem>>, vector<1x32xf32>
    %21 = vector.broadcast %20 : vector<1x32xf32> to vector<4x32xf32>
    %22 = arith.addf %19, %21 : vector<4x32xf32>
    %cst_13 = arith.constant 0.000000e+00 : f32
    %23 = vector.broadcast %cst_13 : f32 to vector<6x32xf32>
    %c0_14 = arith.constant 0 : index
    %c0_15 = arith.constant 0 : index
    %24 = vector.load %arg9[%c0_14, %c0_15] : memref<6x32xf32, #tpu.memory_space<vmem>>, vector<6x32xf32>
    tpu.vector_store %arg9[%c0_14, %c0_15], %23 {strides = array<i32>} : memref<6x32xf32, #tpu.memory_space<vmem>>, vector<6x32xf32>,
    %c1_16 = arith.constant 1 : index
    %c0_17 = arith.constant 0 : index
    %25 = vector.load %arg9[%c1_16, %c0_17] : memref<6x32xf32, #tpu.memory_space<vmem>>, vector<4x32xf32>
    tpu.vector_store %arg9[%c1_16, %c0_17], %22 {strides = array<i32>} : memref<6x32xf32, #tpu.memory_space<vmem>>, vector<4x32xf32>,
    %c0_18 = arith.constant 0 : index
    %c0_19 = arith.constant 0 : index
    %26 = vector.load %arg9[%c0_18, %c0_19] : memref<6x32xf32, #tpu.memory_space<vmem>>, vector<6x32xf32>
    %27 = vector.extract_strided_slice %26 {offsets = [0, 0], sizes = [4, 32], strides = [1, 1]} : vector<6x32xf32> to vector<4x32xf32>
    %28 = arith.truncf %27 : vector<4x32xf32> to vector<4x32xbf16>
    %c0_20 = arith.constant 0 : index
    %c0_21 = arith.constant 0 : index
    %c0_22 = arith.constant 0 : index
    %29 = vector.load %arg4[%c0_20, %c0_21, %c0_22] : memref<3x32x16xbf16, #tpu.memory_space<vmem>>, vector<1x32x16xbf16>
    %30 = vector.shape_cast %29 : vector<1x32x16xbf16> to vector<32x16xbf16>
    %cst_23 = arith.constant dense<0.000000e+00> : vector<4x16xf32>
    %31 = tpu.matmul %28, %30, %cst_23 {dimension_numbers = #tpu.dot_dimension_numbers<[1], [0], [0], [1], [0, 0, 1, 1], [], []>} : vector<4x32xbf16>, vector<32x16xbf16>, vector<4x16xf32> -> vector<4x16xf32>
    %32 = vector.extract_strided_slice %26 {offsets = [1, 0], sizes = [4, 32], strides = [1, 1]} : vector<6x32xf32> to vector<4x32xf32>
    %33 = arith.truncf %32 : vector<4x32xf32> to vector<4x32xbf16>
    %c1_24 = arith.constant 1 : index
    %c0_25 = arith.constant 0 : index
    %c0_26 = arith.constant 0 : index
    %34 = vector.load %arg4[%c1_24, %c0_25, %c0_26] : memref<3x32x16xbf16, #tpu.memory_space<vmem>>, vector<1x32x16xbf16>
    %35 = vector.shape_cast %34 : vector<1x32x16xbf16> to vector<32x16xbf16>
    %cst_27 = arith.constant dense<0.000000e+00> : vector<4x16xf32>
    %36 = tpu.matmul %33, %35, %cst_27 {dimension_numbers = #tpu.dot_dimension_numbers<[1], [0], [0], [1], [0, 0, 1, 1], [], []>} : vector<4x32xbf16>, vector<32x16xbf16>, vector<4x16xf32> -> vector<4x16xf32>
    %37 = arith.addf %31, %36 : vector<4x16xf32>
    %38 = vector.extract_strided_slice %26 {offsets = [2, 0], sizes = [4, 32], strides = [1, 1]} : vector<6x32xf32> to vector<4x32xf32>
    %39 = arith.truncf %38 : vector<4x32xf32> to vector<4x32xbf16>
    %c2_28 = arith.constant 2 : index
    %c0_29 = arith.constant 0 : index
    %c0_30 = arith.constant 0 : index
    %40 = vector.load %arg4[%c2_28, %c0_29, %c0_30] : memref<3x32x16xbf16, #tpu.memory_space<vmem>>, vector<1x32x16xbf16>
    %41 = vector.shape_cast %40 : vector<1x32x16xbf16> to vector<32x16xbf16>
    %cst_31 = arith.constant dense<0.000000e+00> : vector<4x16xf32>
    %42 = tpu.matmul %39, %41, %cst_31 {dimension_numbers = #tpu.dot_dimension_numbers<[1], [0], [0], [1], [0, 0, 1, 1], [], []>} : vector<4x32xbf16>, vector<32x16xbf16>, vector<4x16xf32> -> vector<4x16xf32>
    %43 = arith.addf %37, %42 : vector<4x16xf32>
    %c0_32 = arith.constant 0 : index
    %c0_33 = arith.constant 0 : index
    %44 = vector.load %arg5[%c0_32, %c0_33] : memref<1x16xf32, #tpu.memory_space<vmem>>, vector<1x16xf32>
    %45 = vector.broadcast %44 : vector<1x16xf32> to vector<4x16xf32>
    %46 = arith.addf %43, %45 : vector<4x16xf32>
    %cst_34 = arith.constant 0.000000e+00 : f32
    %47 = vector.broadcast %cst_34 : f32 to vector<4x16xf32>
    %48 = arith.cmpf oge, %46, %47 : vector<4x16xf32>
    %cst_35 = arith.constant 0.00999999977 : f32
    %49 = vector.broadcast %cst_35 : f32 to vector<4x16xf32>
    %50 = arith.mulf %49, %46 : vector<4x16xf32>
    %51 = arith.select %48, %46, %50 : vector<4x16xi1>, vector<4x16xf32>
    %cst_36 = arith.constant 0.000000e+00 : f32
    %52 = vector.broadcast %cst_36 : f32 to vector<6x16xf32>
    %c0_37 = arith.constant 0 : index
    %c0_38 = arith.constant 0 : index
    %53 = vector.load %arg10[%c0_37, %c0_38] : memref<6x16xf32, #tpu.memory_space<vmem>>, vector<6x16xf32>
    tpu.vector_store %arg10[%c0_37, %c0_38], %52 {strides = array<i32>} : memref<6x16xf32, #tpu.memory_space<vmem>>, vector<6x16xf32>,
    %c1_39 = arith.constant 1 : index
    %c0_40 = arith.constant 0 : index
    %54 = vector.load %arg10[%c1_39, %c0_40] : memref<6x16xf32, #tpu.memory_space<vmem>>, vector<4x16xf32>
    tpu.vector_store %arg10[%c1_39, %c0_40], %51 {strides = array<i32>} : memref<6x16xf32, #tpu.memory_space<vmem>>, vector<4x16xf32>,
    %c0_41 = arith.constant 0 : index
    %c0_42 = arith.constant 0 : index
    %55 = vector.load %arg10[%c0_41, %c0_42] : memref<6x16xf32, #tpu.memory_space<vmem>>, vector<6x16xf32>
    %56 = vector.extract_strided_slice %55 {offsets = [0, 0], sizes = [4, 16], strides = [1, 1]} : vector<6x16xf32> to vector<4x16xf32>
    %57 = arith.truncf %56 : vector<4x16xf32> to vector<4x16xbf16>
    %c0_43 = arith.constant 0 : index
    %c0_44 = arith.constant 0 : index
    %c0_45 = arith.constant 0 : index
    %58 = vector.load %arg6[%c0_43, %c0_44, %c0_45] : memref<3x16x32xbf16, #tpu.memory_space<vmem>>, vector<1x16x32xbf16>
    %59 = vector.shape_cast %58 : vector<1x16x32xbf16> to vector<16x32xbf16>
    %cst_46 = arith.constant dense<0.000000e+00> : vector<4x32xf32>
    %60 = tpu.matmul %57, %59, %cst_46 {dimension_numbers = #tpu.dot_dimension_numbers<[1], [0], [0], [1], [0, 0, 1, 1], [], []>} : vector<4x16xbf16>, vector<16x32xbf16>, vector<4x32xf32> -> vector<4x32xf32>
    %61 = vector.extract_strided_slice %55 {offsets = [1, 0], sizes = [4, 16], strides = [1, 1]} : vector<6x16xf32> to vector<4x16xf32>
    %62 = arith.truncf %61 : vector<4x16xf32> to vector<4x16xbf16>
    %c1_47 = arith.constant 1 : index
    %c0_48 = arith.constant 0 : index
    %c0_49 = arith.constant 0 : index
    %63 = vector.load %arg6[%c1_47, %c0_48, %c0_49] : memref<3x16x32xbf16, #tpu.memory_space<vmem>>, vector<1x16x32xbf16>
    %64 = vector.shape_cast %63 : vector<1x16x32xbf16> to vector<16x32xbf16>
    %cst_50 = arith.constant dense<0.000000e+00> : vector<4x32xf32>
    %65 = tpu.matmul %62, %64, %cst_50 {dimension_numbers = #tpu.dot_dimension_numbers<[1], [0], [0], [1], [0, 0, 1, 1], [], []>} : vector<4x16xbf16>, vector<16x32xbf16>, vector<4x32xf32> -> vector<4x32xf32>
    %66 = arith.addf %60, %65 : vector<4x32xf32>
    %67 = vector.extract_strided_slice %55 {offsets = [2, 0], sizes = [4, 16], strides = [1, 1]} : vector<6x16xf32> to vector<4x16xf32>
    %68 = arith.truncf %67 : vector<4x16xf32> to vector<4x16xbf16>
    %c2_51 = arith.constant 2 : index
    %c0_52 = arith.constant 0 : index
    %c0_53 = arith.constant 0 : index
    %69 = vector.load %arg6[%c2_51, %c0_52, %c0_53] : memref<3x16x32xbf16, #tpu.memory_space<vmem>>, vector<1x16x32xbf16>
    %70 = vector.shape_cast %69 : vector<1x16x32xbf16> to vector<16x32xbf16>
    %cst_54 = arith.constant dense<0.000000e+00> : vector<4x32xf32>
    %71 = tpu.matmul %68, %70, %cst_54 {dimension_numbers = #tpu.dot_dimension_numbers<[1], [0], [0], [1], [0, 0, 1, 1], [], []>} : vector<4x16xbf16>, vector<16x32xbf16>, vector<4x32xf32> -> vector<4x32xf32>
    %72 = arith.addf %66, %71 : vector<4x32xf32>
    %c0_55 = arith.constant 0 : index
    %c0_56 = arith.constant 0 : index
    %73 = vector.load %arg7[%c0_55, %c0_56] : memref<1x32xf32, #tpu.memory_space<vmem>>, vector<1x32xf32>
    %74 = vector.broadcast %73 : vector<1x32xf32> to vector<4x32xf32>
    %75 = arith.addf %72, %74 : vector<4x32xf32>
    %cst_57 = arith.constant 0.000000e+00 : f32
    %76 = vector.broadcast %cst_57 : f32 to vector<4x32xf32>
    %77 = arith.subf %76, %75 : vector<4x32xf32>
    %78 = math.exp %77 : vector<4x32xf32>
    %cst_58 = arith.constant 1.000000e+00 : f32
    %79 = vector.broadcast %cst_58 : f32 to vector<4x32xf32>
    %80 = arith.addf %79, %78 : vector<4x32xf32>
    %81 = tpu.reciprocal %80 {approx = true} : vector<4x32xf32> -> vector<4x32xf32>
    %82 = arith.mulf %81, %22 : vector<4x32xf32>
    %c0_59 = arith.constant 0 : index
    %c0_60 = arith.constant 0 : index
    %c0_61 = arith.constant 0 : index
    %83 = vector.load %arg8[%c0_59, %c0_60, %c0_61] : memref<1x4x32xf32, #tpu.memory_space<vmem>>, vector<1x4x32xf32>
    %84 = vector.shape_cast %83 : vector<1x4x32xf32> to vector<4x32xf32>
    %85 = vector.shape_cast %82 : vector<4x32xf32> to vector<1x4x32xf32>
    tpu.vector_store %arg8[%c0_59, %c0_60, %c0_61], %85 {strides = array<i32>} : memref<1x4x32xf32, #tpu.memory_space<vmem>>, vector<1x4x32xf32>,
    return
  }
  func.func @transform_0(%arg0: i32) -> (i32, i32, i32) {
    %c0_i32 = arith.constant 0 : i32
    %c0_i32_0 = arith.constant 0 : i32
    %c0_i32_1 = arith.constant 0 : i32
    return %arg0, %c0_i32, %c0_i32_0 : i32, i32, i32
  }
  func.func @transform_1(%arg0: i32) -> (i32, i32, i32) {
    %c0_i32 = arith.constant 0 : i32
    %c0_i32_0 = arith.constant 0 : i32
    %c0_i32_1 = arith.constant 0 : i32
    %c0_i32_2 = arith.constant 0 : i32
    return %c0_i32, %c0_i32_0, %c0_i32_1 : i32, i32, i32
  }
  func.func @transform_2(%arg0: i32) -> (i32, i32) {
    %c0_i32 = arith.constant 0 : i32
    %c0_i32_0 = arith.constant 0 : i32
    %c0_i32_1 = arith.constant 0 : i32
    return %c0_i32, %c0_i32_0 : i32, i32
  }
  func.func @transform_3(%arg0: i32) -> (i32, i32, i32) {
    %c0_i32 = arith.constant 0 : i32
    %c0_i32_0 = arith.constant 0 : i32
    %c0_i32_1 = arith.constant 0 : i32
    %c0_i32_2 = arith.constant 0 : i32
    return %c0_i32, %c0_i32_0, %c0_i32_1 : i32, i32, i32
  }
  func.func @transform_4(%arg0: i32) -> (i32, i32) {
    %c0_i32 = arith.constant 0 : i32
    %c0_i32_0 = arith.constant 0 : i32
    %c0_i32_1 = arith.constant 0 : i32
    return %c0_i32, %c0_i32_0 : i32, i32
  }
  func.func @transform_5(%arg0: i32) -> (i32, i32, i32) {
    %c0_i32 = arith.constant 0 : i32
    %c0_i32_0 = arith.constant 0 : i32
    %c0_i32_1 = arith.constant 0 : i32
    %c0_i32_2 = arith.constant 0 : i32
    return %c0_i32, %c0_i32_0, %c0_i32_1 : i32, i32, i32
  }
  func.func @transform_6(%arg0: i32) -> (i32, i32) {
    %c0_i32 = arith.constant 0 : i32
    %c0_i32_0 = arith.constant 0 : i32
    %c0_i32_1 = arith.constant 0 : i32
    return %c0_i32, %c0_i32_0 : i32, i32
  }
  func.func @transform_7(%arg0: i32) -> (i32, i32, i32) {
    %c0_i32 = arith.constant 0 : i32
    %c0_i32_0 = arith.constant 0 : i32
    %c0_i32_1 = arith.constant 0 : i32
    return %arg0, %c0_i32, %c0_i32_0 : i32, i32, i32
  }
}

module attributes {stable_mosaic.version = 11 : i64} {
  func.func @_level_kernel(%arg0: i32, %arg1: memref<1x10x64xbf16, #tpu.memory_space<vmem>>, %arg2: memref<3x64x64xbf16, #tpu.memory_space<vmem>>, %arg3: memref<1x64xf32, #tpu.memory_space<vmem>>, %arg4: memref<3x64x32xbf16, #tpu.memory_space<vmem>>, %arg5: memref<1x32xf32, #tpu.memory_space<vmem>>, %arg6: memref<3x32x64xbf16, #tpu.memory_space<vmem>>, %arg7: memref<1x64xf32, #tpu.memory_space<vmem>>, %arg8: memref<1x8x64xf32, #tpu.memory_space<vmem>>, %arg9: memref<10x64xf32, #tpu.memory_space<vmem>>, %arg10: memref<10x32xf32, #tpu.memory_space<vmem>>) attributes {dimension_semantics = [#tpu.dimension_semantics<parallel>], iteration_bounds = array<i64: 2>, scalar_prefetch = 0 : i64, scratch_operands = 2 : i64, tpu.core_type = #tpu.core_type<tc>, window_params = [{transform_indices = @transform_0, window_bounds = array<i64: 1, 10, 64>}, {pipeline_mode = #tpu.pipeline_mode<synchronous>, transform_indices = @transform_1, window_bounds = array<i64: 3, 64, 64>}, {pipeline_mode = #tpu.pipeline_mode<synchronous>, transform_indices = @transform_2, window_bounds = array<i64: 1, 64>}, {pipeline_mode = #tpu.pipeline_mode<synchronous>, transform_indices = @transform_3, window_bounds = array<i64: 3, 64, 32>}, {pipeline_mode = #tpu.pipeline_mode<synchronous>, transform_indices = @transform_4, window_bounds = array<i64: 1, 32>}, {pipeline_mode = #tpu.pipeline_mode<synchronous>, transform_indices = @transform_5, window_bounds = array<i64: 3, 32, 64>}, {pipeline_mode = #tpu.pipeline_mode<synchronous>, transform_indices = @transform_6, window_bounds = array<i64: 1, 64>}, {transform_indices = @transform_7, window_bounds = array<i64: 1, 8, 64>}]} {
    %c0 = arith.constant 0 : index
    %c0_0 = arith.constant 0 : index
    %c0_1 = arith.constant 0 : index
    %0 = vector.load %arg1[%c0, %c0_0, %c0_1] : memref<1x10x64xbf16, #tpu.memory_space<vmem>>, vector<1x10x64xbf16>
    %1 = vector.shape_cast %0 : vector<1x10x64xbf16> to vector<10x64xbf16>
    %2 = arith.extf %1 : vector<10x64xbf16> to vector<10x64xf32>
    %3 = vector.extract_strided_slice %2 {offsets = [0, 0], sizes = [8, 64], strides = [1, 1]} : vector<10x64xf32> to vector<8x64xf32>
    %4 = arith.truncf %3 : vector<8x64xf32> to vector<8x64xbf16>
    %c0_2 = arith.constant 0 : index
    %c0_3 = arith.constant 0 : index
    %c0_4 = arith.constant 0 : index
    %5 = vector.load %arg2[%c0_2, %c0_3, %c0_4] : memref<3x64x64xbf16, #tpu.memory_space<vmem>>, vector<1x64x64xbf16>
    %6 = vector.shape_cast %5 : vector<1x64x64xbf16> to vector<64x64xbf16>
    %cst = arith.constant dense<0.000000e+00> : vector<8x64xf32>
    %7 = tpu.matmul %4, %6, %cst {dimension_numbers = #tpu.dot_dimension_numbers<[1], [0], [0], [1], [0, 0, 1, 1], [], []>} : vector<8x64xbf16>, vector<64x64xbf16>, vector<8x64xf32> -> vector<8x64xf32>
    %8 = vector.extract_strided_slice %2 {offsets = [1, 0], sizes = [8, 64], strides = [1, 1]} : vector<10x64xf32> to vector<8x64xf32>
    %9 = arith.truncf %8 : vector<8x64xf32> to vector<8x64xbf16>
    %c1 = arith.constant 1 : index
    %c0_5 = arith.constant 0 : index
    %c0_6 = arith.constant 0 : index
    %10 = vector.load %arg2[%c1, %c0_5, %c0_6] : memref<3x64x64xbf16, #tpu.memory_space<vmem>>, vector<1x64x64xbf16>
    %11 = vector.shape_cast %10 : vector<1x64x64xbf16> to vector<64x64xbf16>
    %cst_7 = arith.constant dense<0.000000e+00> : vector<8x64xf32>
    %12 = tpu.matmul %9, %11, %cst_7 {dimension_numbers = #tpu.dot_dimension_numbers<[1], [0], [0], [1], [0, 0, 1, 1], [], []>} : vector<8x64xbf16>, vector<64x64xbf16>, vector<8x64xf32> -> vector<8x64xf32>
    %13 = arith.addf %7, %12 : vector<8x64xf32>
    %14 = vector.extract_strided_slice %2 {offsets = [2, 0], sizes = [8, 64], strides = [1, 1]} : vector<10x64xf32> to vector<8x64xf32>
    %15 = arith.truncf %14 : vector<8x64xf32> to vector<8x64xbf16>
    %c2 = arith.constant 2 : index
    %c0_8 = arith.constant 0 : index
    %c0_9 = arith.constant 0 : index
    %16 = vector.load %arg2[%c2, %c0_8, %c0_9] : memref<3x64x64xbf16, #tpu.memory_space<vmem>>, vector<1x64x64xbf16>
    %17 = vector.shape_cast %16 : vector<1x64x64xbf16> to vector<64x64xbf16>
    %cst_10 = arith.constant dense<0.000000e+00> : vector<8x64xf32>
    %18 = tpu.matmul %15, %17, %cst_10 {dimension_numbers = #tpu.dot_dimension_numbers<[1], [0], [0], [1], [0, 0, 1, 1], [], []>} : vector<8x64xbf16>, vector<64x64xbf16>, vector<8x64xf32> -> vector<8x64xf32>
    %19 = arith.addf %13, %18 : vector<8x64xf32>
    %c0_11 = arith.constant 0 : index
    %c0_12 = arith.constant 0 : index
    %20 = vector.load %arg3[%c0_11, %c0_12] : memref<1x64xf32, #tpu.memory_space<vmem>>, vector<1x64xf32>
    %21 = vector.broadcast %20 : vector<1x64xf32> to vector<8x64xf32>
    %22 = arith.addf %19, %21 : vector<8x64xf32>
    %cst_13 = arith.constant 0.000000e+00 : f32
    %23 = vector.broadcast %cst_13 : f32 to vector<10x64xf32>
    %c0_14 = arith.constant 0 : index
    %c0_15 = arith.constant 0 : index
    %24 = vector.load %arg9[%c0_14, %c0_15] : memref<10x64xf32, #tpu.memory_space<vmem>>, vector<10x64xf32>
    tpu.vector_store %arg9[%c0_14, %c0_15], %23 {strides = array<i32>} : memref<10x64xf32, #tpu.memory_space<vmem>>, vector<10x64xf32>,
    %c1_16 = arith.constant 1 : index
    %c0_17 = arith.constant 0 : index
    %25 = vector.load %arg9[%c1_16, %c0_17] : memref<10x64xf32, #tpu.memory_space<vmem>>, vector<8x64xf32>
    tpu.vector_store %arg9[%c1_16, %c0_17], %22 {strides = array<i32>} : memref<10x64xf32, #tpu.memory_space<vmem>>, vector<8x64xf32>,
    %c0_18 = arith.constant 0 : index
    %c0_19 = arith.constant 0 : index
    %26 = vector.load %arg9[%c0_18, %c0_19] : memref<10x64xf32, #tpu.memory_space<vmem>>, vector<10x64xf32>
    %27 = vector.extract_strided_slice %26 {offsets = [0, 0], sizes = [8, 64], strides = [1, 1]} : vector<10x64xf32> to vector<8x64xf32>
    %28 = arith.truncf %27 : vector<8x64xf32> to vector<8x64xbf16>
    %c0_20 = arith.constant 0 : index
    %c0_21 = arith.constant 0 : index
    %c0_22 = arith.constant 0 : index
    %29 = vector.load %arg4[%c0_20, %c0_21, %c0_22] : memref<3x64x32xbf16, #tpu.memory_space<vmem>>, vector<1x64x32xbf16>
    %30 = vector.shape_cast %29 : vector<1x64x32xbf16> to vector<64x32xbf16>
    %cst_23 = arith.constant dense<0.000000e+00> : vector<8x32xf32>
    %31 = tpu.matmul %28, %30, %cst_23 {dimension_numbers = #tpu.dot_dimension_numbers<[1], [0], [0], [1], [0, 0, 1, 1], [], []>} : vector<8x64xbf16>, vector<64x32xbf16>, vector<8x32xf32> -> vector<8x32xf32>
    %32 = vector.extract_strided_slice %26 {offsets = [1, 0], sizes = [8, 64], strides = [1, 1]} : vector<10x64xf32> to vector<8x64xf32>
    %33 = arith.truncf %32 : vector<8x64xf32> to vector<8x64xbf16>
    %c1_24 = arith.constant 1 : index
    %c0_25 = arith.constant 0 : index
    %c0_26 = arith.constant 0 : index
    %34 = vector.load %arg4[%c1_24, %c0_25, %c0_26] : memref<3x64x32xbf16, #tpu.memory_space<vmem>>, vector<1x64x32xbf16>
    %35 = vector.shape_cast %34 : vector<1x64x32xbf16> to vector<64x32xbf16>
    %cst_27 = arith.constant dense<0.000000e+00> : vector<8x32xf32>
    %36 = tpu.matmul %33, %35, %cst_27 {dimension_numbers = #tpu.dot_dimension_numbers<[1], [0], [0], [1], [0, 0, 1, 1], [], []>} : vector<8x64xbf16>, vector<64x32xbf16>, vector<8x32xf32> -> vector<8x32xf32>
    %37 = arith.addf %31, %36 : vector<8x32xf32>
    %38 = vector.extract_strided_slice %26 {offsets = [2, 0], sizes = [8, 64], strides = [1, 1]} : vector<10x64xf32> to vector<8x64xf32>
    %39 = arith.truncf %38 : vector<8x64xf32> to vector<8x64xbf16>
    %c2_28 = arith.constant 2 : index
    %c0_29 = arith.constant 0 : index
    %c0_30 = arith.constant 0 : index
    %40 = vector.load %arg4[%c2_28, %c0_29, %c0_30] : memref<3x64x32xbf16, #tpu.memory_space<vmem>>, vector<1x64x32xbf16>
    %41 = vector.shape_cast %40 : vector<1x64x32xbf16> to vector<64x32xbf16>
    %cst_31 = arith.constant dense<0.000000e+00> : vector<8x32xf32>
    %42 = tpu.matmul %39, %41, %cst_31 {dimension_numbers = #tpu.dot_dimension_numbers<[1], [0], [0], [1], [0, 0, 1, 1], [], []>} : vector<8x64xbf16>, vector<64x32xbf16>, vector<8x32xf32> -> vector<8x32xf32>
    %43 = arith.addf %37, %42 : vector<8x32xf32>
    %c0_32 = arith.constant 0 : index
    %c0_33 = arith.constant 0 : index
    %44 = vector.load %arg5[%c0_32, %c0_33] : memref<1x32xf32, #tpu.memory_space<vmem>>, vector<1x32xf32>
    %45 = vector.broadcast %44 : vector<1x32xf32> to vector<8x32xf32>
    %46 = arith.addf %43, %45 : vector<8x32xf32>
    %cst_34 = arith.constant 0.000000e+00 : f32
    %47 = vector.broadcast %cst_34 : f32 to vector<8x32xf32>
    %48 = arith.cmpf oge, %46, %47 : vector<8x32xf32>
    %cst_35 = arith.constant 0.00999999977 : f32
    %49 = vector.broadcast %cst_35 : f32 to vector<8x32xf32>
    %50 = arith.mulf %49, %46 : vector<8x32xf32>
    %51 = arith.select %48, %46, %50 : vector<8x32xi1>, vector<8x32xf32>
    %cst_36 = arith.constant 0.000000e+00 : f32
    %52 = vector.broadcast %cst_36 : f32 to vector<10x32xf32>
    %c0_37 = arith.constant 0 : index
    %c0_38 = arith.constant 0 : index
    %53 = vector.load %arg10[%c0_37, %c0_38] : memref<10x32xf32, #tpu.memory_space<vmem>>, vector<10x32xf32>
    tpu.vector_store %arg10[%c0_37, %c0_38], %52 {strides = array<i32>} : memref<10x32xf32, #tpu.memory_space<vmem>>, vector<10x32xf32>,
    %c1_39 = arith.constant 1 : index
    %c0_40 = arith.constant 0 : index
    %54 = vector.load %arg10[%c1_39, %c0_40] : memref<10x32xf32, #tpu.memory_space<vmem>>, vector<8x32xf32>
    tpu.vector_store %arg10[%c1_39, %c0_40], %51 {strides = array<i32>} : memref<10x32xf32, #tpu.memory_space<vmem>>, vector<8x32xf32>,
    %c0_41 = arith.constant 0 : index
    %c0_42 = arith.constant 0 : index
    %55 = vector.load %arg10[%c0_41, %c0_42] : memref<10x32xf32, #tpu.memory_space<vmem>>, vector<10x32xf32>
    %56 = vector.extract_strided_slice %55 {offsets = [0, 0], sizes = [8, 32], strides = [1, 1]} : vector<10x32xf32> to vector<8x32xf32>
    %57 = arith.truncf %56 : vector<8x32xf32> to vector<8x32xbf16>
    %c0_43 = arith.constant 0 : index
    %c0_44 = arith.constant 0 : index
    %c0_45 = arith.constant 0 : index
    %58 = vector.load %arg6[%c0_43, %c0_44, %c0_45] : memref<3x32x64xbf16, #tpu.memory_space<vmem>>, vector<1x32x64xbf16>
    %59 = vector.shape_cast %58 : vector<1x32x64xbf16> to vector<32x64xbf16>
    %cst_46 = arith.constant dense<0.000000e+00> : vector<8x64xf32>
    %60 = tpu.matmul %57, %59, %cst_46 {dimension_numbers = #tpu.dot_dimension_numbers<[1], [0], [0], [1], [0, 0, 1, 1], [], []>} : vector<8x32xbf16>, vector<32x64xbf16>, vector<8x64xf32> -> vector<8x64xf32>
    %61 = vector.extract_strided_slice %55 {offsets = [1, 0], sizes = [8, 32], strides = [1, 1]} : vector<10x32xf32> to vector<8x32xf32>
    %62 = arith.truncf %61 : vector<8x32xf32> to vector<8x32xbf16>
    %c1_47 = arith.constant 1 : index
    %c0_48 = arith.constant 0 : index
    %c0_49 = arith.constant 0 : index
    %63 = vector.load %arg6[%c1_47, %c0_48, %c0_49] : memref<3x32x64xbf16, #tpu.memory_space<vmem>>, vector<1x32x64xbf16>
    %64 = vector.shape_cast %63 : vector<1x32x64xbf16> to vector<32x64xbf16>
    %cst_50 = arith.constant dense<0.000000e+00> : vector<8x64xf32>
    %65 = tpu.matmul %62, %64, %cst_50 {dimension_numbers = #tpu.dot_dimension_numbers<[1], [0], [0], [1], [0, 0, 1, 1], [], []>} : vector<8x32xbf16>, vector<32x64xbf16>, vector<8x64xf32> -> vector<8x64xf32>
    %66 = arith.addf %60, %65 : vector<8x64xf32>
    %67 = vector.extract_strided_slice %55 {offsets = [2, 0], sizes = [8, 32], strides = [1, 1]} : vector<10x32xf32> to vector<8x32xf32>
    %68 = arith.truncf %67 : vector<8x32xf32> to vector<8x32xbf16>
    %c2_51 = arith.constant 2 : index
    %c0_52 = arith.constant 0 : index
    %c0_53 = arith.constant 0 : index
    %69 = vector.load %arg6[%c2_51, %c0_52, %c0_53] : memref<3x32x64xbf16, #tpu.memory_space<vmem>>, vector<1x32x64xbf16>
    %70 = vector.shape_cast %69 : vector<1x32x64xbf16> to vector<32x64xbf16>
    %cst_54 = arith.constant dense<0.000000e+00> : vector<8x64xf32>
    %71 = tpu.matmul %68, %70, %cst_54 {dimension_numbers = #tpu.dot_dimension_numbers<[1], [0], [0], [1], [0, 0, 1, 1], [], []>} : vector<8x32xbf16>, vector<32x64xbf16>, vector<8x64xf32> -> vector<8x64xf32>
    %72 = arith.addf %66, %71 : vector<8x64xf32>
    %c0_55 = arith.constant 0 : index
    %c0_56 = arith.constant 0 : index
    %73 = vector.load %arg7[%c0_55, %c0_56] : memref<1x64xf32, #tpu.memory_space<vmem>>, vector<1x64xf32>
    %74 = vector.broadcast %73 : vector<1x64xf32> to vector<8x64xf32>
    %75 = arith.addf %72, %74 : vector<8x64xf32>
    %cst_57 = arith.constant 0.000000e+00 : f32
    %76 = vector.broadcast %cst_57 : f32 to vector<8x64xf32>
    %77 = arith.subf %76, %75 : vector<8x64xf32>
    %78 = math.exp %77 : vector<8x64xf32>
    %cst_58 = arith.constant 1.000000e+00 : f32
    %79 = vector.broadcast %cst_58 : f32 to vector<8x64xf32>
    %80 = arith.addf %79, %78 : vector<8x64xf32>
    %81 = tpu.reciprocal %80 {approx = true} : vector<8x64xf32> -> vector<8x64xf32>
    %82 = arith.mulf %81, %22 : vector<8x64xf32>
    %c0_59 = arith.constant 0 : index
    %c0_60 = arith.constant 0 : index
    %c0_61 = arith.constant 0 : index
    %83 = vector.load %arg8[%c0_59, %c0_60, %c0_61] : memref<1x8x64xf32, #tpu.memory_space<vmem>>, vector<1x8x64xf32>
    %84 = vector.shape_cast %83 : vector<1x8x64xf32> to vector<8x64xf32>
    %85 = vector.shape_cast %82 : vector<8x64xf32> to vector<1x8x64xf32>
    tpu.vector_store %arg8[%c0_59, %c0_60, %c0_61], %85 {strides = array<i32>} : memref<1x8x64xf32, #tpu.memory_space<vmem>>, vector<1x8x64xf32>,
    return
  }
  func.func @transform_0(%arg0: i32) -> (i32, i32, i32) {
    %c0_i32 = arith.constant 0 : i32
    %c0_i32_0 = arith.constant 0 : i32
    %c0_i32_1 = arith.constant 0 : i32
    return %arg0, %c0_i32, %c0_i32_0 : i32, i32, i32
  }
  func.func @transform_1(%arg0: i32) -> (i32, i32, i32) {
    %c0_i32 = arith.constant 0 : i32
    %c0_i32_0 = arith.constant 0 : i32
    %c0_i32_1 = arith.constant 0 : i32
    %c0_i32_2 = arith.constant 0 : i32
    return %c0_i32, %c0_i32_0, %c0_i32_1 : i32, i32, i32
  }
  func.func @transform_2(%arg0: i32) -> (i32, i32) {
    %c0_i32 = arith.constant 0 : i32
    %c0_i32_0 = arith.constant 0 : i32
    %c0_i32_1 = arith.constant 0 : i32
    return %c0_i32, %c0_i32_0 : i32, i32
  }
  func.func @transform_3(%arg0: i32) -> (i32, i32, i32) {
    %c0_i32 = arith.constant 0 : i32
    %c0_i32_0 = arith.constant 0 : i32
    %c0_i32_1 = arith.constant 0 : i32
    %c0_i32_2 = arith.constant 0 : i32
    return %c0_i32, %c0_i32_0, %c0_i32_1 : i32, i32, i32
  }
  func.func @transform_4(%arg0: i32) -> (i32, i32) {
    %c0_i32 = arith.constant 0 : i32
    %c0_i32_0 = arith.constant 0 : i32
    %c0_i32_1 = arith.constant 0 : i32
    return %c0_i32, %c0_i32_0 : i32, i32
  }
  func.func @transform_5(%arg0: i32) -> (i32, i32, i32) {
    %c0_i32 = arith.constant 0 : i32
    %c0_i32_0 = arith.constant 0 : i32
    %c0_i32_1 = arith.constant 0 : i32
    %c0_i32_2 = arith.constant 0 : i32
    return %c0_i32, %c0_i32_0, %c0_i32_1 : i32, i32, i32
  }
  func.func @transform_6(%arg0: i32) -> (i32, i32) {
    %c0_i32 = arith.constant 0 : i32
    %c0_i32_0 = arith.constant 0 : i32
    %c0_i32_1 = arith.constant 0 : i32
    return %c0_i32, %c0_i32_0 : i32, i32
  }
  func.func @transform_7(%arg0: i32) -> (i32, i32, i32) {
    %c0_i32 = arith.constant 0 : i32
    %c0_i32_0 = arith.constant 0 : i32
    %c0_i32_1 = arith.constant 0 : i32
    return %arg0, %c0_i32, %c0_i32_0 : i32, i32, i32
  }
}

module attributes {stable_mosaic.version = 11 : i64} {
  func.func @_conv3x3_kernel(%arg0: i32, %arg1: i32, %arg2: memref<1x18x128xbf16, #tpu.memory_space<vmem>>, %arg3: memref<3x128x128xbf16, #tpu.memory_space<vmem>>, %arg4: memref<1x128xf32, #tpu.memory_space<vmem>>, %arg5: memref<1x16x128xf32, #tpu.memory_space<vmem>>) attributes {dimension_semantics = [#tpu.dimension_semantics<parallel>, #tpu.dimension_semantics<parallel>], iteration_bounds = array<i64: 2, 1>, scalar_prefetch = 0 : i64, scratch_operands = 0 : i64, tpu.core_type = #tpu.core_type<tc>, window_params = [{transform_indices = @transform_0, window_bounds = array<i64: 1, 18, 128>}, {pipeline_mode = #tpu.pipeline_mode<synchronous>, transform_indices = @transform_1, window_bounds = array<i64: 3, 128, 128>}, {pipeline_mode = #tpu.pipeline_mode<synchronous>, transform_indices = @transform_2, window_bounds = array<i64: 1, 128>}, {transform_indices = @transform_3, window_bounds = array<i64: 1, 16, 128>}]} {
    %c0 = arith.constant 0 : index
    %c0_0 = arith.constant 0 : index
    %c0_1 = arith.constant 0 : index
    %0 = vector.load %arg2[%c0, %c0_0, %c0_1] : memref<1x18x128xbf16, #tpu.memory_space<vmem>>, vector<1x18x128xbf16>
    %1 = vector.shape_cast %0 : vector<1x18x128xbf16> to vector<18x128xbf16>
    %2 = arith.extf %1 : vector<18x128xbf16> to vector<18x128xf32>
    %3 = vector.extract_strided_slice %2 {offsets = [0, 0], sizes = [16, 128], strides = [1, 1]} : vector<18x128xf32> to vector<16x128xf32>
    %4 = arith.truncf %3 : vector<16x128xf32> to vector<16x128xbf16>
    %c0_2 = arith.constant 0 : index
    %c0_3 = arith.constant 0 : index
    %c0_4 = arith.constant 0 : index
    %5 = vector.load %arg3[%c0_2, %c0_3, %c0_4] : memref<3x128x128xbf16, #tpu.memory_space<vmem>>, vector<1x128x128xbf16>
    %6 = vector.shape_cast %5 : vector<1x128x128xbf16> to vector<128x128xbf16>
    %cst = arith.constant dense<0.000000e+00> : vector<16x128xf32>
    %7 = tpu.matmul %4, %6, %cst {dimension_numbers = #tpu.dot_dimension_numbers<[1], [0], [0], [1], [0, 0, 1, 1], [], []>} : vector<16x128xbf16>, vector<128x128xbf16>, vector<16x128xf32> -> vector<16x128xf32>
    %8 = vector.extract_strided_slice %2 {offsets = [1, 0], sizes = [16, 128], strides = [1, 1]} : vector<18x128xf32> to vector<16x128xf32>
    %9 = arith.truncf %8 : vector<16x128xf32> to vector<16x128xbf16>
    %c1 = arith.constant 1 : index
    %c0_5 = arith.constant 0 : index
    %c0_6 = arith.constant 0 : index
    %10 = vector.load %arg3[%c1, %c0_5, %c0_6] : memref<3x128x128xbf16, #tpu.memory_space<vmem>>, vector<1x128x128xbf16>
    %11 = vector.shape_cast %10 : vector<1x128x128xbf16> to vector<128x128xbf16>
    %cst_7 = arith.constant dense<0.000000e+00> : vector<16x128xf32>
    %12 = tpu.matmul %9, %11, %cst_7 {dimension_numbers = #tpu.dot_dimension_numbers<[1], [0], [0], [1], [0, 0, 1, 1], [], []>} : vector<16x128xbf16>, vector<128x128xbf16>, vector<16x128xf32> -> vector<16x128xf32>
    %13 = arith.addf %7, %12 : vector<16x128xf32>
    %14 = vector.extract_strided_slice %2 {offsets = [2, 0], sizes = [16, 128], strides = [1, 1]} : vector<18x128xf32> to vector<16x128xf32>
    %15 = arith.truncf %14 : vector<16x128xf32> to vector<16x128xbf16>
    %c2 = arith.constant 2 : index
    %c0_8 = arith.constant 0 : index
    %c0_9 = arith.constant 0 : index
    %16 = vector.load %arg3[%c2, %c0_8, %c0_9] : memref<3x128x128xbf16, #tpu.memory_space<vmem>>, vector<1x128x128xbf16>
    %17 = vector.shape_cast %16 : vector<1x128x128xbf16> to vector<128x128xbf16>
    %cst_10 = arith.constant dense<0.000000e+00> : vector<16x128xf32>
    %18 = tpu.matmul %15, %17, %cst_10 {dimension_numbers = #tpu.dot_dimension_numbers<[1], [0], [0], [1], [0, 0, 1, 1], [], []>} : vector<16x128xbf16>, vector<128x128xbf16>, vector<16x128xf32> -> vector<16x128xf32>
    %19 = arith.addf %13, %18 : vector<16x128xf32>
    %c0_11 = arith.constant 0 : index
    %c0_12 = arith.constant 0 : index
    %20 = vector.load %arg4[%c0_11, %c0_12] : memref<1x128xf32, #tpu.memory_space<vmem>>, vector<1x128xf32>
    %21 = vector.broadcast %20 : vector<1x128xf32> to vector<16x128xf32>
    %22 = arith.addf %19, %21 : vector<16x128xf32>
    %c0_13 = arith.constant 0 : index
    %c0_14 = arith.constant 0 : index
    %c0_15 = arith.constant 0 : index
    %23 = vector.load %arg5[%c0_13, %c0_14, %c0_15] : memref<1x16x128xf32, #tpu.memory_space<vmem>>, vector<1x16x128xf32>
    %24 = vector.shape_cast %23 : vector<1x16x128xf32> to vector<16x128xf32>
    %25 = vector.shape_cast %22 : vector<16x128xf32> to vector<1x16x128xf32>
    tpu.vector_store %arg5[%c0_13, %c0_14, %c0_15], %25 {strides = array<i32>} : memref<1x16x128xf32, #tpu.memory_space<vmem>>, vector<1x16x128xf32>,
    return
  }
  func.func @transform_0(%arg0: i32, %arg1: i32) -> (i32, i32, i32) {
    %c0_i32 = arith.constant 0 : i32
    %c0_i32_0 = arith.constant 0 : i32
    %c0_i32_1 = arith.constant 0 : i32
    return %arg0, %c0_i32, %c0_i32_0 : i32, i32, i32
  }
  func.func @transform_1(%arg0: i32, %arg1: i32) -> (i32, i32, i32) {
    %c0_i32 = arith.constant 0 : i32
    %c0_i32_0 = arith.constant 0 : i32
    %c0_i32_1 = arith.constant 0 : i32
    %c0_i32_2 = arith.constant 0 : i32
    return %c0_i32, %c0_i32_0, %c0_i32_1 : i32, i32, i32
  }
  func.func @transform_2(%arg0: i32, %arg1: i32) -> (i32, i32) {
    %c0_i32 = arith.constant 0 : i32
    %c0_i32_0 = arith.constant 0 : i32
    %c0_i32_1 = arith.constant 0 : i32
    return %c0_i32, %c0_i32_0 : i32, i32
  }
  func.func @transform_3(%arg0: i32, %arg1: i32) -> (i32, i32, i32) {
    %c0_i32 = arith.constant 0 : i32
    %c0_i32_0 = arith.constant 0 : i32
    return %arg0, %arg1, %c0_i32 : i32, i32, i32
  }
}

module attributes {stable_mosaic.version = 11 : i64} {
  func.func @_conv3x3_kernel(%arg0: i32, %arg1: i32, %arg2: memref<1x18x128xbf16, #tpu.memory_space<vmem>>, %arg3: memref<3x128x128xbf16, #tpu.memory_space<vmem>>, %arg4: memref<1x128xf32, #tpu.memory_space<vmem>>, %arg5: memref<1x16x128xf32, #tpu.memory_space<vmem>>, %arg6: memref<1x16x128xf32, #tpu.memory_space<vmem>>) attributes {dimension_semantics = [#tpu.dimension_semantics<parallel>, #tpu.dimension_semantics<parallel>], iteration_bounds = array<i64: 2, 1>, scalar_prefetch = 0 : i64, scratch_operands = 0 : i64, tpu.core_type = #tpu.core_type<tc>, window_params = [{transform_indices = @transform_0, window_bounds = array<i64: 1, 18, 128>}, {pipeline_mode = #tpu.pipeline_mode<synchronous>, transform_indices = @transform_1, window_bounds = array<i64: 3, 128, 128>}, {pipeline_mode = #tpu.pipeline_mode<synchronous>, transform_indices = @transform_2, window_bounds = array<i64: 1, 128>}, {transform_indices = @transform_3, window_bounds = array<i64: 1, 16, 128>}, {transform_indices = @transform_4, window_bounds = array<i64: 1, 16, 128>}]} {
    %c0 = arith.constant 0 : index
    %c0_0 = arith.constant 0 : index
    %c0_1 = arith.constant 0 : index
    %0 = vector.load %arg2[%c0, %c0_0, %c0_1] : memref<1x18x128xbf16, #tpu.memory_space<vmem>>, vector<1x18x128xbf16>
    %1 = vector.shape_cast %0 : vector<1x18x128xbf16> to vector<18x128xbf16>
    %2 = arith.extf %1 : vector<18x128xbf16> to vector<18x128xf32>
    %cst = arith.constant 5.000000e-01 : f32
    %3 = vector.broadcast %cst : f32 to vector<18x128xf32>
    %4 = arith.mulf %3, %2 : vector<18x128xf32>
    %cst_2 = arith.constant 4.471500e-02 : f32
    %5 = vector.broadcast %cst_2 : f32 to vector<18x128xf32>
    %6 = arith.mulf %5, %2 : vector<18x128xf32>
    %7 = arith.mulf %6, %2 : vector<18x128xf32>
    %8 = arith.mulf %7, %2 : vector<18x128xf32>
    %9 = arith.addf %2, %8 : vector<18x128xf32>
    %cst_3 = arith.constant 0.797884583 : f32
    %10 = vector.broadcast %cst_3 : f32 to vector<18x128xf32>
    %11 = arith.mulf %10, %9 : vector<18x128xf32>
    %12 = math.tanh %11 : vector<18x128xf32>
    %cst_4 = arith.constant 1.000000e+00 : f32
    %13 = vector.broadcast %cst_4 : f32 to vector<18x128xf32>
    %14 = arith.addf %13, %12 : vector<18x128xf32>
    %15 = arith.mulf %4, %14 : vector<18x128xf32>
    %16 = vector.extract_strided_slice %15 {offsets = [0, 0], sizes = [16, 128], strides = [1, 1]} : vector<18x128xf32> to vector<16x128xf32>
    %17 = arith.truncf %16 : vector<16x128xf32> to vector<16x128xbf16>
    %c0_5 = arith.constant 0 : index
    %c0_6 = arith.constant 0 : index
    %c0_7 = arith.constant 0 : index
    %18 = vector.load %arg3[%c0_5, %c0_6, %c0_7] : memref<3x128x128xbf16, #tpu.memory_space<vmem>>, vector<1x128x128xbf16>
    %19 = vector.shape_cast %18 : vector<1x128x128xbf16> to vector<128x128xbf16>
    %cst_8 = arith.constant dense<0.000000e+00> : vector<16x128xf32>
    %20 = tpu.matmul %17, %19, %cst_8 {dimension_numbers = #tpu.dot_dimension_numbers<[1], [0], [0], [1], [0, 0, 1, 1], [], []>} : vector<16x128xbf16>, vector<128x128xbf16>, vector<16x128xf32> -> vector<16x128xf32>
    %21 = vector.extract_strided_slice %15 {offsets = [1, 0], sizes = [16, 128], strides = [1, 1]} : vector<18x128xf32> to vector<16x128xf32>
    %22 = arith.truncf %21 : vector<16x128xf32> to vector<16x128xbf16>
    %c1 = arith.constant 1 : index
    %c0_9 = arith.constant 0 : index
    %c0_10 = arith.constant 0 : index
    %23 = vector.load %arg3[%c1, %c0_9, %c0_10] : memref<3x128x128xbf16, #tpu.memory_space<vmem>>, vector<1x128x128xbf16>
    %24 = vector.shape_cast %23 : vector<1x128x128xbf16> to vector<128x128xbf16>
    %cst_11 = arith.constant dense<0.000000e+00> : vector<16x128xf32>
    %25 = tpu.matmul %22, %24, %cst_11 {dimension_numbers = #tpu.dot_dimension_numbers<[1], [0], [0], [1], [0, 0, 1, 1], [], []>} : vector<16x128xbf16>, vector<128x128xbf16>, vector<16x128xf32> -> vector<16x128xf32>
    %26 = arith.addf %20, %25 : vector<16x128xf32>
    %27 = vector.extract_strided_slice %15 {offsets = [2, 0], sizes = [16, 128], strides = [1, 1]} : vector<18x128xf32> to vector<16x128xf32>
    %28 = arith.truncf %27 : vector<16x128xf32> to vector<16x128xbf16>
    %c2 = arith.constant 2 : index
    %c0_12 = arith.constant 0 : index
    %c0_13 = arith.constant 0 : index
    %29 = vector.load %arg3[%c2, %c0_12, %c0_13] : memref<3x128x128xbf16, #tpu.memory_space<vmem>>, vector<1x128x128xbf16>
    %30 = vector.shape_cast %29 : vector<1x128x128xbf16> to vector<128x128xbf16>
    %cst_14 = arith.constant dense<0.000000e+00> : vector<16x128xf32>
    %31 = tpu.matmul %28, %30, %cst_14 {dimension_numbers = #tpu.dot_dimension_numbers<[1], [0], [0], [1], [0, 0, 1, 1], [], []>} : vector<16x128xbf16>, vector<128x128xbf16>, vector<16x128xf32> -> vector<16x128xf32>
    %32 = arith.addf %26, %31 : vector<16x128xf32>
    %c0_15 = arith.constant 0 : index
    %c0_16 = arith.constant 0 : index
    %33 = vector.load %arg4[%c0_15, %c0_16] : memref<1x128xf32, #tpu.memory_space<vmem>>, vector<1x128xf32>
    %34 = vector.broadcast %33 : vector<1x128xf32> to vector<16x128xf32>
    %35 = arith.addf %32, %34 : vector<16x128xf32>
    %c0_17 = arith.constant 0 : index
    %c0_18 = arith.constant 0 : index
    %c0_19 = arith.constant 0 : index
    %36 = vector.load %arg5[%c0_17, %c0_18, %c0_19] : memref<1x16x128xf32, #tpu.memory_space<vmem>>, vector<1x16x128xf32>
    %37 = vector.shape_cast %36 : vector<1x16x128xf32> to vector<16x128xf32>
    %38 = arith.addf %35, %37 : vector<16x128xf32>
    %c0_20 = arith.constant 0 : index
    %c0_21 = arith.constant 0 : index
    %c0_22 = arith.constant 0 : index
    %39 = vector.load %arg6[%c0_20, %c0_21, %c0_22] : memref<1x16x128xf32, #tpu.memory_space<vmem>>, vector<1x16x128xf32>
    %40 = vector.shape_cast %39 : vector<1x16x128xf32> to vector<16x128xf32>
    %41 = vector.shape_cast %38 : vector<16x128xf32> to vector<1x16x128xf32>
    tpu.vector_store %arg6[%c0_20, %c0_21, %c0_22], %41 {strides = array<i32>} : memref<1x16x128xf32, #tpu.memory_space<vmem>>, vector<1x16x128xf32>,
    return
  }
  func.func @transform_0(%arg0: i32, %arg1: i32) -> (i32, i32, i32) {
    %c0_i32 = arith.constant 0 : i32
    %c0_i32_0 = arith.constant 0 : i32
    %c0_i32_1 = arith.constant 0 : i32
    return %arg0, %c0_i32, %c0_i32_0 : i32, i32, i32
  }
  func.func @transform_1(%arg0: i32, %arg1: i32) -> (i32, i32, i32) {
    %c0_i32 = arith.constant 0 : i32
    %c0_i32_0 = arith.constant 0 : i32
    %c0_i32_1 = arith.constant 0 : i32
    %c0_i32_2 = arith.constant 0 : i32
    return %c0_i32, %c0_i32_0, %c0_i32_1 : i32, i32, i32
  }
  func.func @transform_2(%arg0: i32, %arg1: i32) -> (i32, i32) {
    %c0_i32 = arith.constant 0 : i32
    %c0_i32_0 = arith.constant 0 : i32
    %c0_i32_1 = arith.constant 0 : i32
    return %c0_i32, %c0_i32_0 : i32, i32
  }
  func.func @transform_3(%arg0: i32, %arg1: i32) -> (i32, i32, i32) {
    %c0_i32 = arith.constant 0 : i32
    %c0_i32_0 = arith.constant 0 : i32
    return %arg0, %arg1, %c0_i32 : i32, i32, i32
  }
  func.func @transform_4(%arg0: i32, %arg1: i32) -> (i32, i32, i32) {
    %c0_i32 = arith.constant 0 : i32
    %c0_i32_0 = arith.constant 0 : i32
    return %arg0, %arg1, %c0_i32 : i32, i32, i32
  }
}

</mosaic_0001>

<llo_original>
// kernel: micm_forward.6
$region0: #{micm_forward.6}
  #allocation0 [shape = 'u32[]', space=smem, size = 0x4, offset = 0x4, fixed_abs, tag = 'smem constant byte address 0x4 - core index']
  #allocation1 [shape = 'u32[144,128]{1,0:T(1,128)}', space=vmem, size = 0x12000, scoped, tag = 'internal scratch']
  #allocation2 [shape = 'f32[4,16]{1,0:T(4,128)}', space=vmem, size = 0x800, scoped, tag = 'scratch operand']
  #allocation3 [shape = 'f32[4,8]{1,0:T(4,128)}', space=vmem, size = 0x800, scoped, tag = 'scratch operand']
  %s0 = inlined_call_operand.vmem [shape: bf16[2,4,16], index: 0, kind: input, shape index: {}]
  %s1 = inlined_call_operand.vmem [shape: bf16[3,16,16], index: 1, kind: input, shape index: {}]
  %s2 = inlined_call_operand.vmem [shape: f32[1,16], index: 2, kind: input, shape index: {}]
  %s3 = inlined_call_operand.vmem [shape: bf16[3,16,8], index: 3, kind: input, shape index: {}]
  %s4 = inlined_call_operand.vmem [shape: f32[1,8], index: 4, kind: input, shape index: {}]
  %s5 = inlined_call_operand.vmem [shape: bf16[3,8,16], index: 5, kind: input, shape index: {}]
  %s6 = inlined_call_operand.vmem [shape: f32[1,16], index: 6, kind: input, shape index: {}]
  %s7 = inlined_call_operand.vmem [shape: f32[2,2,16], index: 7, kind: output, shape index: {}]
  %s8 = sld [smem:[#allocation0]]
  $region61: #{micm_forward.6} parent=0
    _
  %s10 = ssub.s32 1, %s8
  %s11 = scalar_select 0, %s10, %s8
  loop: start=0, step=1, limit=4
  $region2: #{micm_forward.6} parent=0 // loop_pre_header
    _
  $region3: #{micm_forward.6} parent=0 // loop_header
    %s13 = sphi 0, %s17
    %p14 = scmp.ge.s32.totalorder %s13, 4
    %s23 = sphi 0, %s25
    %s26 = sphi 0, %s23
    %s27 = sphi 0, %s26
    %s43 = sphi 0, %s27
    %s47 = sphi 0, %s47
    %s49 = sphi 0, %s47
    %s50 = sphi 0, %s49
    %s64 = sphi 0, %s50
    %s68 = sphi 0, %s68
    %s70 = sphi 0, %s68
    %s71 = sphi 0, %s70
    %s85 = sphi 0, %s71
    %s89 = sphi 0, %s89
    %s91 = sphi 0, %s89
    %s92 = sphi 0, %s91
    %s106 = sphi 0, %s92
    %s110 = sphi 0, %s110
    %s112 = sphi 0, %s110
    %s113 = sphi 0, %s112
    %s127 = sphi 0, %s113
    %s131 = sphi 0, %s131
    %s133 = sphi 0, %s131
    %s134 = sphi 0, %s133
    %s148 = sphi 0, %s134
    %s152 = sphi 0, %s152
    %s154 = sphi 0, %s152
    %s155 = sphi 0, %s154
    %s169 = sphi 0, %s155
    %s175 = sphi 0, %s177
    %s178 = sphi 0, %s175
    %s179 = sphi 0, %s178
    %s195 = sphi 0, %s179
  $region4: #{micm_forward.6} parent=0 // loop_header_branch
    %16 = sbr.rel (%p14) target = $region8
  $region5: #{micm_forward.6} parent=0 // loop_body
    %s18 = ssub.s32 %s13, 1
    %s19 = ssub.s32 %s13, 2
    %s20 = sadd.s32 %s13, 1
    %s21 = ssub.s32 %s13, %s20
    %p22 = scmp.eq.s32.totalorder %s21, 0
    %s24 = sadd.s32 %s23, 1
    %s25 = scalar_select %p22, %s23, %s24
    %p28 = pneg %p22
    %p29 = scmp.eq.s32.totalorder %s13, 1
    %p30 = por %p28, %p29
    %p31 = scmp.ne.s32.totalorder %s23, %s26
    %p32 = scmp.eq.s32.totalorder %s13, 0
    %p33 = por %p31, %p32
    %p34 = scmp.ne.s32.totalorder %s23, %s26
    %p35 = scmp.eq.s32.totalorder %s18, 1
    %p36 = por %p34, %p35
    %p37 = scmp.ne.s32.totalorder %s26, %s27
    %p38 = scmp.eq.s32.totalorder %s18, 0
    %p39 = por %p37, %p38
    %p40 = scmp.ne.s32.totalorder %s26, %s27
    %p41 = scmp.eq.s32.totalorder %s19, 1
    %p42 = por %p40, %p41
    %p44 = scmp.ne.s32.totalorder %s27, %s43
    %p45 = scmp.eq.s32.totalorder %s19, 0
    %p46 = por %p44, %p45
    %s48 = sadd.s32 %s47, 1
    %p51 = scmp.eq.s32.totalorder %s13, 1
    %p52 = scmp.ne.s32.totalorder %s47, %s49
    %p53 = scmp.eq.s32.totalorder %s13, 0
    %p54 = por %p52, %p53
    %p55 = scmp.ne.s32.totalorder %s47, %s49
    %p56 = scmp.eq.s32.totalorder %s18, 1
    %p57 = por %p55, %p56
    %p58 = scmp.ne.s32.totalorder %s49, %s50
    %p59 = scmp.eq.s32.totalorder %s18, 0
    %p60 = por %p58, %p59
    %p61 = scmp.ne.s32.totalorder %s49, %s50
    %p62 = scmp.eq.s32.totalorder %s19, 1
    %p63 = por %p61, %p62
    %p65 = scmp.ne.s32.totalorder %s50, %s64
    %p66 = scmp.eq.s32.totalorder %s19, 0
    %p67 = por %p65, %p66
    %s69 = sadd.s32 %s68, 1
    %p72 = scmp.eq.s32.totalorder %s13, 1
    %p73 = scmp.ne.s32.totalorder %s68, %s70
    %p74 = scmp.eq.s32.totalorder %s13, 0
    %p75 = por %p73, %p74
    %p76 = scmp.ne.s32.totalorder %s68, %s70
    %p77 = scmp.eq.s32.totalorder %s18, 1
    %p78 = por %p76, %p77
    %p79 = scmp.ne.s32.totalorder %s70, %s71
    %p80 = scmp.eq.s32.totalorder %s18, 0
    %p81 = por %p79, %p80
    %p82 = scmp.ne.s32.totalorder %s70, %s71
    %p83 = scmp.eq.s32.totalorder %s19, 1
    %p84 = por %p82, %p83
    %p86 = scmp.ne.s32.totalorder %s71, %s85
    %p87 = scmp.eq.s32.totalorder %s19, 0
    %p88 = por %p86, %p87
    %s90 = sadd.s32 %s89, 1
    %p93 = scmp.eq.s32.totalorder %s13, 1
    %p94 = scmp.ne.s32.totalorder %s89, %s91
    %p95 = scmp.eq.s32.totalorder %s13, 0
    %p96 = por %p94, %p95
    %p97 = scmp.ne.s32.totalorder %s89, %s91
    %p98 = scmp.eq.s32.totalorder %s18, 1
    %p99 = por %p97, %p98
    %p100 = scmp.ne.s32.totalorder %s91, %s92
    %p101 = scmp.eq.s32.totalorder %s18, 0
    %p102 = por %p100, %p101
    %p103 = scmp.ne.s32.totalorder %s91, %s92
    %p104 = scmp.eq.s32.totalorder %s19, 1
    %p105 = por %p103, %p104
    %p107 = scmp.ne.s32.totalorder %s92, %s106
    %p108 = scmp.eq.s32.totalorder %s19, 0
    %p109 = por %p107, %p108
    %s111 = sadd.s32 %s110, 1
    %p114 = scmp.eq.s32.totalorder %s13, 1
    %p115 = scmp.ne.s32.totalorder %s110, %s112
    %p116 = scmp.eq.s32.totalorder %s13, 0
    %p117 = por %p115, %p116
    %p118 = scmp.ne.s32.totalorder %s110, %s112
    %p119 = scmp.eq.s32.totalorder %s18, 1
    %p120 = por %p118, %p119
    %p121 = scmp.ne.s32.totalorder %s112, %s113
    %p122 = scmp.eq.s32.totalorder %s18, 0
    %p123 = por %p121, %p122
    %p124 = scmp.ne.s32.totalorder %s112, %s113
    %p125 = scmp.eq.s32.totalorder %s19, 1
    %p126 = por %p124, %p125
    %p128 = scmp.ne.s32.totalorder %s113, %s127
    %p129 = scmp.eq.s32.totalorder %s19, 0
    %p130 = por %p128, %p129
    %s132 = sadd.s32 %s131, 1
    %p135 = scmp.eq.s32.totalorder %s13, 1
    %p136 = scmp.ne.s32.totalorder %s131, %s133
    %p137 = scmp.eq.s32.totalorder %s13, 0
    %p138 = por %p136, %p137
    %p139 = scmp.ne.s32.totalorder %s131, %s133
    %p140 = scmp.eq.s32.totalorder %s18, 1
    %p141 = por %p139, %p140
    %p142 = scmp.ne.s32.totalorder %s133, %s134
    %p143 = scmp.eq.s32.totalorder %s18, 0
    %p144 = por %p142, %p143
    %p145 = scmp.ne.s32.totalorder %s133, %s134
    %p146 = scmp.eq.s32.totalorder %s19, 1
    %p147 = por %p145, %p146
    %p149 = scmp.ne.s32.totalorder %s134, %s148
    %p150 = scmp.eq.s32.totalorder %s19, 0
    %p151 = por %p149, %p150
    %s153 = sadd.s32 %s152, 1
    %p156 = scmp.eq.s32.totalorder %s13, 1
    %p157 = scmp.ne.s32.totalorder %s152, %s154
    %p158 = scmp.eq.s32.totalorder %s13, 0
    %p159 = por %p157, %p158
    %p160 = scmp.ne.s32.totalorder %s152, %s154
    %p161 = scmp.eq.s32.totalorder %s18, 1
    %p162 = por %p160, %p161
    %p163 = scmp.ne.s32.totalorder %s154, %s155
    %p164 = scmp.eq.s32.totalorder %s18, 0
    %p165 = por %p163, %p164
    %p166 = scmp.ne.s32.totalorder %s154, %s155
    %p167 = scmp.eq.s32.totalorder %s19, 1
    %p168 = por %p166, %p167
    %p170 = scmp.ne.s32.totalorder %s155, %s169
    %p171 = scmp.eq.s32.totalorder %s19, 0
    %p172 = por %p170, %p171
    %s173 = ssub.s32 %s13, %s20
    %p174 = scmp.eq.s32.totalorder %s173, 0
    %s176 = sadd.s32 %s175, 1
    %s177 = scalar_select %p174, %s175, %s176
    %p180 = pneg %p174
    %p181 = scmp.eq.s32.totalorder %s13, 1
    %p182 = por %p180, %p181
    %p183 = scmp.ne.s32.totalorder %s175, %s178
    %p184 = scmp.eq.s32.totalorder %s13, 0
    %p185 = por %p183, %p184
    %p186 = scmp.ne.s32.totalorder %s175, %s178
    %p187 = scmp.eq.s32.totalorder %s18, 1
    %p188 = por %p186, %p187
    %p189 = scmp.ne.s32.totalorder %s178, %s179
    %p190 = scmp.eq.s32.totalorder %s18, 0
    %p191 = por %p189, %p190
    %p192 = scmp.ne.s32.totalorder %s178, %s179
    %p193 = scmp.eq.s32.totalorder %s19, 1
    %p194 = por %p192, %p193
    %p196 = scmp.ne.s32.totalorder %s179, %s195
    %p197 = scmp.eq.s32.totalorder %s19, 0
    %p198 = por %p196, %p197
    %p199 = scmp.le.s32.totalorder 1, %s13
    %p200 = scmp.lt.s32.totalorder %s13, 3
    %p201 = pnand %p199, %p200
    %p202 = pneg %p201
    // Predicated region
    $region9: #{micm_forward.6} parent=5 // pred_check
      _
    $region10: #{micm_forward.6} parent=5 // pred_check_branch
      %204 = sbr.rel (%p201) target = $region12
    $region11: #{micm_forward.6} parent=5 // pred_region
      %s205 = ssub.s32 %s13, 1
      // Predicated region
      $region13: #{micm_forward.6} parent=11 // pred_check
        %p206 = pneg %p60
      $region14: #{micm_forward.6} parent=11 // pred_check_branch
        %208 = sbr.rel (%p206) target = $region16
      $region15: #{micm_forward.6} parent=11 // pred_region
        _
      $region16: #{micm_forward.6} parent=11 // pred_fallthru
        _
      // Predicated region
      $region17: #{micm_forward.6} parent=11 // pred_check
        %p209 = pneg %p81
      $region18: #{micm_forward.6} parent=11 // pred_check_branch
        %211 = sbr.rel (%p209) target = $region20
      $region19: #{micm_forward.6} parent=11 // pred_region
        _
      $region20: #{micm_forward.6} parent=11 // pred_fallthru
        _
      // Predicated region
      $region21: #{micm_forward.6} parent=11 // pred_check
        %p212 = pneg %p102
      $region22: #{micm_forward.6} parent=11 // pred_check_branch
        %214 = sbr.rel (%p212) target = $region24
      $region23: #{micm_forward.6} parent=11 // pred_region
        _
      $region24: #{micm_forward.6} parent=11 // pred_fallthru
        _
      // Predicated region
      $region25: #{micm_forward.6} parent=11 // pred_check
        %p215 = pneg %p123
      $region26: #{micm_forward.6} parent=11 // pred_check_branch
        %217 = sbr.rel (%p215) target = $region28
      $region27: #{micm_forward.6} parent=11 // pred_region
        _
      $region28: #{micm_forward.6} parent=11 // pred_fallthru
        _
      // Predicated region
      $region29: #{micm_forward.6} parent=11 // pred_check
        %p218 = pneg %p144
      $region30: #{micm_forward.6} parent=11 // pred_check_branch
        %220 = sbr.rel (%p218) target = $region32
      $region31: #{micm_forward.6} parent=11 // pred_region
        _
      $region32: #{micm_forward.6} parent=11 // pred_fallthru
        _
      // Predicated region
      $region33: #{micm_forward.6} parent=11 // pred_check
        %p221 = pneg %p165
      $region34: #{micm_forward.6} parent=11 // pred_check_branch
        %223 = sbr.rel (%p221) target = $region36
      $region35: #{micm_forward.6} parent=11 // pred_region
        _
      $region36: #{micm_forward.6} parent=11 // pred_fallthru
        _
    $region12: #{micm_forward.6} parent=5 // pred_fallthru
      _
    %p224 = scmp.lt.s32.totalorder %s13, 2
    // Predicated region
    $region37: #{micm_forward.6} parent=5 // pred_check
      %p225 = pneg %p224
    $region38: #{micm_forward.6} parent=5 // pred_check_branch
      %227 = sbr.rel (%p225) target = $region40
    $region39: #{micm_forward.6} parent=5 // pred_region
      // Predicated region
      $region41: #{micm_forward.6} parent=39 // pred_check
        %p228 = pneg %p33
      $region42: #{micm_forward.6} parent=39 // pred_check_branch
        %230 = sbr.rel (%p228) target = $region44
      $region43: #{micm_forward.6} parent=39 // pred_region
        %p231 = scmp.lt.s32.totalorder %s13, 1
        %s232 = scalar_select %p231, %s13, 1
        %s233 = smul.addr %s232, 2
        %s234 = scalar_lea.vmem %s0, %s233
      $region44: #{micm_forward.6} parent=39 // pred_fallthru
        _
    $region40: #{micm_forward.6} parent=5 // pred_fallthru
      _
    %p235 = scmp.le.s32.totalorder 1, %s13
    %p236 = scmp.lt.s32.totalorder %s13, 3
    %p237 = pnand %p235, %p236
    %p238 = pneg %p237
    // Predicated region
    $region45: #{micm_forward.6} parent=5 // pred_check
      _
    $region46: #{micm_forward.6} parent=5 // pred_check_branch
      %240 = sbr.rel (%p237) target = $region48
    $region47: #{micm_forward.6} parent=5 // pred_region
      %s241 = ssub.s32 %s13, 1
      %p242 = scmp.lt.s32.totalorder %s18, 1
      %s243 = scalar_select %p242, %s18, 1
      %s244 = smul.addr %s243, 2
      %s245 = scalar_lea.vmem %s0, %s244
      %p246 = pneg %p39
      %p247 = pneg %p36
      %p248 = pneg %p60
      %p249 = pneg %p57
      %p250 = pneg %p81
      %p251 = pneg %p78
      %p252 = pneg %p102
      %p253 = pneg %p99
      %p254 = pneg %p123
      %p255 = pneg %p120
      %p256 = pneg %p144
      %p257 = pneg %p141
      %p258 = pneg %p165
      %p259 = pneg %p162
      %p260 = pneg %p191
      %p261 = pneg %p188
      %p262 = scmp.lt.s32.totalorder %s18, 1
      %s263 = scalar_select %p262, %s18, 1
      %s264 = smul.addr %s263, 2
      %s265 = scalar_lea.vmem %s7, %s264
      %p266 = scmp.lt.s32.totalorder %s18, 1
      %s267 = scalar_select %p266, %s18, 1
      %s268 = smul.addr %s267, 2
      %s269 = scalar_lea.vmem %s0, %s268
      %p270 = scmp.lt.s32.totalorder %s18, 1
      %s271 = scalar_select %p270, %s18, 1
      %s272 = smul.addr %s271, 2
      %s273 = scalar_lea.vmem %s7, %s272
      %v275 = vld [vmem:[%s269] sm:$0x3]
      %v276 = vunpack.c.l.bf16 %v275
      %v277 = vpack.c.bf16 %v276, %v276
      %v278 = vld [vmem:[%s1] sm:$0xf]
      %v279 = vld [vmem:[%s1 + $0x4] sm:$0xf]
      %s280 = scalar_lea.vmem %s1, 8
      %v281 = vld [vmem:[%s280] sm:$0xf]
      %v282 = vld [vmem:[%s280 + $0x4] sm:$0xf]
      %v284 = vshrl.u32 %v277, 16
      %v286 = vshll.u32 %v277, 16
      %v288 = vrot.slane %v286, 1
      %v289 = vor.u32 %v284, %v288
      %v292 = vunpack.c.l.b16 %v281
      %v293 = vunpack.c.l.b16 %v282
      %v294 = vpack.c.b16 %v293, %v292
      %vm296 = vcmask 130048
      %v298 = vsel %vm296, %v289, 0
      %300 = vmatprep.subr.bf16.mxu0 0
      %301 = vmatpush1.bf16.msra.mxu0 0
      %302 = vmatprep.subr.bf16.mxu0 0
      %303 = vmatpush1.bf16.msra.mxu0 0
      %304 = vmatprep.subr.bf16.mxu0 0
      %305 = vmatpush1.bf16.msra.mxu0 0
      %306 = vmatprep.subr.bf16.mxu0 0
      %307 = vmatpush1.bf16.msra.mxu0 0
      %308 = vmatprep.subr.bf16.mxu0 0
      %309 = vmatpush1.bf16.msra.mxu0 0
      %310 = vmatprep.subr.bf16.mxu0 0
      %311 = vmatpush1.bf16.msra.mxu0 0
      %312 = vmatprep.subr.bf16.mxu0 0
      %313 = vmatpush1.bf16.msra.mxu0 0
      %314 = vmatprep.subr.bf16.mxu0 0
      %315 = vmatpush1.bf16.msra.mxu0 %v294
      %316 = vmatprep.subr.bf16.mxu0 0
      %317 = vmatpush2.bf16.msra.mxu0 0
      %318 = vmatprep.subr.bf16.mxu0 0
      %319 = vmatpush2.bf16.msra.mxu0 0
      %320 = vmatprep.subr.bf16.mxu0 0
      %321 = vmatpush2.bf16.msra.mxu0 0
      %322 = vmatprep.subr.bf16.mxu0 0
      %323 = vmatpush2.bf16.msra.mxu0 0
      %324 = vmatprep.subr.bf16.mxu0 0
      %325 = vmatpush2.bf16.msra.mxu0 0
      %326 = vmatprep.subr.bf16.mxu0 0
      %327 = vmatpush2.bf16.msra.mxu0 0
      %328 = vmatprep.subr.bf16.mxu0 0
      %329 = vmatpush2.bf16.msra.mxu0 0
      %330 = vmatprep.subr.bf16.mxu0 0
      %331 = vmatpush2.bf16.msra.mxu0 0
      %332 = vmatprep.mubr.bf16.mxu0 0
      %333 = vmatmul.mubr.bf16.gmra.mxu0 %v298
      %v334 = vpop.f32.mrf.mxu0
      %v335 = vadd.f32 0.0, %v334
      %v336 = vpop.f32.mrf.mxu0
      %v337 = vpop.f32.mrf.mxu0
      %v338 = vpop.f32.mrf.mxu0
      %339 = vdwg.mxu0
      %v342 = vunpack.c.l.b16 %v278
      %v343 = vunpack.c.l.b16 %v279
      %v344 = vpack.c.b16 %v343, %v342
      %v346 = vsel %vm296, %v277, 0
      %348 = vmatprep.subr.bf16.mxu0 0
      %349 = vmatpush1.bf16.msra.mxu0 0
      %350 = vmatprep.subr.bf16.mxu0 0
      %351 = vmatpush1.bf16.msra.mxu0 0
      %352 = vmatprep.subr.bf16.mxu0 0
      %353 = vmatpush1.bf16.msra.mxu0 0
      %354 = vmatprep.subr.bf16.mxu0 0
      %355 = vmatpush1.bf16.msra.mxu0 0
      %356 = vmatprep.subr.bf16.mxu0 0
      %357 = vmatpush1.bf16.msra.mxu0 0
      %358 = vmatprep.subr.bf16.mxu0 0
      %359 = vmatpush1.bf16.msra.mxu0 0
      %360 = vmatprep.subr.bf16.mxu0 0
      %361 = vmatpush1.bf16.msra.mxu0 0
      %362 = vmatprep.subr.bf16.mxu0 0
      %363 = vmatpush1.bf16.msra.mxu0 %v344
      %364 = vmatprep.subr.bf16.mxu0 0
      %365 = vmatpush2.bf16.msra.mxu0 0
      %366 = vmatprep.subr.bf16.mxu0 0
      %367 = vmatpush2.bf16.msra.mxu0 0
      %368 = vmatprep.subr.bf16.mxu0 0
      %369 = vmatpush2.bf16.msra.mxu0 0
      %370 = vmatprep.subr.bf16.mxu0 0
      %371 = vmatpush2.bf16.msra.mxu0 0
      %372 = vmatprep.subr.bf16.mxu0 0
      %373 = vmatpush2.bf16.msra.mxu0 0
      %374 = vmatprep.subr.bf16.mxu0 0
      %375 = vmatpush2.bf16.msra.mxu0 0
      %376 = vmatprep.subr.bf16.mxu0 0
      %377 = vmatpush2.bf16.msra.mxu0 0
      %378 = vmatprep.subr.bf16.mxu0 0
      %379 = vmatpush2.bf16.msra.mxu0 0
      %380 = vmatprep.mubr.bf16.mxu0 0
      %381 = vmatmul.mubr.bf16.gmra.mxu0 %v346
      %v382 = vpop.f32.mrf.mxu0
      %v383 = vadd.f32 %v335, %v382
      %v384 = vpop.f32.mrf.mxu0
      %v385 = vpop.f32.mrf.mxu0
      %v386 = vpop.f32.mrf.mxu0
      %387 = vdwg.mxu0
      %s388 = scalar_lea.vmem %s1, 16
      %v389 = vld [vmem:[%s388] sm:$0xf]
      %v390 = vld [vmem:[%s388 + $0x4] sm:$0xf]
      %v392 = vrot.slane %v277, 1
      %v395 = vunpack.c.l.b16 %v389
      %v396 = vunpack.c.l.b16 %v390
      %v397 = vpack.c.b16 %v396, %v395
      %v400 = vsel %vm296, %v392, 0
      %402 = vmatprep.subr.bf16.mxu0 0
      %403 = vmatpush1.bf16.msra.mxu0 0
      %404 = vmatprep.subr.bf16.mxu0 0
      %405 = vmatpush1.bf16.msra.mxu0 0
      %406 = vmatprep.subr.bf16.mxu0 0
      %407 = vmatpush1.bf16.msra.mxu0 0
      %408 = vmatprep.subr.bf16.mxu0 0
      %409 = vmatpush1.bf16.msra.mxu0 0
      %410 = vmatprep.subr.bf16.mxu0 0
      %411 = vmatpush1.bf16.msra.mxu0 0
      %412 = vmatprep.subr.bf16.mxu0 0
      %413 = vmatpush1.bf16.msra.mxu0 0
      %414 = vmatprep.subr.bf16.mxu0 0
      %415 = vmatpush1.bf16.msra.mxu0 0
      %416 = vmatprep.subr.bf16.mxu0 0
      %417 = vmatpush1.bf16.msra.mxu0 %v397
      %418 = vmatprep.subr.bf16.mxu0 0
      %419 = vmatpush2.bf16.msra.mxu0 0
      %420 = vmatprep.subr.bf16.mxu0 0
      %421 = vmatpush2.bf16.msra.mxu0 0
      %422 = vmatprep.subr.bf16.mxu0 0
      %423 = vmatpush2.bf16.msra.mxu0 0
      %424 = vmatprep.subr.bf16.mxu0 0
      %425 = vmatpush2.bf16.msra.mxu0 0
      %426 = vmatprep.subr.bf16.mxu0 0
      %427 = vmatpush2.bf16.msra.mxu0 0
      %428 = vmatprep.subr.bf16.mxu0 0
      %429 = vmatpush2.bf16.msra.mxu0 0
      %430 = vmatprep.subr.bf16.mxu0 0
      %431 = vmatpush2.bf16.msra.mxu0 0
      %432 = vmatprep.subr.bf16.mxu0 0
      %433 = vmatpush2.bf16.msra.mxu0 0
      %434 = vmatprep.mubr.bf16.mxu0 0
      %435 = vmatmul.mubr.bf16.gmra.mxu0 %v400
      %v436 = vpop.f32.mrf.mxu0
      %v437 = vadd.f32 0.0, %v436
      %v438 = vpop.f32.mrf.mxu0
      %v439 = vpop.f32.mrf.mxu0
      %v440 = vpop.f32.mrf.mxu0
      %441 = vdwg.mxu0
      %v442 = vadd.f32 %v383, %v437
      %v443 = vld [vmem:[%s2] sm:$0x1]
      %v445 = vlaneseq
      %v446 = vshrl.u32 %v445, 7
      %v447 = vsub.s32 0, %v446
      %v448 = vrot.slane %v443, %v447
      %v450 = vadd.f32 %v442, %v448
      %vm451 = vcmask 125952
      %452 = vst.msk [vmem:[#allocation2] sm:$0xf] %vm451, 0.0
      %vm453 = vcmask 123904
      %454 = vst.msk [vmem:[#allocation2 + $0x1] sm:$0x3] %vm453, %v450
      %v455 = vld [vmem:[#allocation2] sm:$0xf]
      %v456 = vpack.c.bf16 %v455, %v455
      %v457 = vld [vmem:[%s3] sm:$0xf]
      %v458 = vld [vmem:[%s3 + $0x4] sm:$0xf]
      %s459 = scalar_lea.vmem %s3, 8
      %v460 = vld [vmem:[%s459] sm:$0xf]
      %v461 = vld [vmem:[%s459 + $0x4] sm:$0xf]
      %v463 = vshrl.u32 %v456, 16
      %v465 = vshll.u32 %v456, 16
      %v467 = vrot.slane %v465, 1
      %v468 = vor.u32 %v463, %v467
      %v471 = vunpack.c.l.b16 %v460
      %v472 = vunpack.c.l.b16 %v461
      %v473 = vpack.c.b16 %v472, %v471
      %v476 = vsel %vm296, %v468, 0
      %478 = vmatprep.subr.bf16.mxu0 0
      %479 = vmatpush1.bf16.msra.mxu0 0
      %480 = vmatprep.subr.bf16.mxu0 0
      %481 = vmatpush1.bf16.msra.mxu0 0
      %482 = vmatprep.subr.bf16.mxu0 0
      %483 = vmatpush1.bf16.msra.mxu0 0
      %484 = vmatprep.subr.bf16.mxu0 0
      %485 = vmatpush1.bf16.msra.mxu0 0
      %486 = vmatprep.subr.bf16.mxu0 0
      %487 = vmatpush1.bf16.msra.mxu0 0
      %488 = vmatprep.subr.bf16.mxu0 0
      %489 = vmatpush1.bf16.msra.mxu0 0
      %490 = vmatprep.subr.bf16.mxu0 0
      %491 = vmatpush1.bf16.msra.mxu0 0
      %492 = vmatprep.subr.bf16.mxu0 0
      %493 = vmatpush1.bf16.msra.mxu0 %v473
      %494 = vmatprep.subr.bf16.mxu0 0
      %495 = vmatpush2.bf16.msra.mxu0 0
      %496 = vmatprep.subr.bf16.mxu0 0
      %497 = vmatpush2.bf16.msra.mxu0 0
      %498 = vmatprep.subr.bf16.mxu0 0
      %499 = vmatpush2.bf16.msra.mxu0 0
      %500 = vmatprep.subr.bf16.mxu0 0
      %501 = vmatpush2.bf16.msra.mxu0 0
      %502 = vmatprep.subr.bf16.mxu0 0
      %503 = vmatpush2.bf16.msra.mxu0 0
      %504 = vmatprep.subr.bf16.mxu0 0
      %505 = vmatpush2.bf16.msra.mxu0 0
      %506 = vmatprep.subr.bf16.mxu0 0
      %507 = vmatpush2.bf16.msra.mxu0 0
      %508 = vmatprep.subr.bf16.mxu0 0
      %509 = vmatpush2.bf16.msra.mxu0 0
      %510 = vmatprep.mubr.bf16.mxu0 0
      %511 = vmatmul.mubr.bf16.gmra.mxu0 %v476
      %v512 = vpop.f32.mrf.mxu0
      %v513 = vadd.f32 0.0, %v512
      %v514 = vpop.f32.mrf.mxu0
      %v515 = vpop.f32.mrf.mxu0
      %v516 = vpop.f32.mrf.mxu0
      %517 = vdwg.mxu0
      %v520 = vunpack.c.l.b16 %v457
      %v521 = vunpack.c.l.b16 %v458
      %v522 = vpack.c.b16 %v521, %v520
      %v524 = vsel %vm296, %v456, 0
      %526 = vmatprep.subr.bf16.mxu0 0
      %527 = vmatpush1.bf16.msra.mxu0 0
      %528 = vmatprep.subr.bf16.mxu0 0
      %529 = vmatpush1.bf16.msra.mxu0 0
      %530 = vmatprep.subr.bf16.mxu0 0
      %531 = vmatpush1.bf16.msra.mxu0 0
      %532 = vmatprep.subr.bf16.mxu0 0
      %533 = vmatpush1.bf16.msra.mxu0 0
      %534 = vmatprep.subr.bf16.mxu0 0
      %535 = vmatpush1.bf16.msra.mxu0 0
      %536 = vmatprep.subr.bf16.mxu0 0
      %537 = vmatpush1.bf16.msra.mxu0 0
      %538 = vmatprep.subr.bf16.mxu0 0
      %539 = vmatpush1.bf16.msra.mxu0 0
      %540 = vmatprep.subr.bf16.mxu0 0
      %541 = vmatpush1.bf16.msra.mxu0 %v522
      %542 = vmatprep.subr.bf16.mxu0 0
      %543 = vmatpush2.bf16.msra.mxu0 0
      %544 = vmatprep.subr.bf16.mxu0 0
      %545 = vmatpush2.bf16.msra.mxu0 0
      %546 = vmatprep.subr.bf16.mxu0 0
      %547 = vmatpush2.bf16.msra.mxu0 0
      %548 = vmatprep.subr.bf16.mxu0 0
      %549 = vmatpush2.bf16.msra.mxu0 0
      %550 = vmatprep.subr.bf16.mxu0 0
      %551 = vmatpush2.bf16.msra.mxu0 0
      %552 = vmatprep.subr.bf16.mxu0 0
      %553 = vmatpush2.bf16.msra.mxu0 0
      %554 = vmatprep.subr.bf16.mxu0 0
      %555 = vmatpush2.bf16.msra.mxu0 0
      %556 = vmatprep.subr.bf16.mxu0 0
      %557 = vmatpush2.bf16.msra.mxu0 0
      %558 = vmatprep.mubr.bf16.mxu0 0
      %559 = vmatmul.mubr.bf16.gmra.mxu0 %v524
      %v560 = vpop.f32.mrf.mxu0
      %v561 = vadd.f32 %v513, %v560
      %v562 = vpop.f32.mrf.mxu0
      %v563 = vpop.f32.mrf.mxu0
      %v564 = vpop.f32.mrf.mxu0
      %565 = vdwg.mxu0
      %s566 = scalar_lea.vmem %s3, 16
      %v567 = vld [vmem:[%s566] sm:$0xf]
      %v568 = vld [vmem:[%s566 + $0x4] sm:$0xf]
      %v570 = vrot.slane %v456, 1
      %v573 = vunpack.c.l.b16 %v567
      %v574 = vunpack.c.l.b16 %v568
      %v575 = vpack.c.b16 %v574, %v573
      %v578 = vsel %vm296, %v570, 0
      %580 = vmatprep.subr.bf16.mxu0 0
      %581 = vmatpush1.bf16.msra.mxu0 0
      %582 = vmatprep.subr.bf16.mxu0 0
      %583 = vmatpush1.bf16.msra.mxu0 0
      %584 = vmatprep.subr.bf16.mxu0 0
      %585 = vmatpush1.bf16.msra.mxu0 0
      %586 = vmatprep.subr.bf16.mxu0 0
      %587 = vmatpush1.bf16.msra.mxu0 0
      %588 = vmatprep.subr.bf16.mxu0 0
      %589 = vmatpush1.bf16.msra.mxu0 0
      %590 = vmatprep.subr.bf16.mxu0 0
      %591 = vmatpush1.bf16.msra.mxu0 0
      %592 = vmatprep.subr.bf16.mxu0 0
      %593 = vmatpush1.bf16.msra.mxu0 0
      %594 = vmatprep.subr.bf16.mxu0 0
      %595 = vmatpush1.bf16.msra.mxu0 %v575
      %596 = vmatprep.subr.bf16.mxu0 0
      %597 = vmatpush2.bf16.msra.mxu0 0
      %598 = vmatprep.subr.bf16.mxu0 0
      %599 = vmatpush2.bf16.msra.mxu0 0
      %600 = vmatprep.subr.bf16.mxu0 0
      %601 = vmatpush2.bf16.msra.mxu0 0
      %602 = vmatprep.subr.bf16.mxu0 0
      %603 = vmatpush2.bf16.msra.mxu0 0
      %604 = vmatprep.subr.bf16.mxu0 0
      %605 = vmatpush2.bf16.msra.mxu0 0
      %606 = vmatprep.subr.bf16.mxu0 0
      %607 = vmatpush2.bf16.msra.mxu0 0
      %608 = vmatprep.subr.bf16.mxu0 0
      %609 = vmatpush2.bf16.msra.mxu0 0
      %610 = vmatprep.subr.bf16.mxu0 0
      %611 = vmatpush2.bf16.msra.mxu0 0
      %612 = vmatprep.mubr.bf16.mxu0 0
      %613 = vmatmul.mubr.bf16.gmra.mxu0 %v578
      %v614 = vpop.f32.mrf.mxu0
      %v615 = vadd.f32 0.0, %v614
      %v616 = vpop.f32.mrf.mxu0
      %v617 = vpop.f32.mrf.mxu0
      %v618 = vpop.f32.mrf.mxu0
      %619 = vdwg.mxu0
      %v620 = vadd.f32 %v561, %v615
      %v621 = vld [vmem:[%s4] sm:$0x1]
      %v623 = vlaneseq
      %v624 = vshrl.u32 %v623, 7
      %v625 = vsub.s32 0, %v624
      %v626 = vrot.slane %v621, %v625
      %v628 = vadd.f32 %v620, %v626
      %vm629 = vcmp.ge.f32.partialorder %v628, 0.0
      %v630 = vmul.f32 %v628, 0.01
      %v631 = vsel %vm629, %v628, %v630
      %vm632 = vcmask 60416
      %633 = vst.msk [vmem:[#allocation3] sm:$0xf] %vm632, 0.0
      %vm634 = vcmask 58368
      %635 = vst.msk [vmem:[#allocation3 + $0x1] sm:$0x3] %vm634, %v631
      %v636 = vld [vmem:[#allocation3] sm:$0xf]
      %v637 = vpack.c.bf16 %v636, %v636
      %v638 = vld [vmem:[%s5] sm:$0xf]
      %s639 = scalar_lea.vmem %s5, 4
      %v640 = vld [vmem:[%s639] sm:$0xf]
      %v642 = vshrl.u32 %v637, 16
      %v644 = vshll.u32 %v637, 16
      %v646 = vrot.slane %v644, 1
      %v647 = vor.u32 %v642, %v646
      %vm648 = vcmask 64512
      %v650 = vsel %vm648, %v647, 0
      %vm652 = vcmask 1043456
      %v654 = vsel %vm652, %v640, 0
      %656 = vmatprep.subr.bf16.mxu0 0
      %657 = vmatpush1.bf16.msra.mxu0 0
      %658 = vmatprep.subr.bf16.mxu0 0
      %659 = vmatpush1.bf16.msra.mxu0 0
      %660 = vmatprep.subr.bf16.mxu0 0
      %661 = vmatpush1.bf16.msra.mxu0 0
      %662 = vmatprep.subr.bf16.mxu0 0
      %663 = vmatpush1.bf16.msra.mxu0 0
      %664 = vmatprep.subr.bf16.mxu0 0
      %665 = vmatpush1.bf16.msra.mxu0 0
      %666 = vmatprep.subr.bf16.mxu0 0
      %667 = vmatpush1.bf16.msra.mxu0 0
      %668 = vmatprep.subr.bf16.mxu0 0
      %669 = vmatpush1.bf16.msra.mxu0 0
      %670 = vmatprep.subr.bf16.mxu0 0
      %671 = vmatpush1.bf16.msra.mxu0 %v654
      %672 = vmatprep.subr.bf16.mxu0 0
      %673 = vmatpush2.bf16.msra.mxu0 0
      %674 = vmatprep.subr.bf16.mxu0 0
      %675 = vmatpush2.bf16.msra.mxu0 0
      %676 = vmatprep.subr.bf16.mxu0 0
      %677 = vmatpush2.bf16.msra.mxu0 0
      %678 = vmatprep.subr.bf16.mxu0 0
      %679 = vmatpush2.bf16.msra.mxu0 0
      %680 = vmatprep.subr.bf16.mxu0 0
      %681 = vmatpush2.bf16.msra.mxu0 0
      %682 = vmatprep.subr.bf16.mxu0 0
      %683 = vmatpush2.bf16.msra.mxu0 0
      %684 = vmatprep.subr.bf16.mxu0 0
      %685 = vmatpush2.bf16.msra.mxu0 0
      %686 = vmatprep.subr.bf16.mxu0 0
      %687 = vmatpush2.bf16.msra.mxu0 0
      %688 = vmatprep.mubr.bf16.mxu0 0
      %689 = vmatmul.mubr.bf16.gmra.mxu0 %v650
      %v690 = vpop.f32.mrf.mxu0
      %v691 = vadd.f32 0.0, %v690
      %v692 = vpop.f32.mrf.mxu0
      %v693 = vpop.f32.mrf.mxu0
      %v694 = vpop.f32.mrf.mxu0
      %695 = vdwg.mxu0
      %v696 = vsel %vm648, %v637, 0
      %v699 = vsel %vm652, %v638, 0
      %701 = vmatprep.subr.bf16.mxu0 0
      %702 = vmatpush1.bf16.msra.mxu0 0
      %703 = vmatprep.subr.bf16.mxu0 0
      %704 = vmatpush1.bf16.msra.mxu0 0
      %705 = vmatprep.subr.bf16.mxu0 0
      %706 = vmatpush1.bf16.msra.mxu0 0
      %707 = vmatprep.subr.bf16.mxu0 0
      %708 = vmatpush1.bf16.msra.mxu0 0
      %709 = vmatprep.subr.bf16.mxu0 0
      %710 = vmatpush1.bf16.msra.mxu0 0
      %711 = vmatprep.subr.bf16.mxu0 0
      %712 = vmatpush1.bf16.msra.mxu0 0
      %713 = vmatprep.subr.bf16.mxu0 0
      %714 = vmatpush1.bf16.msra.mxu0 0
      %715 = vmatprep.subr.bf16.mxu0 0
      %716 = vmatpush1.bf16.msra.mxu0 %v699
      %717 = vmatprep.subr.bf16.mxu0 0
      %718 = vmatpush2.bf16.msra.mxu0 0
      %719 = vmatprep.subr.bf16.mxu0 0
      %720 = vmatpush2.bf16.msra.mxu0 0
      %721 = vmatprep.subr.bf16.mxu0 0
      %722 = vmatpush2.bf16.msra.mxu0 0
      %723 = vmatprep.subr.bf16.mxu0 0
      %724 = vmatpush2.bf16.msra.mxu0 0
      %725 = vmatprep.subr.bf16.mxu0 0
      %726 = vmatpush2.bf16.msra.mxu0 0
      %727 = vmatprep.subr.bf16.mxu0 0
      %728 = vmatpush2.bf16.msra.mxu0 0
      %729 = vmatprep.subr.bf16.mxu0 0
      %730 = vmatpush2.bf16.msra.mxu0 0
      %731 = vmatprep.subr.bf16.mxu0 0
      %732 = vmatpush2.bf16.msra.mxu0 0
      %733 = vmatprep.mubr.bf16.mxu0 0
      %734 = vmatmul.mubr.bf16.gmra.mxu0 %v696
      %v735 = vpop.f32.mrf.mxu0
      %v736 = vadd.f32 %v691, %v735
      %v737 = vpop.f32.mrf.mxu0
      %v738 = vpop.f32.mrf.mxu0
      %v739 = vpop.f32.mrf.mxu0
      %740 = vdwg.mxu0
      %s741 = scalar_lea.vmem %s5, 8
      %v742 = vld [vmem:[%s741] sm:$0xf]
      %v744 = vrot.slane %v637, 1
      %v746 = vsel %vm648, %v744, 0
      %v749 = vsel %vm652, %v742, 0
      %751 = vmatprep.subr.bf16.mxu0 0
      %752 = vmatpush1.bf16.msra.mxu0 0
      %753 = vmatprep.subr.bf16.mxu0 0
      %754 = vmatpush1.bf16.msra.mxu0 0
      %755 = vmatprep.subr.bf16.mxu0 0
      %756 = vmatpush1.bf16.msra.mxu0 0
      %757 = vmatprep.subr.bf16.mxu0 0
      %758 = vmatpush1.bf16.msra.mxu0 0
      %759 = vmatprep.subr.bf16.mxu0 0
      %760 = vmatpush1.bf16.msra.mxu0 0
      %761 = vmatprep.subr.bf16.mxu0 0
      %762 = vmatpush1.bf16.msra.mxu0 0
      %763 = vmatprep.subr.bf16.mxu0 0
      %764 = vmatpush1.bf16.msra.mxu0 0
      %765 = vmatprep.subr.bf16.mxu0 0
      %766 = vmatpush1.bf16.msra.mxu0 %v749
      %767 = vmatprep.subr.bf16.mxu0 0
      %768 = vmatpush2.bf16.msra.mxu0 0
      %769 = vmatprep.subr.bf16.mxu0 0
      %770 = vmatpush2.bf16.msra.mxu0 0
      %771 = vmatprep.subr.bf16.mxu0 0
      %772 = vmatpush2.bf16.msra.mxu0 0
      %773 = vmatprep.subr.bf16.mxu0 0
      %774 = vmatpush2.bf16.msra.mxu0 0
      %775 = vmatprep.subr.bf16.mxu0 0
      %776 = vmatpush2.bf16.msra.mxu0 0
      %777 = vmatprep.subr.bf16.mxu0 0
      %778 = vmatpush2.bf16.msra.mxu0 0
      %779 = vmatprep.subr.bf16.mxu0 0
      %780 = vmatpush2.bf16.msra.mxu0 0
      %781 = vmatprep.subr.bf16.mxu0 0
      %782 = vmatpush2.bf16.msra.mxu0 0
      %783 = vmatprep.mubr.bf16.mxu0 0
      %784 = vmatmul.mubr.bf16.gmra.mxu0 %v746
      %v785 = vpop.f32.mrf.mxu0
      %v786 = vadd.f32 0.0, %v785
      %v787 = vpop.f32.mrf.mxu0
      %v788 = vpop.f32.mrf.mxu0
      %v789 = vpop.f32.mrf.mxu0
      %790 = vdwg.mxu0
      %v791 = vadd.f32 %v736, %v786
      %v792 = vld [vmem:[%s6] sm:$0x1]
      %v794 = vlaneseq
      %v795 = vshrl.u32 %v794, 7
      %v796 = vsub.s32 0, %v795
      %v797 = vrot.slane %v792, %v796
      %v799 = vadd.f32 %v791, %v797
      %v800 = vsub.f32 0.0, %v799
      %v801 = vmul.f32 %v800, 1.442695
      %v802 = vpow.pop %v801
      %v803 = vadd.f32 %v802, 1.0
      %v804 = vrcp.pop %v803
      %v805 = vmul.f32 %v804, %v450
      %806 = vst.msk [vmem:[%s273] sm:$0x3] %vm453, %v805
      %p807 = scmp.lt.s32.totalorder %s18, 1
      %s808 = scalar_select %p807, %s18, 1
      %s809 = smul.addr %s808, 2
      %s810 = scalar_lea.vmem %s7, %s809
      // Predicated region
      $region49: #{micm_forward.6} parent=47 // pred_check
        %p811 = pneg %p188
      $region50: #{micm_forward.6} parent=47 // pred_check_branch
        %813 = sbr.rel (%p811) target = $region52
      $region51: #{micm_forward.6} parent=47 // pred_region
        _
      $region52: #{micm_forward.6} parent=47 // pred_fallthru
        _
    $region48: #{micm_forward.6} parent=5 // pred_fallthru
      _
    %p814 = scmp.le.s32.totalorder 2, %s13
    // Predicated region
    $region53: #{micm_forward.6} parent=5 // pred_check
      %p815 = pneg %p814
    $region54: #{micm_forward.6} parent=5 // pred_check_branch
      %817 = sbr.rel (%p815) target = $region56
    $region55: #{micm_forward.6} parent=5 // pred_region
      %s818 = ssub.s32 %s13, 2
      // Predicated region
      $region57: #{micm_forward.6} parent=55 // pred_check
        %p819 = pneg %p194
      $region58: #{micm_forward.6} parent=55 // pred_check_branch
        %821 = sbr.rel (%p819) target = $region60
      $region59: #{micm_forward.6} parent=55 // pred_region
        %p822 = scmp.lt.s32.totalorder %s19, 1
        %s823 = scalar_select %p822, %s19, 1
        %s824 = smul.addr %s823, 2
        %s825 = scalar_lea.vmem %s7, %s824
      $region60: #{micm_forward.6} parent=55 // pred_fallthru
        _
    $region56: #{micm_forward.6} parent=5 // pred_fallthru
      _
  $region6: #{micm_forward.6} parent=0 // loop_footer
    %s17 = sadd.s32 1, %s13
  $region7: #{micm_forward.6} parent=0 // loop_footer_branch
    %12 = sbr.rel target = $region3
  $region8: #{micm_forward.6} parent=0 // loop_exit
    _

// kernel: micm_forward.7
$region0: #{micm_forward.7}
  #allocation0 [shape = 'u32[]', space=smem, size = 0x4, offset = 0x4, fixed_abs, tag = 'smem constant byte address 0x4 - core index']
  #allocation1 [shape = 'u32[144,128]{1,0:T(1,128)}', space=vmem, size = 0x12000, scoped, tag = 'internal scratch']
  #allocation2 [shape = 'f32[6,32]{1,0:T(8,128)}', space=vmem, size = 0x1000, scoped, tag = 'scratch operand']
  #allocation3 [shape = 'f32[6,16]{1,0:T(8,128)}', space=vmem, size = 0x1000, scoped, tag = 'scratch operand']
  %s0 = inlined_call_operand.vmem [shape: bf16[2,6,32], index: 0, kind: input, shape index: {}]
  %s1 = inlined_call_operand.vmem [shape: bf16[3,32,32], index: 1, kind: input, shape index: {}]
  %s2 = inlined_call_operand.vmem [shape: f32[1,32], index: 2, kind: input, shape index: {}]
  %s3 = inlined_call_operand.vmem [shape: bf16[3,32,16], index: 3, kind: input, shape index: {}]
  %s4 = inlined_call_operand.vmem [shape: f32[1,16], index: 4, kind: input, shape index: {}]
  %s5 = inlined_call_operand.vmem [shape: bf16[3,16,32], index: 5, kind: input, shape index: {}]
  %s6 = inlined_call_operand.vmem [shape: f32[1,32], index: 6, kind: input, shape index: {}]
  %s7 = inlined_call_operand.vmem [shape: f32[2,4,32], index: 7, kind: output, shape index: {}]
  %s8 = sld [smem:[#allocation0]]
  $region61: #{micm_forward.7} parent=0
    _
  %s10 = ssub.s32 1, %s8
  %s11 = scalar_select 0, %s10, %s8
  loop: start=0, step=1, limit=4
  $region2: #{micm_forward.7} parent=0 // loop_pre_header
    _
  $region3: #{micm_forward.7} parent=0 // loop_header
    %s13 = sphi 0, %s17
    %p14 = scmp.ge.s32.totalorder %s13, 4
    %s23 = sphi 0, %s25
    %s26 = sphi 0, %s23
    %s27 = sphi 0, %s26
    %s43 = sphi 0, %s27
    %s47 = sphi 0, %s47
    %s49 = sphi 0, %s47
    %s50 = sphi 0, %s49
    %s64 = sphi 0, %s50
    %s68 = sphi 0, %s68
    %s70 = sphi 0, %s68
    %s71 = sphi 0, %s70
    %s85 = sphi 0, %s71
    %s89 = sphi 0, %s89
    %s91 = sphi 0, %s89
    %s92 = sphi 0, %s91
    %s106 = sphi 0, %s92
    %s110 = sphi 0, %s110
    %s112 = sphi 0, %s110
    %s113 = sphi 0, %s112
    %s127 = sphi 0, %s113
    %s131 = sphi 0, %s131
    %s133 = sphi 0, %s131
    %s134 = sphi 0, %s133
    %s148 = sphi 0, %s134
    %s152 = sphi 0, %s152
    %s154 = sphi 0, %s152
    %s155 = sphi 0, %s154
    %s169 = sphi 0, %s155
    %s175 = sphi 0, %s177
    %s178 = sphi 0, %s175
    %s179 = sphi 0, %s178
    %s195 = sphi 0, %s179
  $region4: #{micm_forward.7} parent=0 // loop_header_branch
    %16 = sbr.rel (%p14) target = $region8
  $region5: #{micm_forward.7} parent=0 // loop_body
    %s18 = ssub.s32 %s13, 1
    %s19 = ssub.s32 %s13, 2
    %s20 = sadd.s32 %s13, 1
    %s21 = ssub.s32 %s13, %s20
    %p22 = scmp.eq.s32.totalorder %s21, 0
    %s24 = sadd.s32 %s23, 1
    %s25 = scalar_select %p22, %s23, %s24
    %p28 = pneg %p22
    %p29 = scmp.eq.s32.totalorder %s13, 1
    %p30 = por %p28, %p29
    %p31 = scmp.ne.s32.totalorder %s23, %s26
    %p32 = scmp.eq.s32.totalorder %s13, 0
    %p33 = por %p31, %p32
    %p34 = scmp.ne.s32.totalorder %s23, %s26
    %p35 = scmp.eq.s32.totalorder %s18, 1
    %p36 = por %p34, %p35
    %p37 = scmp.ne.s32.totalorder %s26, %s27
    %p38 = scmp.eq.s32.totalorder %s18, 0
    %p39 = por %p37, %p38
    %p40 = scmp.ne.s32.totalorder %s26, %s27
    %p41 = scmp.eq.s32.totalorder %s19, 1
    %p42 = por %p40, %p41
    %p44 = scmp.ne.s32.totalorder %s27, %s43
    %p45 = scmp.eq.s32.totalorder %s19, 0
    %p46 = por %p44, %p45
    %s48 = sadd.s32 %s47, 1
    %p51 = scmp.eq.s32.totalorder %s13, 1
    %p52 = scmp.ne.s32.totalorder %s47, %s49
    %p53 = scmp.eq.s32.totalorder %s13, 0
    %p54 = por %p52, %p53
    %p55 = scmp.ne.s32.totalorder %s47, %s49
    %p56 = scmp.eq.s32.totalorder %s18, 1
    %p57 = por %p55, %p56
    %p58 = scmp.ne.s32.totalorder %s49, %s50
    %p59 = scmp.eq.s32.totalorder %s18, 0
    %p60 = por %p58, %p59
    %p61 = scmp.ne.s32.totalorder %s49, %s50
    %p62 = scmp.eq.s32.totalorder %s19, 1
    %p63 = por %p61, %p62
    %p65 = scmp.ne.s32.totalorder %s50, %s64
    %p66 = scmp.eq.s32.totalorder %s19, 0
    %p67 = por %p65, %p66
    %s69 = sadd.s32 %s68, 1
    %p72 = scmp.eq.s32.totalorder %s13, 1
    %p73 = scmp.ne.s32.totalorder %s68, %s70
    %p74 = scmp.eq.s32.totalorder %s13, 0
    %p75 = por %p73, %p74
    %p76 = scmp.ne.s32.totalorder %s68, %s70
    %p77 = scmp.eq.s32.totalorder %s18, 1
    %p78 = por %p76, %p77
    %p79 = scmp.ne.s32.totalorder %s70, %s71
    %p80 = scmp.eq.s32.totalorder %s18, 0
    %p81 = por %p79, %p80
    %p82 = scmp.ne.s32.totalorder %s70, %s71
    %p83 = scmp.eq.s32.totalorder %s19, 1
    %p84 = por %p82, %p83
    %p86 = scmp.ne.s32.totalorder %s71, %s85
    %p87 = scmp.eq.s32.totalorder %s19, 0
    %p88 = por %p86, %p87
    %s90 = sadd.s32 %s89, 1
    %p93 = scmp.eq.s32.totalorder %s13, 1
    %p94 = scmp.ne.s32.totalorder %s89, %s91
    %p95 = scmp.eq.s32.totalorder %s13, 0
    %p96 = por %p94, %p95
    %p97 = scmp.ne.s32.totalorder %s89, %s91
    %p98 = scmp.eq.s32.totalorder %s18, 1
    %p99 = por %p97, %p98
    %p100 = scmp.ne.s32.totalorder %s91, %s92
    %p101 = scmp.eq.s32.totalorder %s18, 0
    %p102 = por %p100, %p101
    %p103 = scmp.ne.s32.totalorder %s91, %s92
    %p104 = scmp.eq.s32.totalorder %s19, 1
    %p105 = por %p103, %p104
    %p107 = scmp.ne.s32.totalorder %s92, %s106
    %p108 = scmp.eq.s32.totalorder %s19, 0
    %p109 = por %p107, %p108
    %s111 = sadd.s32 %s110, 1
    %p114 = scmp.eq.s32.totalorder %s13, 1
    %p115 = scmp.ne.s32.totalorder %s110, %s112
    %p116 = scmp.eq.s32.totalorder %s13, 0
    %p117 = por %p115, %p116
    %p118 = scmp.ne.s32.totalorder %s110, %s112
    %p119 = scmp.eq.s32.totalorder %s18, 1
    %p120 = por %p118, %p119
    %p121 = scmp.ne.s32.totalorder %s112, %s113
    %p122 = scmp.eq.s32.totalorder %s18, 0
    %p123 = por %p121, %p122
    %p124 = scmp.ne.s32.totalorder %s112, %s113
    %p125 = scmp.eq.s32.totalorder %s19, 1
    %p126 = por %p124, %p125
    %p128 = scmp.ne.s32.totalorder %s113, %s127
    %p129 = scmp.eq.s32.totalorder %s19, 0
    %p130 = por %p128, %p129
    %s132 = sadd.s32 %s131, 1
    %p135 = scmp.eq.s32.totalorder %s13, 1
    %p136 = scmp.ne.s32.totalorder %s131, %s133
    %p137 = scmp.eq.s32.totalorder %s13, 0
    %p138 = por %p136, %p137
    %p139 = scmp.ne.s32.totalorder %s131, %s133
    %p140 = scmp.eq.s32.totalorder %s18, 1
    %p141 = por %p139, %p140
    %p142 = scmp.ne.s32.totalorder %s133, %s134
    %p143 = scmp.eq.s32.totalorder %s18, 0
    %p144 = por %p142, %p143
    %p145 = scmp.ne.s32.totalorder %s133, %s134
    %p146 = scmp.eq.s32.totalorder %s19, 1
    %p147 = por %p145, %p146
    %p149 = scmp.ne.s32.totalorder %s134, %s148
    %p150 = scmp.eq.s32.totalorder %s19, 0
    %p151 = por %p149, %p150
    %s153 = sadd.s32 %s152, 1
    %p156 = scmp.eq.s32.totalorder %s13, 1
    %p157 = scmp.ne.s32.totalorder %s152, %s154
    %p158 = scmp.eq.s32.totalorder %s13, 0
    %p159 = por %p157, %p158
    %p160 = scmp.ne.s32.totalorder %s152, %s154
    %p161 = scmp.eq.s32.totalorder %s18, 1
    %p162 = por %p160, %p161
    %p163 = scmp.ne.s32.totalorder %s154, %s155
    %p164 = scmp.eq.s32.totalorder %s18, 0
    %p165 = por %p163, %p164
    %p166 = scmp.ne.s32.totalorder %s154, %s155
    %p167 = scmp.eq.s32.totalorder %s19, 1
    %p168 = por %p166, %p167
    %p170 = scmp.ne.s32.totalorder %s155, %s169
    %p171 = scmp.eq.s32.totalorder %s19, 0
    %p172 = por %p170, %p171
    %s173 = ssub.s32 %s13, %s20
    %p174 = scmp.eq.s32.totalorder %s173, 0
    %s176 = sadd.s32 %s175, 1
    %s177 = scalar_select %p174, %s175, %s176
    %p180 = pneg %p174
    %p181 = scmp.eq.s32.totalorder %s13, 1
    %p182 = por %p180, %p181
    %p183 = scmp.ne.s32.totalorder %s175, %s178
    %p184 = scmp.eq.s32.totalorder %s13, 0
    %p185 = por %p183, %p184
    %p186 = scmp.ne.s32.totalorder %s175, %s178
    %p187 = scmp.eq.s32.totalorder %s18, 1
    %p188 = por %p186, %p187
    %p189 = scmp.ne.s32.totalorder %s178, %s179
    %p190 = scmp.eq.s32.totalorder %s18, 0
    %p191 = por %p189, %p190
    %p192 = scmp.ne.s32.totalorder %s178, %s179
    %p193 = scmp.eq.s32.totalorder %s19, 1
    %p194 = por %p192, %p193
    %p196 = scmp.ne.s32.totalorder %s179, %s195
    %p197 = scmp.eq.s32.totalorder %s19, 0
    %p198 = por %p196, %p197
    %p199 = scmp.le.s32.totalorder 1, %s13
    %p200 = scmp.lt.s32.totalorder %s13, 3
    %p201 = pnand %p199, %p200
    %p202 = pneg %p201
    // Predicated region
    $region9: #{micm_forward.7} parent=5 // pred_check
      _
    $region10: #{micm_forward.7} parent=5 // pred_check_branch
      %204 = sbr.rel (%p201) target = $region12
    $region11: #{micm_forward.7} parent=5 // pred_region
      %s205 = ssub.s32 %s13, 1
      // Predicated region
      $region13: #{micm_forward.7} parent=11 // pred_check
        %p206 = pneg %p60
      $region14: #{micm_forward.7} parent=11 // pred_check_branch
        %208 = sbr.rel (%p206) target = $region16
      $region15: #{micm_forward.7} parent=11 // pred_region
        _
      $region16: #{micm_forward.7} parent=11 // pred_fallthru
        _
      // Predicated region
      $region17: #{micm_forward.7} parent=11 // pred_check
        %p209 = pneg %p81
      $region18: #{micm_forward.7} parent=11 // pred_check_branch
        %211 = sbr.rel (%p209) target = $region20
      $region19: #{micm_forward.7} parent=11 // pred_region
        _
      $region20: #{micm_forward.7} parent=11 // pred_fallthru
        _
      // Predicated region
      $region21: #{micm_forward.7} parent=11 // pred_check
        %p212 = pneg %p102
      $region22: #{micm_forward.7} parent=11 // pred_check_branch
        %214 = sbr.rel (%p212) target = $region24
      $region23: #{micm_forward.7} parent=11 // pred_region
        _
      $region24: #{micm_forward.7} parent=11 // pred_fallthru
        _
      // Predicated region
      $region25: #{micm_forward.7} parent=11 // pred_check
        %p215 = pneg %p123
      $region26: #{micm_forward.7} parent=11 // pred_check_branch
        %217 = sbr.rel (%p215) target = $region28
      $region27: #{micm_forward.7} parent=11 // pred_region
        _
      $region28: #{micm_forward.7} parent=11 // pred_fallthru
        _
      // Predicated region
      $region29: #{micm_forward.7} parent=11 // pred_check
        %p218 = pneg %p144
      $region30: #{micm_forward.7} parent=11 // pred_check_branch
        %220 = sbr.rel (%p218) target = $region32
      $region31: #{micm_forward.7} parent=11 // pred_region
        _
      $region32: #{micm_forward.7} parent=11 // pred_fallthru
        _
      // Predicated region
      $region33: #{micm_forward.7} parent=11 // pred_check
        %p221 = pneg %p165
      $region34: #{micm_forward.7} parent=11 // pred_check_branch
        %223 = sbr.rel (%p221) target = $region36
      $region35: #{micm_forward.7} parent=11 // pred_region
        _
      $region36: #{micm_forward.7} parent=11 // pred_fallthru
        _
    $region12: #{micm_forward.7} parent=5 // pred_fallthru
      _
    %p224 = scmp.lt.s32.totalorder %s13, 2
    // Predicated region
    $region37: #{micm_forward.7} parent=5 // pred_check
      %p225 = pneg %p224
    $region38: #{micm_forward.7} parent=5 // pred_check_branch
      %227 = sbr.rel (%p225) target = $region40
    $region39: #{micm_forward.7} parent=5 // pred_region
      // Predicated region
      $region41: #{micm_forward.7} parent=39 // pred_check
        %p228 = pneg %p33
      $region42: #{micm_forward.7} parent=39 // pred_check_branch
        %230 = sbr.rel (%p228) target = $region44
      $region43: #{micm_forward.7} parent=39 // pred_region
        %p231 = scmp.lt.s32.totalorder %s13, 1
        %s232 = scalar_select %p231, %s13, 1
        %s233 = smul.addr %s232, 4
        %s234 = scalar_lea.vmem %s0, %s233
      $region44: #{micm_forward.7} parent=39 // pred_fallthru
        _
    $region40: #{micm_forward.7} parent=5 // pred_fallthru
      _
    %p235 = scmp.le.s32.totalorder 1, %s13
    %p236 = scmp.lt.s32.totalorder %s13, 3
    %p237 = pnand %p235, %p236
    %p238 = pneg %p237
    // Predicated region
    $region45: #{micm_forward.7} parent=5 // pred_check
      _
    $region46: #{micm_forward.7} parent=5 // pred_check_branch
      %240 = sbr.rel (%p237) target = $region48
    $region47: #{micm_forward.7} parent=5 // pred_region
      %s241 = ssub.s32 %s13, 1
      %p242 = scmp.lt.s32.totalorder %s18, 1
      %s243 = scalar_select %p242, %s18, 1
      %s244 = smul.addr %s243, 4
      %s245 = scalar_lea.vmem %s0, %s244
      %p246 = pneg %p39
      %p247 = pneg %p36
      %p248 = pneg %p60
      %p249 = pneg %p57
      %p250 = pneg %p81
      %p251 = pneg %p78
      %p252 = pneg %p102
      %p253 = pneg %p99
      %p254 = pneg %p123
      %p255 = pneg %p120
      %p256 = pneg %p144
      %p257 = pneg %p141
      %p258 = pneg %p165
      %p259 = pneg %p162
      %p260 = pneg %p191
      %p261 = pneg %p188
      %p262 = scmp.lt.s32.totalorder %s18, 1
      %s263 = scalar_select %p262, %s18, 1
      %s264 = smul.addr %s263, 4
      %s265 = scalar_lea.vmem %s7, %s264
      %p266 = scmp.lt.s32.totalorder %s18, 1
      %s267 = scalar_select %p266, %s18, 1
      %s268 = smul.addr %s267, 4
      %s269 = scalar_lea.vmem %s0, %s268
      %p270 = scmp.lt.s32.totalorder %s18, 1
      %s271 = scalar_select %p270, %s18, 1
      %s272 = smul.addr %s271, 4
      %s273 = scalar_lea.vmem %s7, %s272
      %v275 = vld [vmem:[%s269] sm:$0x7]
      %v276 = vunpack.c.l.bf16 %v275
      %v277 = vpack.c.bf16 %v276, %v276
      %v278 = vld [vmem:[%s1] sm:$0xf]
      %v279 = vld [vmem:[%s1 + $0x4] sm:$0xf]
      %v280 = vld [vmem:[%s1 + $0x8] sm:$0xf]
      %v281 = vld [vmem:[%s1 + $0xc] sm:$0xf]
      %s282 = scalar_lea.vmem %s1, 16
      %v283 = vld [vmem:[%s282] sm:$0xf]
      %v284 = vld [vmem:[%s282 + $0x4] sm:$0xf]
      %v285 = vld [vmem:[%s282 + $0x8] sm:$0xf]
      %v286 = vld [vmem:[%s282 + $0xc] sm:$0xf]
      %v288 = vshrl.u32 %v277, 16
      %v290 = vshll.u32 %v277, 16
      %v292 = vrot.slane %v290, 1
      %v293 = vor.u32 %v288, %v292
      %v298 = vunpack.c.l.b16 %v283
      %v299 = vunpack.c.l.b16 %v284
      %v300 = vunpack.c.l.b16 %v285
      %v301 = vunpack.c.l.b16 %v286
      %v302 = vpack.c.b16 %v299, %v298
      %v303 = vpack.c.b16 %v301, %v300
      %vm306 = vcmask 261120
      %v308 = vsel %vm306, %v293, 0
      %310 = vmatprep.subr.bf16.mxu0 0
      %311 = vmatpush1.bf16.msra.mxu0 0
      %312 = vmatprep.subr.bf16.mxu0 0
      %313 = vmatpush1.bf16.msra.mxu0 0
      %314 = vmatprep.subr.bf16.mxu0 0
      %315 = vmatpush1.bf16.msra.mxu0 0
      %316 = vmatprep.subr.bf16.mxu0 0
      %317 = vmatpush1.bf16.msra.mxu0 0
      %318 = vmatprep.subr.bf16.mxu0 0
      %319 = vmatpush1.bf16.msra.mxu0 0
      %320 = vmatprep.subr.bf16.mxu0 0
      %321 = vmatpush1.bf16.msra.mxu0 0
      %322 = vmatprep.subr.bf16.mxu0 0
      %323 = vmatpush1.bf16.msra.mxu0 %v303
      %324 = vmatprep.subr.bf16.mxu0 0
      %325 = vmatpush1.bf16.msra.mxu0 %v302
      %326 = vmatprep.subr.bf16.mxu0 0
      %327 = vmatpush2.bf16.msra.mxu0 0
      %328 = vmatprep.subr.bf16.mxu0 0
      %329 = vmatpush2.bf16.msra.mxu0 0
      %330 = vmatprep.subr.bf16.mxu0 0
      %331 = vmatpush2.bf16.msra.mxu0 0
      %332 = vmatprep.subr.bf16.mxu0 0
      %333 = vmatpush2.bf16.msra.mxu0 0
      %334 = vmatprep.subr.bf16.mxu0 0
      %335 = vmatpush2.bf16.msra.mxu0 0
      %336 = vmatprep.subr.bf16.mxu0 0
      %337 = vmatpush2.bf16.msra.mxu0 0
      %338 = vmatprep.subr.bf16.mxu0 0
      %339 = vmatpush2.bf16.msra.mxu0 0
      %340 = vmatprep.subr.bf16.mxu0 0
      %341 = vmatpush2.bf16.msra.mxu0 0
      %342 = vmatprep.mubr.bf16.mxu0 0
      %343 = vmatmul.mubr.bf16.gmra.mxu0 %v308
      %v344 = vpop.f32.mrf.mxu0
      %v345 = vadd.f32 0.0, %v344
      %v346 = vpop.f32.mrf.mxu0
      %v347 = vpop.f32.mrf.mxu0
      %v348 = vpop.f32.mrf.mxu0
      %349 = vdwg.mxu0
      %v354 = vunpack.c.l.b16 %v278
      %v355 = vunpack.c.l.b16 %v279
      %v356 = vunpack.c.l.b16 %v280
      %v357 = vunpack.c.l.b16 %v281
      %v358 = vpack.c.b16 %v355, %v354
      %v359 = vpack.c.b16 %v357, %v356
      %v362 = vsel %vm306, %v277, 0
      %364 = vmatprep.subr.bf16.mxu0 0
      %365 = vmatpush1.bf16.msra.mxu0 0
      %366 = vmatprep.subr.bf16.mxu0 0
      %367 = vmatpush1.bf16.msra.mxu0 0
      %368 = vmatprep.subr.bf16.mxu0 0
      %369 = vmatpush1.bf16.msra.mxu0 0
      %370 = vmatprep.subr.bf16.mxu0 0
      %371 = vmatpush1.bf16.msra.mxu0 0
      %372 = vmatprep.subr.bf16.mxu0 0
      %373 = vmatpush1.bf16.msra.mxu0 0
      %374 = vmatprep.subr.bf16.mxu0 0
      %375 = vmatpush1.bf16.msra.mxu0 0
      %376 = vmatprep.subr.bf16.mxu0 0
      %377 = vmatpush1.bf16.msra.mxu0 %v359
      %378 = vmatprep.subr.bf16.mxu0 0
      %379 = vmatpush1.bf16.msra.mxu0 %v358
      %380 = vmatprep.subr.bf16.mxu0 0
      %381 = vmatpush2.bf16.msra.mxu0 0
      %382 = vmatprep.subr.bf16.mxu0 0
      %383 = vmatpush2.bf16.msra.mxu0 0
      %384 = vmatprep.subr.bf16.mxu0 0
      %385 = vmatpush2.bf16.msra.mxu0 0
      %386 = vmatprep.subr.bf16.mxu0 0
      %387 = vmatpush2.bf16.msra.mxu0 0
      %388 = vmatprep.subr.bf16.mxu0 0
      %389 = vmatpush2.bf16.msra.mxu0 0
      %390 = vmatprep.subr.bf16.mxu0 0
      %391 = vmatpush2.bf16.msra.mxu0 0
      %392 = vmatprep.subr.bf16.mxu0 0
      %393 = vmatpush2.bf16.msra.mxu0 0
      %394 = vmatprep.subr.bf16.mxu0 0
      %395 = vmatpush2.bf16.msra.mxu0 0
      %396 = vmatprep.mubr.bf16.mxu0 0
      %397 = vmatmul.mubr.bf16.gmra.mxu0 %v362
      %v398 = vpop.f32.mrf.mxu0
      %v399 = vadd.f32 %v345, %v398
      %v400 = vpop.f32.mrf.mxu0
      %v401 = vpop.f32.mrf.mxu0
      %v402 = vpop.f32.mrf.mxu0
      %403 = vdwg.mxu0
      %s404 = scalar_lea.vmem %s1, 32
      %v405 = vld [vmem:[%s404] sm:$0xf]
      %v406 = vld [vmem:[%s404 + $0x4] sm:$0xf]
      %v407 = vld [vmem:[%s404 + $0x8] sm:$0xf]
      %v408 = vld [vmem:[%s404 + $0xc] sm:$0xf]
      %v410 = vrot.slane %v277, 1
      %v415 = vunpack.c.l.b16 %v405
      %v416 = vunpack.c.l.b16 %v406
      %v417 = vunpack.c.l.b16 %v407
      %v418 = vunpack.c.l.b16 %v408
      %v419 = vpack.c.b16 %v416, %v415
      %v420 = vpack.c.b16 %v418, %v417
      %v424 = vsel %vm306, %v410, 0
      %426 = vmatprep.subr.bf16.mxu0 0
      %427 = vmatpush1.bf16.msra.mxu0 0
      %428 = vmatprep.subr.bf16.mxu0 0
      %429 = vmatpush1.bf16.msra.mxu0 0
      %430 = vmatprep.subr.bf16.mxu0 0
      %431 = vmatpush1.bf16.msra.mxu0 0
      %432 = vmatprep.subr.bf16.mxu0 0
      %433 = vmatpush1.bf16.msra.mxu0 0
      %434 = vmatprep.subr.bf16.mxu0 0
      %435 = vmatpush1.bf16.msra.mxu0 0
      %436 = vmatprep.subr.bf16.mxu0 0
      %437 = vmatpush1.bf16.msra.mxu0 0
      %438 = vmatprep.subr.bf16.mxu0 0
      %439 = vmatpush1.bf16.msra.mxu0 %v420
      %440 = vmatprep.subr.bf16.mxu0 0
      %441 = vmatpush1.bf16.msra.mxu0 %v419
      %442 = vmatprep.subr.bf16.mxu0 0
      %443 = vmatpush2.bf16.msra.mxu0 0
      %444 = vmatprep.subr.bf16.mxu0 0
      %445 = vmatpush2.bf16.msra.mxu0 0
      %446 = vmatprep.subr.bf16.mxu0 0
      %447 = vmatpush2.bf16.msra.mxu0 0
      %448 = vmatprep.subr.bf16.mxu0 0
      %449 = vmatpush2.bf16.msra.mxu0 0
      %450 = vmatprep.subr.bf16.mxu0 0
      %451 = vmatpush2.bf16.msra.mxu0 0
      %452 = vmatprep.subr.bf16.mxu0 0
      %453 = vmatpush2.bf16.msra.mxu0 0
      %454 = vmatprep.subr.bf16.mxu0 0
      %455 = vmatpush2.bf16.msra.mxu0 0
      %456 = vmatprep.subr.bf16.mxu0 0
      %457 = vmatpush2.bf16.msra.mxu0 0
      %458 = vmatprep.mubr.bf16.mxu0 0
      %459 = vmatmul.mubr.bf16.gmra.mxu0 %v424
      %v460 = vpop.f32.mrf.mxu0
      %v461 = vadd.f32 0.0, %v460
      %v462 = vpop.f32.mrf.mxu0
      %v463 = vpop.f32.mrf.mxu0
      %v464 = vpop.f32.mrf.mxu0
      %465 = vdwg.mxu0
      %v466 = vadd.f32 %v399, %v461
      %v467 = vld [vmem:[%s2] sm:$0x1]
      %v469 = vlaneseq
      %v470 = vshrl.u32 %v469, 7
      %v471 = vsub.s32 0, %v470
      %v472 = vrot.slane %v467, %v471
      %v474 = vadd.f32 %v466, %v472
      %vm475 = vcmask 259072
      %476 = vst.msk [vmem:[#allocation2] sm:$0x3f] %vm475, 0.0
      %vm477 = vcmask 257024
      %478 = vst.msk [vmem:[#allocation2 + $0x1] sm:$0xf] %vm477, %v474
      %v479 = vld [vmem:[#allocation2] sm:$0x3f]
      %v480 = vpack.c.bf16 %v479, %v479
      %v481 = vld [vmem:[%s3] sm:$0xf]
      %v482 = vld [vmem:[%s3 + $0x4] sm:$0xf]
      %v483 = vld [vmem:[%s3 + $0x8] sm:$0xf]
      %v484 = vld [vmem:[%s3 + $0xc] sm:$0xf]
      %s485 = scalar_lea.vmem %s3, 16
      %v486 = vld [vmem:[%s485] sm:$0xf]
      %v487 = vld [vmem:[%s485 + $0x4] sm:$0xf]
      %v488 = vld [vmem:[%s485 + $0x8] sm:$0xf]
      %v489 = vld [vmem:[%s485 + $0xc] sm:$0xf]
      %v491 = vshrl.u32 %v480, 16
      %v493 = vshll.u32 %v480, 16
      %v495 = vrot.slane %v493, 1
      %v496 = vor.u32 %v491, %v495
      %v501 = vunpack.c.l.b16 %v486
      %v502 = vunpack.c.l.b16 %v487
      %v503 = vunpack.c.l.b16 %v488
      %v504 = vunpack.c.l.b16 %v489
      %v505 = vpack.c.b16 %v502, %v501
      %v506 = vpack.c.b16 %v504, %v503
      %v510 = vsel %vm306, %v496, 0
      %512 = vmatprep.subr.bf16.mxu0 0
      %513 = vmatpush1.bf16.msra.mxu0 0
      %514 = vmatprep.subr.bf16.mxu0 0
      %515 = vmatpush1.bf16.msra.mxu0 0
      %516 = vmatprep.subr.bf16.mxu0 0
      %517 = vmatpush1.bf16.msra.mxu0 0
      %518 = vmatprep.subr.bf16.mxu0 0
      %519 = vmatpush1.bf16.msra.mxu0 0
      %520 = vmatprep.subr.bf16.mxu0 0
      %521 = vmatpush1.bf16.msra.mxu0 0
      %522 = vmatprep.subr.bf16.mxu0 0
      %523 = vmatpush1.bf16.msra.mxu0 0
      %524 = vmatprep.subr.bf16.mxu0 0
      %525 = vmatpush1.bf16.msra.mxu0 %v506
      %526 = vmatprep.subr.bf16.mxu0 0
      %527 = vmatpush1.bf16.msra.mxu0 %v505
      %528 = vmatprep.subr.bf16.mxu0 0
      %529 = vmatpush2.bf16.msra.mxu0 0
      %530 = vmatprep.subr.bf16.mxu0 0
      %531 = vmatpush2.bf16.msra.mxu0 0
      %532 = vmatprep.subr.bf16.mxu0 0
      %533 = vmatpush2.bf16.msra.mxu0 0
      %534 = vmatprep.subr.bf16.mxu0 0
      %535 = vmatpush2.bf16.msra.mxu0 0
      %536 = vmatprep.subr.bf16.mxu0 0
      %537 = vmatpush2.bf16.msra.mxu0 0
      %538 = vmatprep.subr.bf16.mxu0 0
      %539 = vmatpush2.bf16.msra.mxu0 0
      %540 = vmatprep.subr.bf16.mxu0 0
      %541 = vmatpush2.bf16.msra.mxu0 0
      %542 = vmatprep.subr.bf16.mxu0 0
      %543 = vmatpush2.bf16.msra.mxu0 0
      %544 = vmatprep.mubr.bf16.mxu0 0
      %545 = vmatmul.mubr.bf16.gmra.mxu0 %v510
      %v546 = vpop.f32.mrf.mxu0
      %v547 = vadd.f32 0.0, %v546
      %v548 = vpop.f32.mrf.mxu0
      %v549 = vpop.f32.mrf.mxu0
      %v550 = vpop.f32.mrf.mxu0
      %551 = vdwg.mxu0
      %v556 = vunpack.c.l.b16 %v481
      %v557 = vunpack.c.l.b16 %v482
      %v558 = vunpack.c.l.b16 %v483
      %v559 = vunpack.c.l.b16 %v484
      %v560 = vpack.c.b16 %v557, %v556
      %v561 = vpack.c.b16 %v559, %v558
      %v564 = vsel %vm306, %v480, 0
      %566 = vmatprep.subr.bf16.mxu0 0
      %567 = vmatpush1.bf16.msra.mxu0 0
      %568 = vmatprep.subr.bf16.mxu0 0
      %569 = vmatpush1.bf16.msra.mxu0 0
      %570 = vmatprep.subr.bf16.mxu0 0
      %571 = vmatpush1.bf16.msra.mxu0 0
      %572 = vmatprep.subr.bf16.mxu0 0
      %573 = vmatpush1.bf16.msra.mxu0 0
      %574 = vmatprep.subr.bf16.mxu0 0
      %575 = vmatpush1.bf16.msra.mxu0 0
      %576 = vmatprep.subr.bf16.mxu0 0
      %577 = vmatpush1.bf16.msra.mxu0 0
      %578 = vmatprep.subr.bf16.mxu0 0
      %579 = vmatpush1.bf16.msra.mxu0 %v561
      %580 = vmatprep.subr.bf16.mxu0 0
      %581 = vmatpush1.bf16.msra.mxu0 %v560
      %582 = vmatprep.subr.bf16.mxu0 0
      %583 = vmatpush2.bf16.msra.mxu0 0
      %584 = vmatprep.subr.bf16.mxu0 0
      %585 = vmatpush2.bf16.msra.mxu0 0
      %586 = vmatprep.subr.bf16.mxu0 0
      %587 = vmatpush2.bf16.msra.mxu0 0
      %588 = vmatprep.subr.bf16.mxu0 0
      %589 = vmatpush2.bf16.msra.mxu0 0
      %590 = vmatprep.subr.bf16.mxu0 0
      %591 = vmatpush2.bf16.msra.mxu0 0
      %592 = vmatprep.subr.bf16.mxu0 0
      %593 = vmatpush2.bf16.msra.mxu0 0
      %594 = vmatprep.subr.bf16.mxu0 0
      %595 = vmatpush2.bf16.msra.mxu0 0
      %596 = vmatprep.subr.bf16.mxu0 0
      %597 = vmatpush2.bf16.msra.mxu0 0
      %598 = vmatprep.mubr.bf16.mxu0 0
      %599 = vmatmul.mubr.bf16.gmra.mxu0 %v564
      %v600 = vpop.f32.mrf.mxu0
      %v601 = vadd.f32 %v547, %v600
      %v602 = vpop.f32.mrf.mxu0
      %v603 = vpop.f32.mrf.mxu0
      %v604 = vpop.f32.mrf.mxu0
      %605 = vdwg.mxu0
      %s606 = scalar_lea.vmem %s3, 32
      %v607 = vld [vmem:[%s606] sm:$0xf]
      %v608 = vld [vmem:[%s606 + $0x4] sm:$0xf]
      %v609 = vld [vmem:[%s606 + $0x8] sm:$0xf]
      %v610 = vld [vmem:[%s606 + $0xc] sm:$0xf]
      %v612 = vrot.slane %v480, 1
      %v617 = vunpack.c.l.b16 %v607
      %v618 = vunpack.c.l.b16 %v608
      %v619 = vunpack.c.l.b16 %v609
      %v620 = vunpack.c.l.b16 %v610
      %v621 = vpack.c.b16 %v618, %v617
      %v622 = vpack.c.b16 %v620, %v619
      %v626 = vsel %vm306, %v612, 0
      %628 = vmatprep.subr.bf16.mxu0 0
      %629 = vmatpush1.bf16.msra.mxu0 0
      %630 = vmatprep.subr.bf16.mxu0 0
      %631 = vmatpush1.bf16.msra.mxu0 0
      %632 = vmatprep.subr.bf16.mxu0 0
      %633 = vmatpush1.bf16.msra.mxu0 0
      %634 = vmatprep.subr.bf16.mxu0 0
      %635 = vmatpush1.bf16.msra.mxu0 0
      %636 = vmatprep.subr.bf16.mxu0 0
      %637 = vmatpush1.bf16.msra.mxu0 0
      %638 = vmatprep.subr.bf16.mxu0 0
      %639 = vmatpush1.bf16.msra.mxu0 0
      %640 = vmatprep.subr.bf16.mxu0 0
      %641 = vmatpush1.bf16.msra.mxu0 %v622
      %642 = vmatprep.subr.bf16.mxu0 0
      %643 = vmatpush1.bf16.msra.mxu0 %v621
      %644 = vmatprep.subr.bf16.mxu0 0
      %645 = vmatpush2.bf16.msra.mxu0 0
      %646 = vmatprep.subr.bf16.mxu0 0
      %647 = vmatpush2.bf16.msra.mxu0 0
      %648 = vmatprep.subr.bf16.mxu0 0
      %649 = vmatpush2.bf16.msra.mxu0 0
      %650 = vmatprep.subr.bf16.mxu0 0
      %651 = vmatpush2.bf16.msra.mxu0 0
      %652 = vmatprep.subr.bf16.mxu0 0
      %653 = vmatpush2.bf16.msra.mxu0 0
      %654 = vmatprep.subr.bf16.mxu0 0
      %655 = vmatpush2.bf16.msra.mxu0 0
      %656 = vmatprep.subr.bf16.mxu0 0
      %657 = vmatpush2.bf16.msra.mxu0 0
      %658 = vmatprep.subr.bf16.mxu0 0
      %659 = vmatpush2.bf16.msra.mxu0 0
      %660 = vmatprep.mubr.bf16.mxu0 0
      %661 = vmatmul.mubr.bf16.gmra.mxu0 %v626
      %v662 = vpop.f32.mrf.mxu0
      %v663 = vadd.f32 0.0, %v662
      %v664 = vpop.f32.mrf.mxu0
      %v665 = vpop.f32.mrf.mxu0
      %v666 = vpop.f32.mrf.mxu0
      %667 = vdwg.mxu0
      %v668 = vadd.f32 %v601, %v663
      %v669 = vld [vmem:[%s4] sm:$0x1]
      %v671 = vlaneseq
      %v672 = vshrl.u32 %v671, 7
      %v673 = vsub.s32 0, %v672
      %v674 = vrot.slane %v669, %v673
      %v676 = vadd.f32 %v668, %v674
      %vm677 = vcmp.ge.f32.partialorder %v676, 0.0
      %v678 = vmul.f32 %v676, 0.01
      %v679 = vsel %vm677, %v676, %v678
      %vm680 = vcmask 128000
      %681 = vst.msk [vmem:[#allocation3] sm:$0x3f] %vm680, 0.0
      %vm682 = vcmask 125952
      %683 = vst.msk [vmem:[#allocation3 + $0x1] sm:$0xf] %vm682, %v679
      %v684 = vld [vmem:[#allocation3] sm:$0x3f]
      %v685 = vpack.c.bf16 %v684, %v684
      %v686 = vld [vmem:[%s5] sm:$0xf]
      %v687 = vld [vmem:[%s5 + $0x4] sm:$0xf]
      %s688 = scalar_lea.vmem %s5, 8
      %v689 = vld [vmem:[%s688] sm:$0xf]
      %v690 = vld [vmem:[%s688 + $0x4] sm:$0xf]
      %v692 = vshrl.u32 %v685, 16
      %v694 = vshll.u32 %v685, 16
      %v696 = vrot.slane %v694, 1
      %v697 = vor.u32 %v692, %v696
      %v700 = vunpack.c.l.b16 %v689
      %v701 = vunpack.c.l.b16 %v690
      %v702 = vpack.c.b16 %v701, %v700
      %vm704 = vcmask 130048
      %v706 = vsel %vm704, %v697, 0
      %708 = vmatprep.subr.bf16.mxu0 0
      %709 = vmatpush1.bf16.msra.mxu0 0
      %710 = vmatprep.subr.bf16.mxu0 0
      %711 = vmatpush1.bf16.msra.mxu0 0
      %712 = vmatprep.subr.bf16.mxu0 0
      %713 = vmatpush1.bf16.msra.mxu0 0
      %714 = vmatprep.subr.bf16.mxu0 0
      %715 = vmatpush1.bf16.msra.mxu0 0
      %716 = vmatprep.subr.bf16.mxu0 0
      %717 = vmatpush1.bf16.msra.mxu0 0
      %718 = vmatprep.subr.bf16.mxu0 0
      %719 = vmatpush1.bf16.msra.mxu0 0
      %720 = vmatprep.subr.bf16.mxu0 0
      %721 = vmatpush1.bf16.msra.mxu0 0
      %722 = vmatprep.subr.bf16.mxu0 0
      %723 = vmatpush1.bf16.msra.mxu0 %v702
      %724 = vmatprep.subr.bf16.mxu0 0
      %725 = vmatpush2.bf16.msra.mxu0 0
      %726 = vmatprep.subr.bf16.mxu0 0
      %727 = vmatpush2.bf16.msra.mxu0 0
      %728 = vmatprep.subr.bf16.mxu0 0
      %729 = vmatpush2.bf16.msra.mxu0 0
      %730 = vmatprep.subr.bf16.mxu0 0
      %731 = vmatpush2.bf16.msra.mxu0 0
      %732 = vmatprep.subr.bf16.mxu0 0
      %733 = vmatpush2.bf16.msra.mxu0 0
      %734 = vmatprep.subr.bf16.mxu0 0
      %735 = vmatpush2.bf16.msra.mxu0 0
      %736 = vmatprep.subr.bf16.mxu0 0
      %737 = vmatpush2.bf16.msra.mxu0 0
      %738 = vmatprep.subr.bf16.mxu0 0
      %739 = vmatpush2.bf16.msra.mxu0 0
      %740 = vmatprep.mubr.bf16.mxu0 0
      %741 = vmatmul.mubr.bf16.gmra.mxu0 %v706
      %v742 = vpop.f32.mrf.mxu0
      %v743 = vadd.f32 0.0, %v742
      %v744 = vpop.f32.mrf.mxu0
      %v745 = vpop.f32.mrf.mxu0
      %v746 = vpop.f32.mrf.mxu0
      %747 = vdwg.mxu0
      %v750 = vunpack.c.l.b16 %v686
      %v751 = vunpack.c.l.b16 %v687
      %v752 = vpack.c.b16 %v751, %v750
      %v754 = vsel %vm704, %v685, 0
      %756 = vmatprep.subr.bf16.mxu0 0
      %757 = vmatpush1.bf16.msra.mxu0 0
      %758 = vmatprep.subr.bf16.mxu0 0
      %759 = vmatpush1.bf16.msra.mxu0 0
      %760 = vmatprep.subr.bf16.mxu0 0
      %761 = vmatpush1.bf16.msra.mxu0 0
      %762 = vmatprep.subr.bf16.mxu0 0
      %763 = vmatpush1.bf16.msra.mxu0 0
      %764 = vmatprep.subr.bf16.mxu0 0
      %765 = vmatpush1.bf16.msra.mxu0 0
      %766 = vmatprep.subr.bf16.mxu0 0
      %767 = vmatpush1.bf16.msra.mxu0 0
      %768 = vmatprep.subr.bf16.mxu0 0
      %769 = vmatpush1.bf16.msra.mxu0 0
      %770 = vmatprep.subr.bf16.mxu0 0
      %771 = vmatpush1.bf16.msra.mxu0 %v752
      %772 = vmatprep.subr.bf16.mxu0 0
      %773 = vmatpush2.bf16.msra.mxu0 0
      %774 = vmatprep.subr.bf16.mxu0 0
      %775 = vmatpush2.bf16.msra.mxu0 0
      %776 = vmatprep.subr.bf16.mxu0 0
      %777 = vmatpush2.bf16.msra.mxu0 0
      %778 = vmatprep.subr.bf16.mxu0 0
      %779 = vmatpush2.bf16.msra.mxu0 0
      %780 = vmatprep.subr.bf16.mxu0 0
      %781 = vmatpush2.bf16.msra.mxu0 0
      %782 = vmatprep.subr.bf16.mxu0 0
      %783 = vmatpush2.bf16.msra.mxu0 0
      %784 = vmatprep.subr.bf16.mxu0 0
      %785 = vmatpush2.bf16.msra.mxu0 0
      %786 = vmatprep.subr.bf16.mxu0 0
      %787 = vmatpush2.bf16.msra.mxu0 0
      %788 = vmatprep.mubr.bf16.mxu0 0
      %789 = vmatmul.mubr.bf16.gmra.mxu0 %v754
      %v790 = vpop.f32.mrf.mxu0
      %v791 = vadd.f32 %v743, %v790
      %v792 = vpop.f32.mrf.mxu0
      %v793 = vpop.f32.mrf.mxu0
      %v794 = vpop.f32.mrf.mxu0
      %795 = vdwg.mxu0
      %s796 = scalar_lea.vmem %s5, 16
      %v797 = vld [vmem:[%s796] sm:$0xf]
      %v798 = vld [vmem:[%s796 + $0x4] sm:$0xf]
      %v800 = vrot.slane %v685, 1
      %v803 = vunpack.c.l.b16 %v797
      %v804 = vunpack.c.l.b16 %v798
      %v805 = vpack.c.b16 %v804, %v803
      %v808 = vsel %vm704, %v800, 0
      %810 = vmatprep.subr.bf16.mxu0 0
      %811 = vmatpush1.bf16.msra.mxu0 0
      %812 = vmatprep.subr.bf16.mxu0 0
      %813 = vmatpush1.bf16.msra.mxu0 0
      %814 = vmatprep.subr.bf16.mxu0 0
      %815 = vmatpush1.bf16.msra.mxu0 0
      %816 = vmatprep.subr.bf16.mxu0 0
      %817 = vmatpush1.bf16.msra.mxu0 0
      %818 = vmatprep.subr.bf16.mxu0 0
      %819 = vmatpush1.bf16.msra.mxu0 0
      %820 = vmatprep.subr.bf16.mxu0 0
      %821 = vmatpush1.bf16.msra.mxu0 0
      %822 = vmatprep.subr.bf16.mxu0 0
      %823 = vmatpush1.bf16.msra.mxu0 0
      %824 = vmatprep.subr.bf16.mxu0 0
      %825 = vmatpush1.bf16.msra.mxu0 %v805
      %826 = vmatprep.subr.bf16.mxu0 0
      %827 = vmatpush2.bf16.msra.mxu0 0
      %828 = vmatprep.subr.bf16.mxu0 0
      %829 = vmatpush2.bf16.msra.mxu0 0
      %830 = vmatprep.subr.bf16.mxu0 0
      %831 = vmatpush2.bf16.msra.mxu0 0
      %832 = vmatprep.subr.bf16.mxu0 0
      %833 = vmatpush2.bf16.msra.mxu0 0
      %834 = vmatprep.subr.bf16.mxu0 0
      %835 = vmatpush2.bf16.msra.mxu0 0
      %836 = vmatprep.subr.bf16.mxu0 0
      %837 = vmatpush2.bf16.msra.mxu0 0
      %838 = vmatprep.subr.bf16.mxu0 0
      %839 = vmatpush2.bf16.msra.mxu0 0
      %840 = vmatprep.subr.bf16.mxu0 0
      %841 = vmatpush2.bf16.msra.mxu0 0
      %842 = vmatprep.mubr.bf16.mxu0 0
      %843 = vmatmul.mubr.bf16.gmra.mxu0 %v808
      %v844 = vpop.f32.mrf.mxu0
      %v845 = vadd.f32 0.0, %v844
      %v846 = vpop.f32.mrf.mxu0
      %v847 = vpop.f32.mrf.mxu0
      %v848 = vpop.f32.mrf.mxu0
      %849 = vdwg.mxu0
      %v850 = vadd.f32 %v791, %v845
      %v851 = vld [vmem:[%s6] sm:$0x1]
      %v853 = vlaneseq
      %v854 = vshrl.u32 %v853, 7
      %v855 = vsub.s32 0, %v854
      %v856 = vrot.slane %v851, %v855
      %v858 = vadd.f32 %v850, %v856
      %v859 = vsub.f32 0.0, %v858
      %v860 = vmul.f32 %v859, 1.442695
      %v861 = vpow.pop %v860
      %v862 = vadd.f32 %v861, 1.0
      %v863 = vrcp.pop %v862
      %v864 = vmul.f32 %v863, %v474
      %865 = vst.msk [vmem:[%s273] sm:$0xf] %vm477, %v864
      %p866 = scmp.lt.s32.totalorder %s18, 1
      %s867 = scalar_select %p866, %s18, 1
      %s868 = smul.addr %s867, 4
      %s869 = scalar_lea.vmem %s7, %s868
      // Predicated region
      $region49: #{micm_forward.7} parent=47 // pred_check
        %p870 = pneg %p188
      $region50: #{micm_forward.7} parent=47 // pred_check_branch
        %872 = sbr.rel (%p870) target = $region52
      $region51: #{micm_forward.7} parent=47 // pred_region
        _
      $region52: #{micm_forward.7} parent=47 // pred_fallthru
        _
    $region48: #{micm_forward.7} parent=5 // pred_fallthru
      _
    %p873 = scmp.le.s32.totalorder 2, %s13
    // Predicated region
    $region53: #{micm_forward.7} parent=5 // pred_check
      %p874 = pneg %p873
    $region54: #{micm_forward.7} parent=5 // pred_check_branch
      %876 = sbr.rel (%p874) target = $region56
    $region55: #{micm_forward.7} parent=5 // pred_region
      %s877 = ssub.s32 %s13, 2
      // Predicated region
      $region57: #{micm_forward.7} parent=55 // pred_check
        %p878 = pneg %p194
      $region58: #{micm_forward.7} parent=55 // pred_check_branch
        %880 = sbr.rel (%p878) target = $region60
      $region59: #{micm_forward.7} parent=55 // pred_region
        %p881 = scmp.lt.s32.totalorder %s19, 1
        %s882 = scalar_select %p881, %s19, 1
        %s883 = smul.addr %s882, 4
        %s884 = scalar_lea.vmem %s7, %s883
      $region60: #{micm_forward.7} parent=55 // pred_fallthru
        _
    $region56: #{micm_forward.7} parent=5 // pred_fallthru
      _
  $region6: #{micm_forward.7} parent=0 // loop_footer
    %s17 = sadd.s32 1, %s13
  $region7: #{micm_forward.7} parent=0 // loop_footer_branch
    %12 = sbr.rel target = $region3
  $region8: #{micm_forward.7} parent=0 // loop_exit
    _

// kernel: micm_forward.8
$region0: #{micm_forward.8}
  #allocation0 [shape = 'u32[]', space=smem, size = 0x4, offset = 0x4, fixed_abs, tag = 'smem constant byte address 0x4 - core index']
  #allocation1 [shape = 'u32[144,128]{1,0:T(1,128)}', space=vmem, size = 0x12000, scoped, tag = 'internal scratch']
  #allocation2 [shape = 'f32[10,64]{1,0:T(8,128)}', space=vmem, size = 0x2000, scoped, tag = 'scratch operand']
  #allocation3 [shape = 'f32[10,32]{1,0:T(8,128)}', space=vmem, size = 0x2000, scoped, tag = 'scratch operand']
  %s0 = inlined_call_operand.vmem [shape: bf16[2,10,64], index: 0, kind: input, shape index: {}]
  %s1 = inlined_call_operand.vmem [shape: bf16[3,64,64], index: 1, kind: input, shape index: {}]
  %s2 = inlined_call_operand.vmem [shape: f32[1,64], index: 2, kind: input, shape index: {}]
  %s3 = inlined_call_operand.vmem [shape: bf16[3,64,32], index: 3, kind: input, shape index: {}]
  %s4 = inlined_call_operand.vmem [shape: f32[1,32], index: 4, kind: input, shape index: {}]
  %s5 = inlined_call_operand.vmem [shape: bf16[3,32,64], index: 5, kind: input, shape index: {}]
  %s6 = inlined_call_operand.vmem [shape: f32[1,64], index: 6, kind: input, shape index: {}]
  %s7 = inlined_call_operand.vmem [shape: f32[2,8,64], index: 7, kind: output, shape index: {}]
  %s8 = sld [smem:[#allocation0]]
  $region61: #{micm_forward.8} parent=0
    _
  %s10 = ssub.s32 1, %s8
  %s11 = scalar_select 0, %s10, %s8
  loop: start=0, step=1, limit=4
  $region2: #{micm_forward.8} parent=0 // loop_pre_header
    _
  $region3: #{micm_forward.8} parent=0 // loop_header
    %s13 = sphi 0, %s17
    %p14 = scmp.ge.s32.totalorder %s13, 4
    %s23 = sphi 0, %s25
    %s26 = sphi 0, %s23
    %s27 = sphi 0, %s26
    %s43 = sphi 0, %s27
    %s47 = sphi 0, %s47
    %s49 = sphi 0, %s47
    %s50 = sphi 0, %s49
    %s64 = sphi 0, %s50
    %s68 = sphi 0, %s68
    %s70 = sphi 0, %s68
    %s71 = sphi 0, %s70
    %s85 = sphi 0, %s71
    %s89 = sphi 0, %s89
    %s91 = sphi 0, %s89
    %s92 = sphi 0, %s91
    %s106 = sphi 0, %s92
    %s110 = sphi 0, %s110
    %s112 = sphi 0, %s110
    %s113 = sphi 0, %s112
    %s127 = sphi 0, %s113
    %s131 = sphi 0, %s131
    %s133 = sphi 0, %s131
    %s134 = sphi 0, %s133
    %s148 = sphi 0, %s134
    %s152 = sphi 0, %s152
    %s154 = sphi 0, %s152
    %s155 = sphi 0, %s154
    %s169 = sphi 0, %s155
    %s175 = sphi 0, %s177
    %s178 = sphi 0, %s175
    %s179 = sphi 0, %s178
    %s195 = sphi 0, %s179
  $region4: #{micm_forward.8} parent=0 // loop_header_branch
    %16 = sbr.rel (%p14) target = $region8
  $region5: #{micm_forward.8} parent=0 // loop_body
    %s18 = ssub.s32 %s13, 1
    %s19 = ssub.s32 %s13, 2
    %s20 = sadd.s32 %s13, 1
    %s21 = ssub.s32 %s13, %s20
    %p22 = scmp.eq.s32.totalorder %s21, 0
    %s24 = sadd.s32 %s23, 1
    %s25 = scalar_select %p22, %s23, %s24
    %p28 = pneg %p22
    %p29 = scmp.eq.s32.totalorder %s13, 1
    %p30 = por %p28, %p29
    %p31 = scmp.ne.s32.totalorder %s23, %s26
    %p32 = scmp.eq.s32.totalorder %s13, 0
    %p33 = por %p31, %p32
    %p34 = scmp.ne.s32.totalorder %s23, %s26
    %p35 = scmp.eq.s32.totalorder %s18, 1
    %p36 = por %p34, %p35
    %p37 = scmp.ne.s32.totalorder %s26, %s27
    %p38 = scmp.eq.s32.totalorder %s18, 0
    %p39 = por %p37, %p38
    %p40 = scmp.ne.s32.totalorder %s26, %s27
    %p41 = scmp.eq.s32.totalorder %s19, 1
    %p42 = por %p40, %p41
    %p44 = scmp.ne.s32.totalorder %s27, %s43
    %p45 = scmp.eq.s32.totalorder %s19, 0
    %p46 = por %p44, %p45
    %s48 = sadd.s32 %s47, 1
    %p51 = scmp.eq.s32.totalorder %s13, 1
    %p52 = scmp.ne.s32.totalorder %s47, %s49
    %p53 = scmp.eq.s32.totalorder %s13, 0
    %p54 = por %p52, %p53
    %p55 = scmp.ne.s32.totalorder %s47, %s49
    %p56 = scmp.eq.s32.totalorder %s18, 1
    %p57 = por %p55, %p56
    %p58 = scmp.ne.s32.totalorder %s49, %s50
    %p59 = scmp.eq.s32.totalorder %s18, 0
    %p60 = por %p58, %p59
    %p61 = scmp.ne.s32.totalorder %s49, %s50
    %p62 = scmp.eq.s32.totalorder %s19, 1
    %p63 = por %p61, %p62
    %p65 = scmp.ne.s32.totalorder %s50, %s64
    %p66 = scmp.eq.s32.totalorder %s19, 0
    %p67 = por %p65, %p66
    %s69 = sadd.s32 %s68, 1
    %p72 = scmp.eq.s32.totalorder %s13, 1
    %p73 = scmp.ne.s32.totalorder %s68, %s70
    %p74 = scmp.eq.s32.totalorder %s13, 0
    %p75 = por %p73, %p74
    %p76 = scmp.ne.s32.totalorder %s68, %s70
    %p77 = scmp.eq.s32.totalorder %s18, 1
    %p78 = por %p76, %p77
    %p79 = scmp.ne.s32.totalorder %s70, %s71
    %p80 = scmp.eq.s32.totalorder %s18, 0
    %p81 = por %p79, %p80
    %p82 = scmp.ne.s32.totalorder %s70, %s71
    %p83 = scmp.eq.s32.totalorder %s19, 1
    %p84 = por %p82, %p83
    %p86 = scmp.ne.s32.totalorder %s71, %s85
    %p87 = scmp.eq.s32.totalorder %s19, 0
    %p88 = por %p86, %p87
    %s90 = sadd.s32 %s89, 1
    %p93 = scmp.eq.s32.totalorder %s13, 1
    %p94 = scmp.ne.s32.totalorder %s89, %s91
    %p95 = scmp.eq.s32.totalorder %s13, 0
    %p96 = por %p94, %p95
    %p97 = scmp.ne.s32.totalorder %s89, %s91
    %p98 = scmp.eq.s32.totalorder %s18, 1
    %p99 = por %p97, %p98
    %p100 = scmp.ne.s32.totalorder %s91, %s92
    %p101 = scmp.eq.s32.totalorder %s18, 0
    %p102 = por %p100, %p101
    %p103 = scmp.ne.s32.totalorder %s91, %s92
    %p104 = scmp.eq.s32.totalorder %s19, 1
    %p105 = por %p103, %p104
    %p107 = scmp.ne.s32.totalorder %s92, %s106
    %p108 = scmp.eq.s32.totalorder %s19, 0
    %p109 = por %p107, %p108
    %s111 = sadd.s32 %s110, 1
    %p114 = scmp.eq.s32.totalorder %s13, 1
    %p115 = scmp.ne.s32.totalorder %s110, %s112
    %p116 = scmp.eq.s32.totalorder %s13, 0
    %p117 = por %p115, %p116
    %p118 = scmp.ne.s32.totalorder %s110, %s112
    %p119 = scmp.eq.s32.totalorder %s18, 1
    %p120 = por %p118, %p119
    %p121 = scmp.ne.s32.totalorder %s112, %s113
    %p122 = scmp.eq.s32.totalorder %s18, 0
    %p123 = por %p121, %p122
    %p124 = scmp.ne.s32.totalorder %s112, %s113
    %p125 = scmp.eq.s32.totalorder %s19, 1
    %p126 = por %p124, %p125
    %p128 = scmp.ne.s32.totalorder %s113, %s127
    %p129 = scmp.eq.s32.totalorder %s19, 0
    %p130 = por %p128, %p129
    %s132 = sadd.s32 %s131, 1
    %p135 = scmp.eq.s32.totalorder %s13, 1
    %p136 = scmp.ne.s32.totalorder %s131, %s133
    %p137 = scmp.eq.s32.totalorder %s13, 0
    %p138 = por %p136, %p137
    %p139 = scmp.ne.s32.totalorder %s131, %s133
    %p140 = scmp.eq.s32.totalorder %s18, 1
    %p141 = por %p139, %p140
    %p142 = scmp.ne.s32.totalorder %s133, %s134
    %p143 = scmp.eq.s32.totalorder %s18, 0
    %p144 = por %p142, %p143
    %p145 = scmp.ne.s32.totalorder %s133, %s134
    %p146 = scmp.eq.s32.totalorder %s19, 1
    %p147 = por %p145, %p146
    %p149 = scmp.ne.s32.totalorder %s134, %s148
    %p150 = scmp.eq.s32.totalorder %s19, 0
    %p151 = por %p149, %p150
    %s153 = sadd.s32 %s152, 1
    %p156 = scmp.eq.s32.totalorder %s13, 1
    %p157 = scmp.ne.s32.totalorder %s152, %s154
    %p158 = scmp.eq.s32.totalorder %s13, 0
    %p159 = por %p157, %p158
    %p160 = scmp.ne.s32.totalorder %s152, %s154
    %p161 = scmp.eq.s32.totalorder %s18, 1
    %p162 = por %p160, %p161
    %p163 = scmp.ne.s32.totalorder %s154, %s155
    %p164 = scmp.eq.s32.totalorder %s18, 0
    %p165 = por %p163, %p164
    %p166 = scmp.ne.s32.totalorder %s154, %s155
    %p167 = scmp.eq.s32.totalorder %s19, 1
    %p168 = por %p166, %p167
    %p170 = scmp.ne.s32.totalorder %s155, %s169
    %p171 = scmp.eq.s32.totalorder %s19, 0
    %p172 = por %p170, %p171
    %s173 = ssub.s32 %s13, %s20
    %p174 = scmp.eq.s32.totalorder %s173, 0
    %s176 = sadd.s32 %s175, 1
    %s177 = scalar_select %p174, %s175, %s176
    %p180 = pneg %p174
    %p181 = scmp.eq.s32.totalorder %s13, 1
    %p182 = por %p180, %p181
    %p183 = scmp.ne.s32.totalorder %s175, %s178
    %p184 = scmp.eq.s32.totalorder %s13, 0
    %p185 = por %p183, %p184
    %p186 = scmp.ne.s32.totalorder %s175, %s178
    %p187 = scmp.eq.s32.totalorder %s18, 1
    %p188 = por %p186, %p187
    %p189 = scmp.ne.s32.totalorder %s178, %s179
    %p190 = scmp.eq.s32.totalorder %s18, 0
    %p191 = por %p189, %p190
    %p192 = scmp.ne.s32.totalorder %s178, %s179
    %p193 = scmp.eq.s32.totalorder %s19, 1
    %p194 = por %p192, %p193
    %p196 = scmp.ne.s32.totalorder %s179, %s195
    %p197 = scmp.eq.s32.totalorder %s19, 0
    %p198 = por %p196, %p197
    %p199 = scmp.le.s32.totalorder 1, %s13
    %p200 = scmp.lt.s32.totalorder %s13, 3
    %p201 = pnand %p199, %p200
    %p202 = pneg %p201
    // Predicated region
    $region9: #{micm_forward.8} parent=5 // pred_check
      _
    $region10: #{micm_forward.8} parent=5 // pred_check_branch
      %204 = sbr.rel (%p201) target = $region12
    $region11: #{micm_forward.8} parent=5 // pred_region
      %s205 = ssub.s32 %s13, 1
      // Predicated region
      $region13: #{micm_forward.8} parent=11 // pred_check
        %p206 = pneg %p60
      $region14: #{micm_forward.8} parent=11 // pred_check_branch
        %208 = sbr.rel (%p206) target = $region16
      $region15: #{micm_forward.8} parent=11 // pred_region
        _
      $region16: #{micm_forward.8} parent=11 // pred_fallthru
        _
      // Predicated region
      $region17: #{micm_forward.8} parent=11 // pred_check
        %p209 = pneg %p81
      $region18: #{micm_forward.8} parent=11 // pred_check_branch
        %211 = sbr.rel (%p209) target = $region20
      $region19: #{micm_forward.8} parent=11 // pred_region
        _
      $region20: #{micm_forward.8} parent=11 // pred_fallthru
        _
      // Predicated region
      $region21: #{micm_forward.8} parent=11 // pred_check
        %p212 = pneg %p102
      $region22: #{micm_forward.8} parent=11 // pred_check_branch
        %214 = sbr.rel (%p212) target = $region24
      $region23: #{micm_forward.8} parent=11 // pred_region
        _
      $region24: #{micm_forward.8} parent=11 // pred_fallthru
        _
      // Predicated region
      $region25: #{micm_forward.8} parent=11 // pred_check
        %p215 = pneg %p123
      $region26: #{micm_forward.8} parent=11 // pred_check_branch
        %217 = sbr.rel (%p215) target = $region28
      $region27: #{micm_forward.8} parent=11 // pred_region
        _
      $region28: #{micm_forward.8} parent=11 // pred_fallthru
        _
      // Predicated region
      $region29: #{micm_forward.8} parent=11 // pred_check
        %p218 = pneg %p144
      $region30: #{micm_forward.8} parent=11 // pred_check_branch
        %220 = sbr.rel (%p218) target = $region32
      $region31: #{micm_forward.8} parent=11 // pred_region
        _
      $region32: #{micm_forward.8} parent=11 // pred_fallthru
        _
      // Predicated region
      $region33: #{micm_forward.8} parent=11 // pred_check
        %p221 = pneg %p165
      $region34: #{micm_forward.8} parent=11 // pred_check_branch
        %223 = sbr.rel (%p221) target = $region36
      $region35: #{micm_forward.8} parent=11 // pred_region
        _
      $region36: #{micm_forward.8} parent=11 // pred_fallthru
        _
    $region12: #{micm_forward.8} parent=5 // pred_fallthru
      _
    %p224 = scmp.lt.s32.totalorder %s13, 2
    // Predicated region
    $region37: #{micm_forward.8} parent=5 // pred_check
      %p225 = pneg %p224
    $region38: #{micm_forward.8} parent=5 // pred_check_branch
      %227 = sbr.rel (%p225) target = $region40
    $region39: #{micm_forward.8} parent=5 // pred_region
      // Predicated region
      $region41: #{micm_forward.8} parent=39 // pred_check
        %p228 = pneg %p33
      $region42: #{micm_forward.8} parent=39 // pred_check_branch
        %230 = sbr.rel (%p228) target = $region44
      $region43: #{micm_forward.8} parent=39 // pred_region
        %p231 = scmp.lt.s32.totalorder %s13, 1
        %s232 = scalar_select %p231, %s13, 1
        %s233 = smul.addr %s232, 2
        %s234 = smul.addr %s233, 4
        %s235 = scalar_lea.vmem %s0, %s234
      $region44: #{micm_forward.8} parent=39 // pred_fallthru
        _
    $region40: #{micm_forward.8} parent=5 // pred_fallthru
      _
    %p236 = scmp.le.s32.totalorder 1, %s13
    %p237 = scmp.lt.s32.totalorder %s13, 3
    %p238 = pnand %p236, %p237
    %p239 = pneg %p238
    // Predicated region
    $region45: #{micm_forward.8} parent=5 // pred_check
      _
    $region46: #{micm_forward.8} parent=5 // pred_check_branch
      %241 = sbr.rel (%p238) target = $region48
    $region47: #{micm_forward.8} parent=5 // pred_region
      %s242 = ssub.s32 %s13, 1
      %p243 = scmp.lt.s32.totalorder %s18, 1
      %s244 = scalar_select %p243, %s18, 1
      %s245 = smul.addr %s244, 2
      %s246 = smul.addr %s245, 4
      %s247 = scalar_lea.vmem %s0, %s246
      %p248 = pneg %p39
      %p249 = pneg %p36
      %p250 = pneg %p60
      %p251 = pneg %p57
      %p252 = pneg %p81
      %p253 = pneg %p78
      %p254 = pneg %p102
      %p255 = pneg %p99
      %p256 = pneg %p123
      %p257 = pneg %p120
      %p258 = pneg %p144
      %p259 = pneg %p141
      %p260 = pneg %p165
      %p261 = pneg %p162
      %p262 = pneg %p191
      %p263 = pneg %p188
      %p264 = scmp.lt.s32.totalorder %s18, 1
      %s265 = scalar_select %p264, %s18, 1
      %s266 = smul.addr %s265, 8
      %s267 = scalar_lea.vmem %s7, %s266
      %p268 = scmp.lt.s32.totalorder %s18, 1
      %s269 = scalar_select %p268, %s18, 1
      %s270 = smul.addr %s269, 2
      %s271 = smul.addr %s270, 4
      %s272 = scalar_lea.vmem %s0, %s271
      %p273 = scmp.lt.s32.totalorder %s18, 1
      %s274 = scalar_select %p273, %s18, 1
      %s275 = smul.addr %s274, 8
      %s276 = scalar_lea.vmem %s7, %s275
      %v278 = vld [vmem:[%s272] sm:$0xf]
      %v279 = vld [vmem:[%s272 + $0x4] sm:$0x1]
      %v280 = vunpack.c.l.bf16 %v278
      %v281 = vunpack.c.l.bf16 %v279
      %v282 = vpack.c.bf16 %v280, %v280
      %v283 = vld [vmem:[%s1] sm:$0xf]
      %v284 = vld [vmem:[%s1 + $0x4] sm:$0xf]
      %v285 = vld [vmem:[%s1 + $0x8] sm:$0xf]
      %v286 = vld [vmem:[%s1 + $0xc] sm:$0xf]
      %v287 = vld [vmem:[%s1 + $0x10] sm:$0xf]
      %v288 = vld [vmem:[%s1 + $0x14] sm:$0xf]
      %v289 = vld [vmem:[%s1 + $0x18] sm:$0xf]
      %v290 = vld [vmem:[%s1 + $0x1c] sm:$0xf]
      %v291 = vpack.c.bf16 %v281, %v280
      %s292 = scalar_lea.vmem %s1, 32
      %v293 = vld [vmem:[%s292] sm:$0xf]
      %v294 = vld [vmem:[%s292 + $0x4] sm:$0xf]
      %v295 = vld [vmem:[%s292 + $0x8] sm:$0xf]
      %v296 = vld [vmem:[%s292 + $0xc] sm:$0xf]
      %v297 = vld [vmem:[%s292 + $0x10] sm:$0xf]
      %v298 = vld [vmem:[%s292 + $0x14] sm:$0xf]
      %v299 = vld [vmem:[%s292 + $0x18] sm:$0xf]
      %v300 = vld [vmem:[%s292 + $0x1c] sm:$0xf]
      %v302 = vshrl.u32 %v291, 16
      %v304 = vshll.u32 %v291, 16
      %v306 = vrot.slane %v304, 1
      %v307 = vor.u32 %v302, %v306
      %v316 = vunpack.c.l.b16 %v293
      %v317 = vunpack.c.l.b16 %v294
      %v318 = vunpack.c.l.b16 %v295
      %v319 = vunpack.c.l.b16 %v296
      %v320 = vunpack.c.l.b16 %v297
      %v321 = vunpack.c.l.b16 %v298
      %v322 = vunpack.c.l.b16 %v299
      %v323 = vunpack.c.l.b16 %v300
      %v324 = vpack.c.b16 %v317, %v316
      %v325 = vpack.c.b16 %v319, %v318
      %v326 = vpack.c.b16 %v321, %v320
      %v327 = vpack.c.b16 %v323, %v322
      %vm332 = vcmask 523264
      %v334 = vsel %vm332, %v307, 0
      %336 = vmatprep.subr.bf16.mxu0 0
      %337 = vmatpush1.bf16.msra.mxu0 0
      %338 = vmatprep.subr.bf16.mxu0 0
      %339 = vmatpush1.bf16.msra.mxu0 0
      %340 = vmatprep.subr.bf16.mxu0 0
      %341 = vmatpush1.bf16.msra.mxu0 0
      %342 = vmatprep.subr.bf16.mxu0 0
      %343 = vmatpush1.bf16.msra.mxu0 0
      %344 = vmatprep.subr.bf16.mxu0 0
      %345 = vmatpush1.bf16.msra.mxu0 %v327
      %346 = vmatprep.subr.bf16.mxu0 0
      %347 = vmatpush1.bf16.msra.mxu0 %v326
      %348 = vmatprep.subr.bf16.mxu0 0
      %349 = vmatpush1.bf16.msra.mxu0 %v325
      %350 = vmatprep.subr.bf16.mxu0 0
      %351 = vmatpush1.bf16.msra.mxu0 %v324
      %352 = vmatprep.subr.bf16.mxu0 0
      %353 = vmatpush2.bf16.msra.mxu0 0
      %354 = vmatprep.subr.bf16.mxu0 0
      %355 = vmatpush2.bf16.msra.mxu0 0
      %356 = vmatprep.subr.bf16.mxu0 0
      %357 = vmatpush2.bf16.msra.mxu0 0
      %358 = vmatprep.subr.bf16.mxu0 0
      %359 = vmatpush2.bf16.msra.mxu0 0
      %360 = vmatprep.subr.bf16.mxu0 0
      %361 = vmatpush2.bf16.msra.mxu0 0
      %362 = vmatprep.subr.bf16.mxu0 0
      %363 = vmatpush2.bf16.msra.mxu0 0
      %364 = vmatprep.subr.bf16.mxu0 0
      %365 = vmatpush2.bf16.msra.mxu0 0
      %366 = vmatprep.subr.bf16.mxu0 0
      %367 = vmatpush2.bf16.msra.mxu0 0
      %368 = vmatprep.mubr.bf16.mxu0 0
      %369 = vmatmul.mubr.bf16.gmra.mxu0 %v334
      %v370 = vpop.f32.mrf.mxu0
      %v371 = vadd.f32 0.0, %v370
      %v372 = vpop.f32.mrf.mxu0
      %v373 = vpop.f32.mrf.mxu0
      %v374 = vpop.f32.mrf.mxu0
      %375 = vdwg.mxu0
      %v384 = vunpack.c.l.b16 %v283
      %v385 = vunpack.c.l.b16 %v284
      %v386 = vunpack.c.l.b16 %v285
      %v387 = vunpack.c.l.b16 %v286
      %v388 = vunpack.c.l.b16 %v287
      %v389 = vunpack.c.l.b16 %v288
      %v390 = vunpack.c.l.b16 %v289
      %v391 = vunpack.c.l.b16 %v290
      %v392 = vpack.c.b16 %v385, %v384
      %v393 = vpack.c.b16 %v387, %v386
      %v394 = vpack.c.b16 %v389, %v388
      %v395 = vpack.c.b16 %v391, %v390
      %v401 = vsel %vm332, %v282, 0
      %403 = vmatprep.subr.bf16.mxu0 0
      %404 = vmatpush1.bf16.msra.mxu0 0
      %405 = vmatprep.subr.bf16.mxu0 0
      %406 = vmatpush1.bf16.msra.mxu0 0
      %407 = vmatprep.subr.bf16.mxu0 0
      %408 = vmatpush1.bf16.msra.mxu0 0
      %409 = vmatprep.subr.bf16.mxu0 0
      %410 = vmatpush1.bf16.msra.mxu0 0
      %411 = vmatprep.subr.bf16.mxu0 0
      %412 = vmatpush1.bf16.msra.mxu0 %v395
      %413 = vmatprep.subr.bf16.mxu0 0
      %414 = vmatpush1.bf16.msra.mxu0 %v394
      %415 = vmatprep.subr.bf16.mxu0 0
      %416 = vmatpush1.bf16.msra.mxu0 %v393
      %417 = vmatprep.subr.bf16.mxu0 0
      %418 = vmatpush1.bf16.msra.mxu0 %v392
      %419 = vmatprep.subr.bf16.mxu0 0
      %420 = vmatpush2.bf16.msra.mxu0 0
      %421 = vmatprep.subr.bf16.mxu0 0
      %422 = vmatpush2.bf16.msra.mxu0 0
      %423 = vmatprep.subr.bf16.mxu0 0
      %424 = vmatpush2.bf16.msra.mxu0 0
      %425 = vmatprep.subr.bf16.mxu0 0
      %426 = vmatpush2.bf16.msra.mxu0 0
      %427 = vmatprep.subr.bf16.mxu0 0
      %428 = vmatpush2.bf16.msra.mxu0 0
      %429 = vmatprep.subr.bf16.mxu0 0
      %430 = vmatpush2.bf16.msra.mxu0 0
      %431 = vmatprep.subr.bf16.mxu0 0
      %432 = vmatpush2.bf16.msra.mxu0 0
      %433 = vmatprep.subr.bf16.mxu0 0
      %434 = vmatpush2.bf16.msra.mxu0 0
      %435 = vmatprep.mubr.bf16.mxu0 0
      %436 = vmatmul.mubr.bf16.gmra.mxu0 %v401
      %v437 = vpop.f32.mrf.mxu0
      %v438 = vadd.f32 %v371, %v437
      %v439 = vpop.f32.mrf.mxu0
      %v440 = vpop.f32.mrf.mxu0
      %v441 = vpop.f32.mrf.mxu0
      %442 = vdwg.mxu0
      %s443 = scalar_lea.vmem %s1, 64
      %v444 = vld [vmem:[%s443] sm:$0xf]
      %v445 = vld [vmem:[%s443 + $0x4] sm:$0xf]
      %v446 = vld [vmem:[%s443 + $0x8] sm:$0xf]
      %v447 = vld [vmem:[%s443 + $0xc] sm:$0xf]
      %v448 = vld [vmem:[%s443 + $0x10] sm:$0xf]
      %v449 = vld [vmem:[%s443 + $0x14] sm:$0xf]
      %v450 = vld [vmem:[%s443 + $0x18] sm:$0xf]
      %v451 = vld [vmem:[%s443 + $0x1c] sm:$0xf]
      %v453 = vrot.slane %v291, 1
      %v462 = vunpack.c.l.b16 %v444
      %v463 = vunpack.c.l.b16 %v445
      %v464 = vunpack.c.l.b16 %v446
      %v465 = vunpack.c.l.b16 %v447
      %v466 = vunpack.c.l.b16 %v448
      %v467 = vunpack.c.l.b16 %v449
      %v468 = vunpack.c.l.b16 %v450
      %v469 = vunpack.c.l.b16 %v451
      %v470 = vpack.c.b16 %v463, %v462
      %v471 = vpack.c.b16 %v465, %v464
      %v472 = vpack.c.b16 %v467, %v466
      %v473 = vpack.c.b16 %v469, %v468
      %v479 = vsel %vm332, %v453, 0
      %481 = vmatprep.subr.bf16.mxu0 0
      %482 = vmatpush1.bf16.msra.mxu0 0
      %483 = vmatprep.subr.bf16.mxu0 0
      %484 = vmatpush1.bf16.msra.mxu0 0
      %485 = vmatprep.subr.bf16.mxu0 0
      %486 = vmatpush1.bf16.msra.mxu0 0
      %487 = vmatprep.subr.bf16.mxu0 0
      %488 = vmatpush1.bf16.msra.mxu0 0
      %489 = vmatprep.subr.bf16.mxu0 0
      %490 = vmatpush1.bf16.msra.mxu0 %v473
      %491 = vmatprep.subr.bf16.mxu0 0
      %492 = vmatpush1.bf16.msra.mxu0 %v472
      %493 = vmatprep.subr.bf16.mxu0 0
      %494 = vmatpush1.bf16.msra.mxu0 %v471
      %495 = vmatprep.subr.bf16.mxu0 0
      %496 = vmatpush1.bf16.msra.mxu0 %v470
      %497 = vmatprep.subr.bf16.mxu0 0
      %498 = vmatpush2.bf16.msra.mxu0 0
      %499 = vmatprep.subr.bf16.mxu0 0
      %500 = vmatpush2.bf16.msra.mxu0 0
      %501 = vmatprep.subr.bf16.mxu0 0
      %502 = vmatpush2.bf16.msra.mxu0 0
      %503 = vmatprep.subr.bf16.mxu0 0
      %504 = vmatpush2.bf16.msra.mxu0 0
      %505 = vmatprep.subr.bf16.mxu0 0
      %506 = vmatpush2.bf16.msra.mxu0 0
      %507 = vmatprep.subr.bf16.mxu0 0
      %508 = vmatpush2.bf16.msra.mxu0 0
      %509 = vmatprep.subr.bf16.mxu0 0
      %510 = vmatpush2.bf16.msra.mxu0 0
      %511 = vmatprep.subr.bf16.mxu0 0
      %512 = vmatpush2.bf16.msra.mxu0 0
      %513 = vmatprep.mubr.bf16.mxu0 0
      %514 = vmatmul.mubr.bf16.gmra.mxu0 %v479
      %v515 = vpop.f32.mrf.mxu0
      %v516 = vadd.f32 0.0, %v515
      %v517 = vpop.f32.mrf.mxu0
      %v518 = vpop.f32.mrf.mxu0
      %v519 = vpop.f32.mrf.mxu0
      %520 = vdwg.mxu0
      %v521 = vadd.f32 %v438, %v516
      %v522 = vld [vmem:[%s2] sm:$0x1]
      %v524 = vlaneseq
      %v525 = vshrl.u32 %v524, 7
      %v526 = vsub.s32 0, %v525
      %v527 = vrot.slane %v522, %v526
      %v529 = vadd.f32 %v521, %v527
      %530 = vst.msk [vmem:[#allocation2] sm:$0xff] %vm332, 0.0
      %vm531 = vcmask 517120
      %532 = vst.msk [vmem:[#allocation2 + $0x8] sm:$0x3] %vm531, 0.0
      %533 = vst.msk [vmem:[#allocation2 + $0x1] sm:$0xff] %vm332, %v529
      %v534 = vld [vmem:[#allocation2] sm:$0xff]
      %v535 = vld [vmem:[#allocation2 + $0x8] sm:$0x3]
      %v536 = vpack.c.bf16 %v534, %v534
      %v537 = vld [vmem:[%s3] sm:$0xf]
      %v538 = vld [vmem:[%s3 + $0x4] sm:$0xf]
      %v539 = vld [vmem:[%s3 + $0x8] sm:$0xf]
      %v540 = vld [vmem:[%s3 + $0xc] sm:$0xf]
      %v541 = vld [vmem:[%s3 + $0x10] sm:$0xf]
      %v542 = vld [vmem:[%s3 + $0x14] sm:$0xf]
      %v543 = vld [vmem:[%s3 + $0x18] sm:$0xf]
      %v544 = vld [vmem:[%s3 + $0x1c] sm:$0xf]
      %v545 = vpack.c.bf16 %v535, %v534
      %s546 = scalar_lea.vmem %s3, 32
      %v547 = vld [vmem:[%s546] sm:$0xf]
      %v548 = vld [vmem:[%s546 + $0x4] sm:$0xf]
      %v549 = vld [vmem:[%s546 + $0x8] sm:$0xf]
      %v550 = vld [vmem:[%s546 + $0xc] sm:$0xf]
      %v551 = vld [vmem:[%s546 + $0x10] sm:$0xf]
      %v552 = vld [vmem:[%s546 + $0x14] sm:$0xf]
      %v553 = vld [vmem:[%s546 + $0x18] sm:$0xf]
      %v554 = vld [vmem:[%s546 + $0x1c] sm:$0xf]
      %v556 = vshrl.u32 %v545, 16
      %v558 = vshll.u32 %v545, 16
      %v560 = vrot.slane %v558, 1
      %v561 = vor.u32 %v556, %v560
      %v570 = vunpack.c.l.b16 %v547
      %v571 = vunpack.c.l.b16 %v548
      %v572 = vunpack.c.l.b16 %v549
      %v573 = vunpack.c.l.b16 %v550
      %v574 = vunpack.c.l.b16 %v551
      %v575 = vunpack.c.l.b16 %v552
      %v576 = vunpack.c.l.b16 %v553
      %v577 = vunpack.c.l.b16 %v554
      %v578 = vpack.c.b16 %v571, %v570
      %v579 = vpack.c.b16 %v573, %v572
      %v580 = vpack.c.b16 %v575, %v574
      %v581 = vpack.c.b16 %v577, %v576
      %v587 = vsel %vm332, %v561, 0
      %589 = vmatprep.subr.bf16.mxu0 0
      %590 = vmatpush1.bf16.msra.mxu0 0
      %591 = vmatprep.subr.bf16.mxu0 0
      %592 = vmatpush1.bf16.msra.mxu0 0
      %593 = vmatprep.subr.bf16.mxu0 0
      %594 = vmatpush1.bf16.msra.mxu0 0
      %595 = vmatprep.subr.bf16.mxu0 0
      %596 = vmatpush1.bf16.msra.mxu0 0
      %597 = vmatprep.subr.bf16.mxu0 0
      %598 = vmatpush1.bf16.msra.mxu0 %v581
      %599 = vmatprep.subr.bf16.mxu0 0
      %600 = vmatpush1.bf16.msra.mxu0 %v580
      %601 = vmatprep.subr.bf16.mxu0 0
      %602 = vmatpush1.bf16.msra.mxu0 %v579
      %603 = vmatprep.subr.bf16.mxu0 0
      %604 = vmatpush1.bf16.msra.mxu0 %v578
      %605 = vmatprep.subr.bf16.mxu0 0
      %606 = vmatpush2.bf16.msra.mxu0 0
      %607 = vmatprep.subr.bf16.mxu0 0
      %608 = vmatpush2.bf16.msra.mxu0 0
      %609 = vmatprep.subr.bf16.mxu0 0
      %610 = vmatpush2.bf16.msra.mxu0 0
      %611 = vmatprep.subr.bf16.mxu0 0
      %612 = vmatpush2.bf16.msra.mxu0 0
      %613 = vmatprep.subr.bf16.mxu0 0
      %614 = vmatpush2.bf16.msra.mxu0 0
      %615 = vmatprep.subr.bf16.mxu0 0
      %616 = vmatpush2.bf16.msra.mxu0 0
      %617 = vmatprep.subr.bf16.mxu0 0
      %618 = vmatpush2.bf16.msra.mxu0 0
      %619 = vmatprep.subr.bf16.mxu0 0
      %620 = vmatpush2.bf16.msra.mxu0 0
      %621 = vmatprep.mubr.bf16.mxu0 0
      %622 = vmatmul.mubr.bf16.gmra.mxu0 %v587
      %v623 = vpop.f32.mrf.mxu0
      %v624 = vadd.f32 0.0, %v623
      %v625 = vpop.f32.mrf.mxu0
      %v626 = vpop.f32.mrf.mxu0
      %v627 = vpop.f32.mrf.mxu0
      %628 = vdwg.mxu0
      %v637 = vunpack.c.l.b16 %v537
      %v638 = vunpack.c.l.b16 %v538
      %v639 = vunpack.c.l.b16 %v539
      %v640 = vunpack.c.l.b16 %v540
      %v641 = vunpack.c.l.b16 %v541
      %v642 = vunpack.c.l.b16 %v542
      %v643 = vunpack.c.l.b16 %v543
      %v644 = vunpack.c.l.b16 %v544
      %v645 = vpack.c.b16 %v638, %v637
      %v646 = vpack.c.b16 %v640, %v639
      %v647 = vpack.c.b16 %v642, %v641
      %v648 = vpack.c.b16 %v644, %v643
      %v654 = vsel %vm332, %v536, 0
      %656 = vmatprep.subr.bf16.mxu0 0
      %657 = vmatpush1.bf16.msra.mxu0 0
      %658 = vmatprep.subr.bf16.mxu0 0
      %659 = vmatpush1.bf16.msra.mxu0 0
      %660 = vmatprep.subr.bf16.mxu0 0
      %661 = vmatpush1.bf16.msra.mxu0 0
      %662 = vmatprep.subr.bf16.mxu0 0
      %663 = vmatpush1.bf16.msra.mxu0 0
      %664 = vmatprep.subr.bf16.mxu0 0
      %665 = vmatpush1.bf16.msra.mxu0 %v648
      %666 = vmatprep.subr.bf16.mxu0 0
      %667 = vmatpush1.bf16.msra.mxu0 %v647
      %668 = vmatprep.subr.bf16.mxu0 0
      %669 = vmatpush1.bf16.msra.mxu0 %v646
      %670 = vmatprep.subr.bf16.mxu0 0
      %671 = vmatpush1.bf16.msra.mxu0 %v645
      %672 = vmatprep.subr.bf16.mxu0 0
      %673 = vmatpush2.bf16.msra.mxu0 0
      %674 = vmatprep.subr.bf16.mxu0 0
      %675 = vmatpush2.bf16.msra.mxu0 0
      %676 = vmatprep.subr.bf16.mxu0 0
      %677 = vmatpush2.bf16.msra.mxu0 0
      %678 = vmatprep.subr.bf16.mxu0 0
      %679 = vmatpush2.bf16.msra.mxu0 0
      %680 = vmatprep.subr.bf16.mxu0 0
      %681 = vmatpush2.bf16.msra.mxu0 0
      %682 = vmatprep.subr.bf16.mxu0 0
      %683 = vmatpush2.bf16.msra.mxu0 0
      %684 = vmatprep.subr.bf16.mxu0 0
      %685 = vmatpush2.bf16.msra.mxu0 0
      %686 = vmatprep.subr.bf16.mxu0 0
      %687 = vmatpush2.bf16.msra.mxu0 0
      %688 = vmatprep.mubr.bf16.mxu0 0
      %689 = vmatmul.mubr.bf16.gmra.mxu0 %v654
      %v690 = vpop.f32.mrf.mxu0
      %v691 = vadd.f32 %v624, %v690
      %v692 = vpop.f32.mrf.mxu0
      %v693 = vpop.f32.mrf.mxu0
      %v694 = vpop.f32.mrf.mxu0
      %695 = vdwg.mxu0
      %s696 = scalar_lea.vmem %s3, 64
      %v697 = vld [vmem:[%s696] sm:$0xf]
      %v698 = vld [vmem:[%s696 + $0x4] sm:$0xf]
      %v699 = vld [vmem:[%s696 + $0x8] sm:$0xf]
      %v700 = vld [vmem:[%s696 + $0xc] sm:$0xf]
      %v701 = vld [vmem:[%s696 + $0x10] sm:$0xf]
      %v702 = vld [vmem:[%s696 + $0x14] sm:$0xf]
      %v703 = vld [vmem:[%s696 + $0x18] sm:$0xf]
      %v704 = vld [vmem:[%s696 + $0x1c] sm:$0xf]
      %v706 = vrot.slane %v545, 1
      %v715 = vunpack.c.l.b16 %v697
      %v716 = vunpack.c.l.b16 %v698
      %v717 = vunpack.c.l.b16 %v699
      %v718 = vunpack.c.l.b16 %v700
      %v719 = vunpack.c.l.b16 %v701
      %v720 = vunpack.c.l.b16 %v702
      %v721 = vunpack.c.l.b16 %v703
      %v722 = vunpack.c.l.b16 %v704
      %v723 = vpack.c.b16 %v716, %v715
      %v724 = vpack.c.b16 %v718, %v717
      %v725 = vpack.c.b16 %v720, %v719
      %v726 = vpack.c.b16 %v722, %v721
      %v732 = vsel %vm332, %v706, 0
      %734 = vmatprep.subr.bf16.mxu0 0
      %735 = vmatpush1.bf16.msra.mxu0 0
      %736 = vmatprep.subr.bf16.mxu0 0
      %737 = vmatpush1.bf16.msra.mxu0 0
      %738 = vmatprep.subr.bf16.mxu0 0
      %739 = vmatpush1.bf16.msra.mxu0 0
      %740 = vmatprep.subr.bf16.mxu0 0
      %741 = vmatpush1.bf16.msra.mxu0 0
      %742 = vmatprep.subr.bf16.mxu0 0
      %743 = vmatpush1.bf16.msra.mxu0 %v726
      %744 = vmatprep.subr.bf16.mxu0 0
      %745 = vmatpush1.bf16.msra.mxu0 %v725
      %746 = vmatprep.subr.bf16.mxu0 0
      %747 = vmatpush1.bf16.msra.mxu0 %v724
      %748 = vmatprep.subr.bf16.mxu0 0
      %749 = vmatpush1.bf16.msra.mxu0 %v723
      %750 = vmatprep.subr.bf16.mxu0 0
      %751 = vmatpush2.bf16.msra.mxu0 0
      %752 = vmatprep.subr.bf16.mxu0 0
      %753 = vmatpush2.bf16.msra.mxu0 0
      %754 = vmatprep.subr.bf16.mxu0 0
      %755 = vmatpush2.bf16.msra.mxu0 0
      %756 = vmatprep.subr.bf16.mxu0 0
      %757 = vmatpush2.bf16.msra.mxu0 0
      %758 = vmatprep.subr.bf16.mxu0 0
      %759 = vmatpush2.bf16.msra.mxu0 0
      %760 = vmatprep.subr.bf16.mxu0 0
      %761 = vmatpush2.bf16.msra.mxu0 0
      %762 = vmatprep.subr.bf16.mxu0 0
      %763 = vmatpush2.bf16.msra.mxu0 0
      %764 = vmatprep.subr.bf16.mxu0 0
      %765 = vmatpush2.bf16.msra.mxu0 0
      %766 = vmatprep.mubr.bf16.mxu0 0
      %767 = vmatmul.mubr.bf16.gmra.mxu0 %v732
      %v768 = vpop.f32.mrf.mxu0
      %v769 = vadd.f32 0.0, %v768
      %v770 = vpop.f32.mrf.mxu0
      %v771 = vpop.f32.mrf.mxu0
      %v772 = vpop.f32.mrf.mxu0
      %773 = vdwg.mxu0
      %v774 = vadd.f32 %v691, %v769
      %v775 = vld [vmem:[%s4] sm:$0x1]
      %v777 = vlaneseq
      %v778 = vshrl.u32 %v777, 7
      %v779 = vsub.s32 0, %v778
      %v780 = vrot.slane %v775, %v779
      %v782 = vadd.f32 %v774, %v780
      %vm783 = vcmp.ge.f32.partialorder %v782, 0.0
      %v784 = vmul.f32 %v782, 0.01
      %v785 = vsel %vm783, %v782, %v784
      %vm786 = vcmask 261120
      %787 = vst.msk [vmem:[#allocation3] sm:$0xff] %vm786, 0.0
      %vm788 = vcmask 254976
      %789 = vst.msk [vmem:[#allocation3 + $0x8] sm:$0x3] %vm788, 0.0
      %790 = vst.msk [vmem:[#allocation3 + $0x1] sm:$0xff] %vm786, %v785
      %v791 = vld [vmem:[#allocation3] sm:$0xff]
      %v792 = vld [vmem:[#allocation3 + $0x8] sm:$0x3]
      %v793 = vpack.c.bf16 %v791, %v791
      %v794 = vld [vmem:[%s5] sm:$0xf]
      %v795 = vld [vmem:[%s5 + $0x4] sm:$0xf]
      %v796 = vld [vmem:[%s5 + $0x8] sm:$0xf]
      %v797 = vld [vmem:[%s5 + $0xc] sm:$0xf]
      %v798 = vpack.c.bf16 %v792, %v791
      %s799 = scalar_lea.vmem %s5, 16
      %v800 = vld [vmem:[%s799] sm:$0xf]
      %v801 = vld [vmem:[%s799 + $0x4] sm:$0xf]
      %v802 = vld [vmem:[%s799 + $0x8] sm:$0xf]
      %v803 = vld [vmem:[%s799 + $0xc] sm:$0xf]
      %v805 = vshrl.u32 %v798, 16
      %v807 = vshll.u32 %v798, 16
      %v809 = vrot.slane %v807, 1
      %v810 = vor.u32 %v805, %v809
      %v815 = vunpack.c.l.b16 %v800
      %v816 = vunpack.c.l.b16 %v801
      %v817 = vunpack.c.l.b16 %v802
      %v818 = vunpack.c.l.b16 %v803
      %v819 = vpack.c.b16 %v816, %v815
      %v820 = vpack.c.b16 %v818, %v817
      %v824 = vsel %vm786, %v810, 0
      %826 = vmatprep.subr.bf16.mxu0 0
      %827 = vmatpush1.bf16.msra.mxu0 0
      %828 = vmatprep.subr.bf16.mxu0 0
      %829 = vmatpush1.bf16.msra.mxu0 0
      %830 = vmatprep.subr.bf16.mxu0 0
      %831 = vmatpush1.bf16.msra.mxu0 0
      %832 = vmatprep.subr.bf16.mxu0 0
      %833 = vmatpush1.bf16.msra.mxu0 0
      %834 = vmatprep.subr.bf16.mxu0 0
      %835 = vmatpush1.bf16.msra.mxu0 0
      %836 = vmatprep.subr.bf16.mxu0 0
      %837 = vmatpush1.bf16.msra.mxu0 0
      %838 = vmatprep.subr.bf16.mxu0 0
      %839 = vmatpush1.bf16.msra.mxu0 %v820
      %840 = vmatprep.subr.bf16.mxu0 0
      %841 = vmatpush1.bf16.msra.mxu0 %v819
      %842 = vmatprep.subr.bf16.mxu0 0
      %843 = vmatpush2.bf16.msra.mxu0 0
      %844 = vmatprep.subr.bf16.mxu0 0
      %845 = vmatpush2.bf16.msra.mxu0 0
      %846 = vmatprep.subr.bf16.mxu0 0
      %847 = vmatpush2.bf16.msra.mxu0 0
      %848 = vmatprep.subr.bf16.mxu0 0
      %849 = vmatpush2.bf16.msra.mxu0 0
      %850 = vmatprep.subr.bf16.mxu0 0
      %851 = vmatpush2.bf16.msra.mxu0 0
      %852 = vmatprep.subr.bf16.mxu0 0
      %853 = vmatpush2.bf16.msra.mxu0 0
      %854 = vmatprep.subr.bf16.mxu0 0
      %855 = vmatpush2.bf16.msra.mxu0 0
      %856 = vmatprep.subr.bf16.mxu0 0
      %857 = vmatpush2.bf16.msra.mxu0 0
      %858 = vmatprep.mubr.bf16.mxu0 0
      %859 = vmatmul.mubr.bf16.gmra.mxu0 %v824
      %v860 = vpop.f32.mrf.mxu0
      %v861 = vadd.f32 0.0, %v860
      %v862 = vpop.f32.mrf.mxu0
      %v863 = vpop.f32.mrf.mxu0
      %v864 = vpop.f32.mrf.mxu0
      %865 = vdwg.mxu0
      %v870 = vunpack.c.l.b16 %v794
      %v871 = vunpack.c.l.b16 %v795
      %v872 = vunpack.c.l.b16 %v796
      %v873 = vunpack.c.l.b16 %v797
      %v874 = vpack.c.b16 %v871, %v870
      %v875 = vpack.c.b16 %v873, %v872
      %v879 = vsel %vm786, %v793, 0
      %881 = vmatprep.subr.bf16.mxu0 0
      %882 = vmatpush1.bf16.msra.mxu0 0
      %883 = vmatprep.subr.bf16.mxu0 0
      %884 = vmatpush1.bf16.msra.mxu0 0
      %885 = vmatprep.subr.bf16.mxu0 0
      %886 = vmatpush1.bf16.msra.mxu0 0
      %887 = vmatprep.subr.bf16.mxu0 0
      %888 = vmatpush1.bf16.msra.mxu0 0
      %889 = vmatprep.subr.bf16.mxu0 0
      %890 = vmatpush1.bf16.msra.mxu0 0
      %891 = vmatprep.subr.bf16.mxu0 0
      %892 = vmatpush1.bf16.msra.mxu0 0
      %893 = vmatprep.subr.bf16.mxu0 0
      %894 = vmatpush1.bf16.msra.mxu0 %v875
      %895 = vmatprep.subr.bf16.mxu0 0
      %896 = vmatpush1.bf16.msra.mxu0 %v874
      %897 = vmatprep.subr.bf16.mxu0 0
      %898 = vmatpush2.bf16.msra.mxu0 0
      %899 = vmatprep.subr.bf16.mxu0 0
      %900 = vmatpush2.bf16.msra.mxu0 0
      %901 = vmatprep.subr.bf16.mxu0 0
      %902 = vmatpush2.bf16.msra.mxu0 0
      %903 = vmatprep.subr.bf16.mxu0 0
      %904 = vmatpush2.bf16.msra.mxu0 0
      %905 = vmatprep.subr.bf16.mxu0 0
      %906 = vmatpush2.bf16.msra.mxu0 0
      %907 = vmatprep.subr.bf16.mxu0 0
      %908 = vmatpush2.bf16.msra.mxu0 0
      %909 = vmatprep.subr.bf16.mxu0 0
      %910 = vmatpush2.bf16.msra.mxu0 0
      %911 = vmatprep.subr.bf16.mxu0 0
      %912 = vmatpush2.bf16.msra.mxu0 0
      %913 = vmatprep.mubr.bf16.mxu0 0
      %914 = vmatmul.mubr.bf16.gmra.mxu0 %v879
      %v915 = vpop.f32.mrf.mxu0
      %v916 = vadd.f32 %v861, %v915
      %v917 = vpop.f32.mrf.mxu0
      %v918 = vpop.f32.mrf.mxu0
      %v919 = vpop.f32.mrf.mxu0
      %920 = vdwg.mxu0
      %s921 = scalar_lea.vmem %s5, 32
      %v922 = vld [vmem:[%s921] sm:$0xf]
      %v923 = vld [vmem:[%s921 + $0x4] sm:$0xf]
      %v924 = vld [vmem:[%s921 + $0x8] sm:$0xf]
      %v925 = vld [vmem:[%s921 + $0xc] sm:$0xf]
      %v927 = vrot.slane %v798, 1
      %v932 = vunpack.c.l.b16 %v922
      %v933 = vunpack.c.l.b16 %v923
      %v934 = vunpack.c.l.b16 %v924
      %v935 = vunpack.c.l.b16 %v925
      %v936 = vpack.c.b16 %v933, %v932
      %v937 = vpack.c.b16 %v935, %v934
      %v941 = vsel %vm786, %v927, 0
      %943 = vmatprep.subr.bf16.mxu0 0
      %944 = vmatpush1.bf16.msra.mxu0 0
      %945 = vmatprep.subr.bf16.mxu0 0
      %946 = vmatpush1.bf16.msra.mxu0 0
      %947 = vmatprep.subr.bf16.mxu0 0
      %948 = vmatpush1.bf16.msra.mxu0 0
      %949 = vmatprep.subr.bf16.mxu0 0
      %950 = vmatpush1.bf16.msra.mxu0 0
      %951 = vmatprep.subr.bf16.mxu0 0
      %952 = vmatpush1.bf16.msra.mxu0 0
      %953 = vmatprep.subr.bf16.mxu0 0
      %954 = vmatpush1.bf16.msra.mxu0 0
      %955 = vmatprep.subr.bf16.mxu0 0
      %956 = vmatpush1.bf16.msra.mxu0 %v937
      %957 = vmatprep.subr.bf16.mxu0 0
      %958 = vmatpush1.bf16.msra.mxu0 %v936
      %959 = vmatprep.subr.bf16.mxu0 0
      %960 = vmatpush2.bf16.msra.mxu0 0
      %961 = vmatprep.subr.bf16.mxu0 0
      %962 = vmatpush2.bf16.msra.mxu0 0
      %963 = vmatprep.subr.bf16.mxu0 0
      %964 = vmatpush2.bf16.msra.mxu0 0
      %965 = vmatprep.subr.bf16.mxu0 0
      %966 = vmatpush2.bf16.msra.mxu0 0
      %967 = vmatprep.subr.bf16.mxu0 0
      %968 = vmatpush2.bf16.msra.mxu0 0
      %969 = vmatprep.subr.bf16.mxu0 0
      %970 = vmatpush2.bf16.msra.mxu0 0
      %971 = vmatprep.subr.bf16.mxu0 0
      %972 = vmatpush2.bf16.msra.mxu0 0
      %973 = vmatprep.subr.bf16.mxu0 0
      %974 = vmatpush2.bf16.msra.mxu0 0
      %975 = vmatprep.mubr.bf16.mxu0 0
      %976 = vmatmul.mubr.bf16.gmra.mxu0 %v941
      %v977 = vpop.f32.mrf.mxu0
      %v978 = vadd.f32 0.0, %v977
      %v979 = vpop.f32.mrf.mxu0
      %v980 = vpop.f32.mrf.mxu0
      %v981 = vpop.f32.mrf.mxu0
      %982 = vdwg.mxu0
      %v983 = vadd.f32 %v916, %v978
      %v984 = vld [vmem:[%s6] sm:$0x1]
      %v986 = vlaneseq
      %v987 = vshrl.u32 %v986, 7
      %v988 = vsub.s32 0, %v987
      %v989 = vrot.slane %v984, %v988
      %v991 = vadd.f32 %v983, %v989
      %v992 = vsub.f32 0.0, %v991
      %v993 = vmul.f32 %v992, 1.442695
      %v994 = vpow.pop %v993
      %v995 = vadd.f32 %v994, 1.0
      %v996 = vrcp.pop %v995
      %v997 = vmul.f32 %v996, %v529
      %998 = vst.msk [vmem:[%s276] sm:$0xff] %vm332, %v997
      %p999 = scmp.lt.s32.totalorder %s18, 1
      %s1000 = scalar_select %p999, %s18, 1
      %s1001 = smul.addr %s1000, 8
      %s1002 = scalar_lea.vmem %s7, %s1001
      // Predicated region
      $region49: #{micm_forward.8} parent=47 // pred_check
        %p1003 = pneg %p188
      $region50: #{micm_forward.8} parent=47 // pred_check_branch
        %1005 = sbr.rel (%p1003) target = $region52
      $region51: #{micm_forward.8} parent=47 // pred_region
        _
      $region52: #{micm_forward.8} parent=47 // pred_fallthru
        _
    $region48: #{micm_forward.8} parent=5 // pred_fallthru
      _
    %p1006 = scmp.le.s32.totalorder 2, %s13
    // Predicated region
    $region53: #{micm_forward.8} parent=5 // pred_check
      %p1007 = pneg %p1006
    $region54: #{micm_forward.8} parent=5 // pred_check_branch
      %1009 = sbr.rel (%p1007) target = $region56
    $region55: #{micm_forward.8} parent=5 // pred_region
      %s1010 = ssub.s32 %s13, 2
      // Predicated region
      $region57: #{micm_forward.8} parent=55 // pred_check
        %p1011 = pneg %p194
      $region58: #{micm_forward.8} parent=55 // pred_check_branch
        %1013 = sbr.rel (%p1011) target = $region60
      $region59: #{micm_forward.8} parent=55 // pred_region
        %p1014 = scmp.lt.s32.totalorder %s19, 1
        %s1015 = scalar_select %p1014, %s19, 1
        %s1016 = smul.addr %s1015, 8
        %s1017 = scalar_lea.vmem %s7, %s1016
      $region60: #{micm_forward.8} parent=55 // pred_fallthru
        _
    $region56: #{micm_forward.8} parent=5 // pred_fallthru
      _
  $region6: #{micm_forward.8} parent=0 // loop_footer
    %s17 = sadd.s32 1, %s13
  $region7: #{micm_forward.8} parent=0 // loop_footer_branch
    %12 = sbr.rel target = $region3
  $region8: #{micm_forward.8} parent=0 // loop_exit
    _

// kernel: micm_forward.5
$region0: #{micm_forward.5}
  #allocation0 [shape = 'u32[]', space=smem, size = 0x4, offset = 0x4, fixed_abs, tag = 'smem constant byte address 0x4 - core index']
  #allocation1 [shape = 'u32[144,128]{1,0:T(1,128)}', space=vmem, size = 0x12000, scoped, tag = 'internal scratch']
  %s0 = inlined_call_operand.vmem [shape: bf16[2,18,128], index: 0, kind: input, shape index: {}]
  %s1 = inlined_call_operand.vmem [shape: bf16[3,128,128], index: 1, kind: input, shape index: {}]
  %s2 = inlined_call_operand.vmem [shape: f32[1,128], index: 2, kind: input, shape index: {}]
  %s3 = inlined_call_operand.vmem [shape: f32[2,16,128], index: 3, kind: output, shape index: {}]
  %s4 = sld [smem:[#allocation0]]
  $region45: #{micm_forward.5} parent=0
    _
  %s6 = ssub.s32 1, %s4
  %s7 = scalar_select 0, %s6, %s4
  loop: start=0, step=1, limit=4
  $region2: #{micm_forward.5} parent=0 // loop_pre_header
    _
  $region3: #{micm_forward.5} parent=0 // loop_header
    %s9 = sphi 0, %s13
    %p10 = scmp.ge.s32.totalorder %s9, 4
    %s16 = sphi 0, %s28
    %s17 = sphi 0, %s24
    %s18 = sphi 0, %s16
    %s19 = sphi 0, %s17
    %s20 = sphi 0, %s18
    %s21 = sphi 0, %s19
    %s31 = sphi 0, %s33
    %s34 = sphi 0, %s31
    %s35 = sphi 0, %s34
    %s51 = sphi 0, %s35
    %s55 = sphi 0, %s55
    %s57 = sphi 0, %s55
    %s58 = sphi 0, %s57
    %s72 = sphi 0, %s58
    %s76 = sphi 0, %s76
    %s78 = sphi 0, %s76
    %s79 = sphi 0, %s78
    %s93 = sphi 0, %s79
    %s101 = sphi 0, %s103
    %s104 = sphi 0, %s101
    %s105 = sphi 0, %s104
    %s121 = sphi 0, %s105
  $region4: #{micm_forward.5} parent=0 // loop_header_branch
    %12 = sbr.rel (%p10) target = $region8
  $region5: #{micm_forward.5} parent=0 // loop_body
    %s14 = ssub.s32 %s9, 1
    %s15 = ssub.s32 %s9, 2
    %s22 = sadd.s32 1, %s17
    %p23 = scmp.ge.s32.totalorder %s22, 1
    %s24 = scalar_select %p23, 0, %s22
    %s25 = sadd.s32 1, %s16
    %s26 = scalar_select %p23, %s25, %s16
    %p27 = scmp.ge.s32.totalorder %s26, 2
    %s28 = scalar_select %p27, 0, %s26
    %s29 = ssub.s32 %s16, %s28
    %p30 = scmp.eq.s32.totalorder %s29, 0
    %s32 = sadd.s32 %s31, 1
    %s33 = scalar_select %p30, %s31, %s32
    %p36 = pneg %p30
    %p37 = scmp.eq.s32.totalorder %s9, 1
    %p38 = por %p36, %p37
    %p39 = scmp.ne.s32.totalorder %s31, %s34
    %p40 = scmp.eq.s32.totalorder %s9, 0
    %p41 = por %p39, %p40
    %p42 = scmp.ne.s32.totalorder %s31, %s34
    %p43 = scmp.eq.s32.totalorder %s14, 1
    %p44 = por %p42, %p43
    %p45 = scmp.ne.s32.totalorder %s34, %s35
    %p46 = scmp.eq.s32.totalorder %s14, 0
    %p47 = por %p45, %p46
    %p48 = scmp.ne.s32.totalorder %s34, %s35
    %p49 = scmp.eq.s32.totalorder %s15, 1
    %p50 = por %p48, %p49
    %p52 = scmp.ne.s32.totalorder %s35, %s51
    %p53 = scmp.eq.s32.totalorder %s15, 0
    %p54 = por %p52, %p53
    %s56 = sadd.s32 %s55, 1
    %p59 = scmp.eq.s32.totalorder %s9, 1
    %p60 = scmp.ne.s32.totalorder %s55, %s57
    %p61 = scmp.eq.s32.totalorder %s9, 0
    %p62 = por %p60, %p61
    %p63 = scmp.ne.s32.totalorder %s55, %s57
    %p64 = scmp.eq.s32.totalorder %s14, 1
    %p65 = por %p63, %p64
    %p66 = scmp.ne.s32.totalorder %s57, %s58
    %p67 = scmp.eq.s32.totalorder %s14, 0
    %p68 = por %p66, %p67
    %p69 = scmp.ne.s32.totalorder %s57, %s58
    %p70 = scmp.eq.s32.totalorder %s15, 1
    %p71 = por %p69, %p70
    %p73 = scmp.ne.s32.totalorder %s58, %s72
    %p74 = scmp.eq.s32.totalorder %s15, 0
    %p75 = por %p73, %p74
    %s77 = sadd.s32 %s76, 1
    %p80 = scmp.eq.s32.totalorder %s9, 1
    %p81 = scmp.ne.s32.totalorder %s76, %s78
    %p82 = scmp.eq.s32.totalorder %s9, 0
    %p83 = por %p81, %p82
    %p84 = scmp.ne.s32.totalorder %s76, %s78
    %p85 = scmp.eq.s32.totalorder %s14, 1
    %p86 = por %p84, %p85
    %p87 = scmp.ne.s32.totalorder %s78, %s79
    %p88 = scmp.eq.s32.totalorder %s14, 0
    %p89 = por %p87, %p88
    %p90 = scmp.ne.s32.totalorder %s78, %s79
    %p91 = scmp.eq.s32.totalorder %s15, 1
    %p92 = por %p90, %p91
    %p94 = scmp.ne.s32.totalorder %s79, %s93
    %p95 = scmp.eq.s32.totalorder %s15, 0
    %p96 = por %p94, %p95
    %s97 = ssub.s32 %s16, %s28
    %s98 = ssub.s32 %s17, %s24
    %s99 = sor.u32 %s97, %s98
    %p100 = scmp.eq.s32.totalorder %s99, 0
    %s102 = sadd.s32 %s101, 1
    %s103 = scalar_select %p100, %s101, %s102
    %p106 = pneg %p100
    %p107 = scmp.eq.s32.totalorder %s9, 1
    %p108 = por %p106, %p107
    %p109 = scmp.ne.s32.totalorder %s101, %s104
    %p110 = scmp.eq.s32.totalorder %s9, 0
    %p111 = por %p109, %p110
    %p112 = scmp.ne.s32.totalorder %s101, %s104
    %p113 = scmp.eq.s32.totalorder %s14, 1
    %p114 = por %p112, %p113
    %p115 = scmp.ne.s32.totalorder %s104, %s105
    %p116 = scmp.eq.s32.totalorder %s14, 0
    %p117 = por %p115, %p116
    %p118 = scmp.ne.s32.totalorder %s104, %s105
    %p119 = scmp.eq.s32.totalorder %s15, 1
    %p120 = por %p118, %p119
    %p122 = scmp.ne.s32.totalorder %s105, %s121
    %p123 = scmp.eq.s32.totalorder %s15, 0
    %p124 = por %p122, %p123
    %p125 = scmp.le.s32.totalorder 1, %s9
    %p126 = scmp.lt.s32.totalorder %s9, 3
    %p127 = pnand %p125, %p126
    %p128 = pneg %p127
    // Predicated region
    $region9: #{micm_forward.5} parent=5 // pred_check
      _
    $region10: #{micm_forward.5} parent=5 // pred_check_branch
      %130 = sbr.rel (%p127) target = $region12
    $region11: #{micm_forward.5} parent=5 // pred_region
      %s131 = ssub.s32 %s9, 1
      // Predicated region
      $region13: #{micm_forward.5} parent=11 // pred_check
        %p132 = pneg %p68
      $region14: #{micm_forward.5} parent=11 // pred_check_branch
        %134 = sbr.rel (%p132) target = $region16
      $region15: #{micm_forward.5} parent=11 // pred_region
        _
      $region16: #{micm_forward.5} parent=11 // pred_fallthru
        _
      // Predicated region
      $region17: #{micm_forward.5} parent=11 // pred_check
        %p135 = pneg %p89
      $region18: #{micm_forward.5} parent=11 // pred_check_branch
        %137 = sbr.rel (%p135) target = $region20
      $region19: #{micm_forward.5} parent=11 // pred_region
        _
      $region20: #{micm_forward.5} parent=11 // pred_fallthru
        _
    $region12: #{micm_forward.5} parent=5 // pred_fallthru
      _
    %p138 = scmp.lt.s32.totalorder %s9, 2
    // Predicated region
    $region21: #{micm_forward.5} parent=5 // pred_check
      %p139 = pneg %p138
    $region22: #{micm_forward.5} parent=5 // pred_check_branch
      %141 = sbr.rel (%p139) target = $region24
    $region23: #{micm_forward.5} parent=5 // pred_region
      // Predicated region
      $region25: #{micm_forward.5} parent=23 // pred_check
        %p142 = pneg %p41
      $region26: #{micm_forward.5} parent=23 // pred_check_branch
        %144 = sbr.rel (%p142) target = $region28
      $region27: #{micm_forward.5} parent=23 // pred_region
        %p145 = scmp.lt.s32.totalorder %s16, 1
        %s146 = scalar_select %p145, %s16, 1
        %s147 = smul.addr %s146, 3
        %s148 = smul.addr %s147, 4
        %s149 = scalar_lea.vmem %s0, %s148
      $region28: #{micm_forward.5} parent=23 // pred_fallthru
        _
    $region24: #{micm_forward.5} parent=5 // pred_fallthru
      _
    %p150 = scmp.le.s32.totalorder 1, %s9
    %p151 = scmp.lt.s32.totalorder %s9, 3
    %p152 = pnand %p150, %p151
    %p153 = pneg %p152
    // Predicated region
    $region29: #{micm_forward.5} parent=5 // pred_check
      _
    $region30: #{micm_forward.5} parent=5 // pred_check_branch
      %155 = sbr.rel (%p152) target = $region32
    $region31: #{micm_forward.5} parent=5 // pred_region
      %s156 = ssub.s32 %s9, 1
      %p157 = scmp.lt.s32.totalorder %s18, 1
      %s158 = scalar_select %p157, %s18, 1
      %s159 = smul.addr %s158, 3
      %s160 = smul.addr %s159, 4
      %s161 = scalar_lea.vmem %s0, %s160
      %p162 = pneg %p47
      %p163 = pneg %p44
      %p164 = pneg %p68
      %p165 = pneg %p65
      %p166 = pneg %p89
      %p167 = pneg %p86
      %p168 = pneg %p117
      %p169 = pneg %p114
      %s170 = smul.u32 2, %s19
      %p171 = scmp.lt.s32.totalorder %s18, 1
      %s172 = scalar_select %p171, %s18, 1
      %p173 = scmp.lt.s32.totalorder %s170, 1
      %s174 = scalar_select %p173, %s170, 1
      %s175 = smul.addr %s172, 2
      %s176 = sadd.s32 %s174, %s175
      %s177 = smul.addr %s176, 8
      %s178 = scalar_lea.vmem %s3, %s177
      %p179 = scmp.lt.s32.totalorder %s18, 1
      %s180 = scalar_select %p179, %s18, 1
      %s181 = smul.addr %s180, 3
      %s182 = smul.addr %s181, 4
      %s183 = scalar_lea.vmem %s0, %s182
      %s184 = smul.u32 2, %s19
      %p185 = scmp.lt.s32.totalorder %s18, 1
      %s186 = scalar_select %p185, %s18, 1
      %p187 = scmp.lt.s32.totalorder %s184, 1
      %s188 = scalar_select %p187, %s184, 1
      %s189 = smul.addr %s186, 2
      %s190 = sadd.s32 %s188, %s189
      %s191 = smul.addr %s190, 8
      %s192 = scalar_lea.vmem %s3, %s191
      %s193 = smul.u32 2, %s19
      %v195 = vld [vmem:[%s183] sm:$0xf]
      %v196 = vld [vmem:[%s183 + $0x4] sm:$0xf]
      %v197 = vld [vmem:[%s183 + $0x8] sm:$0x1]
      %v198 = vunpack.c.l.bf16 %v195
      %v199 = vunpack.c.l.bf16 %v196
      %v200 = vunpack.c.l.bf16 %v197
      %v201 = vpack.c.bf16 %v199, %v198
      %v202 = vld [vmem:[%s1] sm:$0xf]
      %v203 = vld [vmem:[%s1 + $0x4] sm:$0xf]
      %v204 = vld [vmem:[%s1 + $0x8] sm:$0xf]
      %v205 = vld [vmem:[%s1 + $0xc] sm:$0xf]
      %v206 = vld [vmem:[%s1 + $0x10] sm:$0xf]
      %v207 = vld [vmem:[%s1 + $0x14] sm:$0xf]
      %v208 = vld [vmem:[%s1 + $0x18] sm:$0xf]
      %v209 = vld [vmem:[%s1 + $0x1c] sm:$0xf]
      %v210 = vld [vmem:[%s1 + $0x20] sm:$0xf]
      %v211 = vld [vmem:[%s1 + $0x24] sm:$0xf]
      %v212 = vld [vmem:[%s1 + $0x28] sm:$0xf]
      %v213 = vld [vmem:[%s1 + $0x2c] sm:$0xf]
      %v214 = vld [vmem:[%s1 + $0x30] sm:$0xf]
      %v215 = vld [vmem:[%s1 + $0x34] sm:$0xf]
      %v216 = vld [vmem:[%s1 + $0x38] sm:$0xf]
      %v217 = vld [vmem:[%s1 + $0x3c] sm:$0xf]
      %v218 = vpack.c.bf16 %v200, %v200
      %s219 = scalar_lea.vmem %s1, 64
      %v220 = vld [vmem:[%s219] sm:$0xf]
      %v221 = vld [vmem:[%s219 + $0x4] sm:$0xf]
      %v222 = vld [vmem:[%s219 + $0x8] sm:$0xf]
      %v223 = vld [vmem:[%s219 + $0xc] sm:$0xf]
      %v224 = vld [vmem:[%s219 + $0x10] sm:$0xf]
      %v225 = vld [vmem:[%s219 + $0x14] sm:$0xf]
      %v226 = vld [vmem:[%s219 + $0x18] sm:$0xf]
      %v227 = vld [vmem:[%s219 + $0x1c] sm:$0xf]
      %v228 = vld [vmem:[%s219 + $0x20] sm:$0xf]
      %v229 = vld [vmem:[%s219 + $0x24] sm:$0xf]
      %v230 = vld [vmem:[%s219 + $0x28] sm:$0xf]
      %v231 = vld [vmem:[%s219 + $0x2c] sm:$0xf]
      %v232 = vld [vmem:[%s219 + $0x30] sm:$0xf]
      %v233 = vld [vmem:[%s219 + $0x34] sm:$0xf]
      %v234 = vld [vmem:[%s219 + $0x38] sm:$0xf]
      %v235 = vld [vmem:[%s219 + $0x3c] sm:$0xf]
      %vm236 = vsmask.f32 7424
      %v238 = vshrl.u32 %v201, 16
      %v240 = vshll.u32 %v201, 16
      %v242 = vrot.slane %v240, 1
      %v243 = vor.u32 %v238, %v242
      %v245 = vshll.u32 %v218, 16
      %v247 = vrot.slane %v245, 1
      %v248 = vsel %vm236, %v243, %v247
      %v266 = vunpack.c.l.b16 %v220
      %v267 = vunpack.c.l.b16 %v221
      %v268 = vunpack.c.l.b16 %v222
      %v269 = vunpack.c.l.b16 %v223
      %v270 = vunpack.c.l.b16 %v224
      %v271 = vunpack.c.l.b16 %v225
      %v272 = vunpack.c.l.b16 %v226
      %v273 = vunpack.c.l.b16 %v227
      %v274 = vunpack.c.l.b16 %v228
      %v275 = vunpack.c.l.b16 %v229
      %v276 = vunpack.c.l.b16 %v230
      %v277 = vunpack.c.l.b16 %v231
      %v278 = vunpack.c.l.b16 %v232
      %v279 = vunpack.c.l.b16 %v233
      %v280 = vunpack.c.l.b16 %v234
      %v281 = vunpack.c.l.b16 %v235
      %v282 = vpack.c.b16 %v267, %v266
      %v283 = vpack.c.b16 %v269, %v268
      %v284 = vpack.c.b16 %v271, %v270
      %v285 = vpack.c.b16 %v273, %v272
      %v286 = vpack.c.b16 %v275, %v274
      %v287 = vpack.c.b16 %v277, %v276
      %v288 = vpack.c.b16 %v279, %v278
      %v289 = vpack.c.b16 %v281, %v280
      %298 = vmatprep.subr.bf16.mxu0 0
      %299 = vmatpush1.bf16.msra.mxu0 %v289
      %300 = vmatprep.subr.bf16.mxu0 0
      %301 = vmatpush1.bf16.msra.mxu0 %v288
      %302 = vmatprep.subr.bf16.mxu0 0
      %303 = vmatpush1.bf16.msra.mxu0 %v287
      %304 = vmatprep.subr.bf16.mxu0 0
      %305 = vmatpush1.bf16.msra.mxu0 %v286
      %306 = vmatprep.subr.bf16.mxu0 0
      %307 = vmatpush1.bf16.msra.mxu0 %v285
      %308 = vmatprep.subr.bf16.mxu0 0
      %309 = vmatpush1.bf16.msra.mxu0 %v284
      %310 = vmatprep.subr.bf16.mxu0 0
      %311 = vmatpush1.bf16.msra.mxu0 %v283
      %312 = vmatprep.subr.bf16.mxu0 0
      %313 = vmatpush1.bf16.msra.mxu0 %v282
      %314 = vmatprep.subr.bf16.mxu0 0
      %315 = vmatpush2.bf16.msra.mxu0 0
      %316 = vmatprep.subr.bf16.mxu0 0
      %317 = vmatpush2.bf16.msra.mxu0 0
      %318 = vmatprep.subr.bf16.mxu0 0
      %319 = vmatpush2.bf16.msra.mxu0 0
      %320 = vmatprep.subr.bf16.mxu0 0
      %321 = vmatpush2.bf16.msra.mxu0 0
      %322 = vmatprep.subr.bf16.mxu0 0
      %323 = vmatpush2.bf16.msra.mxu0 0
      %324 = vmatprep.subr.bf16.mxu0 0
      %325 = vmatpush2.bf16.msra.mxu0 0
      %326 = vmatprep.subr.bf16.mxu0 0
      %327 = vmatpush2.bf16.msra.mxu0 0
      %328 = vmatprep.subr.bf16.mxu0 0
      %329 = vmatpush2.bf16.msra.mxu0 0
      %330 = vmatprep.mubr.bf16.mxu0 0
      %331 = vmatmul.mubr.bf16.gmra.mxu0 %v248
      %v332 = vpop.f32.mrf.mxu0
      %v333 = vadd.f32 0.0, %v332
      %v334 = vpop.f32.mrf.mxu0
      %v335 = vpop.f32.mrf.mxu0
      %v336 = vadd.f32 0.0, %v335
      %v337 = vpop.f32.mrf.mxu0
      %338 = vdwg.mxu0
      %v355 = vunpack.c.l.b16 %v202
      %v356 = vunpack.c.l.b16 %v203
      %v357 = vunpack.c.l.b16 %v204
      %v358 = vunpack.c.l.b16 %v205
      %v359 = vunpack.c.l.b16 %v206
      %v360 = vunpack.c.l.b16 %v207
      %v361 = vunpack.c.l.b16 %v208
      %v362 = vunpack.c.l.b16 %v209
      %v363 = vunpack.c.l.b16 %v210
      %v364 = vunpack.c.l.b16 %v211
      %v365 = vunpack.c.l.b16 %v212
      %v366 = vunpack.c.l.b16 %v213
      %v367 = vunpack.c.l.b16 %v214
      %v368 = vunpack.c.l.b16 %v215
      %v369 = vunpack.c.l.b16 %v216
      %v370 = vunpack.c.l.b16 %v217
      %v371 = vpack.c.b16 %v356, %v355
      %v372 = vpack.c.b16 %v358, %v357
      %v373 = vpack.c.b16 %v360, %v359
      %v374 = vpack.c.b16 %v362, %v361
      %v375 = vpack.c.b16 %v364, %v363
      %v376 = vpack.c.b16 %v366, %v365
      %v377 = vpack.c.b16 %v368, %v367
      %v378 = vpack.c.b16 %v370, %v369
      %387 = vmatprep.subr.bf16.mxu0 0
      %388 = vmatpush1.bf16.msra.mxu0 %v378
      %389 = vmatprep.subr.bf16.mxu0 0
      %390 = vmatpush1.bf16.msra.mxu0 %v377
      %391 = vmatprep.subr.bf16.mxu0 0
      %392 = vmatpush1.bf16.msra.mxu0 %v376
      %393 = vmatprep.subr.bf16.mxu0 0
      %394 = vmatpush1.bf16.msra.mxu0 %v375
      %395 = vmatprep.subr.bf16.mxu0 0
      %396 = vmatpush1.bf16.msra.mxu0 %v374
      %397 = vmatprep.subr.bf16.mxu0 0
      %398 = vmatpush1.bf16.msra.mxu0 %v373
      %399 = vmatprep.subr.bf16.mxu0 0
      %400 = vmatpush1.bf16.msra.mxu0 %v372
      %401 = vmatprep.subr.bf16.mxu0 0
      %402 = vmatpush1.bf16.msra.mxu0 %v371
      %403 = vmatprep.subr.bf16.mxu0 0
      %404 = vmatpush2.bf16.msra.mxu0 0
      %405 = vmatprep.subr.bf16.mxu0 0
      %406 = vmatpush2.bf16.msra.mxu0 0
      %407 = vmatprep.subr.bf16.mxu0 0
      %408 = vmatpush2.bf16.msra.mxu0 0
      %409 = vmatprep.subr.bf16.mxu0 0
      %410 = vmatpush2.bf16.msra.mxu0 0
      %411 = vmatprep.subr.bf16.mxu0 0
      %412 = vmatpush2.bf16.msra.mxu0 0
      %413 = vmatprep.subr.bf16.mxu0 0
      %414 = vmatpush2.bf16.msra.mxu0 0
      %415 = vmatprep.subr.bf16.mxu0 0
      %416 = vmatpush2.bf16.msra.mxu0 0
      %417 = vmatprep.subr.bf16.mxu0 0
      %418 = vmatpush2.bf16.msra.mxu0 0
      %419 = vmatprep.mubr.bf16.mxu0 0
      %420 = vmatmul.mubr.bf16.gmra.mxu0 %v201
      %v421 = vpop.f32.mrf.mxu0
      %v422 = vadd.f32 %v333, %v421
      %v423 = vpop.f32.mrf.mxu0
      %v424 = vpop.f32.mrf.mxu0
      %v425 = vadd.f32 %v336, %v424
      %v426 = vpop.f32.mrf.mxu0
      %427 = vdwg.mxu0
      %s428 = scalar_lea.vmem %s1, 128
      %v429 = vld [vmem:[%s428] sm:$0xf]
      %v430 = vld [vmem:[%s428 + $0x4] sm:$0xf]
      %v431 = vld [vmem:[%s428 + $0x8] sm:$0xf]
      %v432 = vld [vmem:[%s428 + $0xc] sm:$0xf]
      %v433 = vld [vmem:[%s428 + $0x10] sm:$0xf]
      %v434 = vld [vmem:[%s428 + $0x14] sm:$0xf]
      %v435 = vld [vmem:[%s428 + $0x18] sm:$0xf]
      %v436 = vld [vmem:[%s428 + $0x1c] sm:$0xf]
      %v437 = vld [vmem:[%s428 + $0x20] sm:$0xf]
      %v438 = vld [vmem:[%s428 + $0x24] sm:$0xf]
      %v439 = vld [vmem:[%s428 + $0x28] sm:$0xf]
      %v440 = vld [vmem:[%s428 + $0x2c] sm:$0xf]
      %v441 = vld [vmem:[%s428 + $0x30] sm:$0xf]
      %v442 = vld [vmem:[%s428 + $0x34] sm:$0xf]
      %v443 = vld [vmem:[%s428 + $0x38] sm:$0xf]
      %v444 = vld [vmem:[%s428 + $0x3c] sm:$0xf]
      %vm447 = vcmask 1046528
      %v448 = vrot.slane %v201, 1
      %v449 = vrot.slane %v218, 1
      %v450 = vsel %vm447, %v448, %v449
      %v468 = vunpack.c.l.b16 %v429
      %v469 = vunpack.c.l.b16 %v430
      %v470 = vunpack.c.l.b16 %v431
      %v471 = vunpack.c.l.b16 %v432
      %v472 = vunpack.c.l.b16 %v433
      %v473 = vunpack.c.l.b16 %v434
      %v474 = vunpack.c.l.b16 %v435
      %v475 = vunpack.c.l.b16 %v436
      %v476 = vunpack.c.l.b16 %v437
      %v477 = vunpack.c.l.b16 %v438
      %v478 = vunpack.c.l.b16 %v439
      %v479 = vunpack.c.l.b16 %v440
      %v480 = vunpack.c.l.b16 %v441
      %v481 = vunpack.c.l.b16 %v442
      %v482 = vunpack.c.l.b16 %v443
      %v483 = vunpack.c.l.b16 %v444
      %v484 = vpack.c.b16 %v469, %v468
      %v485 = vpack.c.b16 %v471, %v470
      %v486 = vpack.c.b16 %v473, %v472
      %v487 = vpack.c.b16 %v475, %v474
      %v488 = vpack.c.b16 %v477, %v476
      %v489 = vpack.c.b16 %v479, %v478
      %v490 = vpack.c.b16 %v481, %v480
      %v491 = vpack.c.b16 %v483, %v482
      %500 = vmatprep.subr.bf16.mxu0 0
      %501 = vmatpush1.bf16.msra.mxu0 %v491
      %502 = vmatprep.subr.bf16.mxu0 0
      %503 = vmatpush1.bf16.msra.mxu0 %v490
      %504 = vmatprep.subr.bf16.mxu0 0
      %505 = vmatpush1.bf16.msra.mxu0 %v489
      %506 = vmatprep.subr.bf16.mxu0 0
      %507 = vmatpush1.bf16.msra.mxu0 %v488
      %508 = vmatprep.subr.bf16.mxu0 0
      %509 = vmatpush1.bf16.msra.mxu0 %v487
      %510 = vmatprep.subr.bf16.mxu0 0
      %511 = vmatpush1.bf16.msra.mxu0 %v486
      %512 = vmatprep.subr.bf16.mxu0 0
      %513 = vmatpush1.bf16.msra.mxu0 %v485
      %514 = vmatprep.subr.bf16.mxu0 0
      %515 = vmatpush1.bf16.msra.mxu0 %v484
      %516 = vmatprep.subr.bf16.mxu0 0
      %517 = vmatpush2.bf16.msra.mxu0 0
      %518 = vmatprep.subr.bf16.mxu0 0
      %519 = vmatpush2.bf16.msra.mxu0 0
      %520 = vmatprep.subr.bf16.mxu0 0
      %521 = vmatpush2.bf16.msra.mxu0 0
      %522 = vmatprep.subr.bf16.mxu0 0
      %523 = vmatpush2.bf16.msra.mxu0 0
      %524 = vmatprep.subr.bf16.mxu0 0
      %525 = vmatpush2.bf16.msra.mxu0 0
      %526 = vmatprep.subr.bf16.mxu0 0
      %527 = vmatpush2.bf16.msra.mxu0 0
      %528 = vmatprep.subr.bf16.mxu0 0
      %529 = vmatpush2.bf16.msra.mxu0 0
      %530 = vmatprep.subr.bf16.mxu0 0
      %531 = vmatpush2.bf16.msra.mxu0 0
      %532 = vmatprep.mubr.bf16.mxu0 0
      %533 = vmatmul.mubr.bf16.gmra.mxu0 %v450
      %v534 = vpop.f32.mrf.mxu0
      %v535 = vadd.f32 0.0, %v534
      %v536 = vpop.f32.mrf.mxu0
      %v537 = vpop.f32.mrf.mxu0
      %v538 = vadd.f32 0.0, %v537
      %v539 = vpop.f32.mrf.mxu0
      %540 = vdwg.mxu0
      %v541 = vadd.f32 %v422, %v535
      %v542 = vadd.f32 %v425, %v538
      %v543 = vld [vmem:[%s2] sm:$0x1]
      %v545 = vlaneseq
      %v546 = vshrl.u32 %v545, 7
      %v547 = vsub.s32 0, %v546
      %v548 = vrot.slane %v543, %v547
      %v550 = vadd.f32 %v541, %v548
      %v551 = vadd.f32 %v542, %v548
      %552 = vst [vmem:[%s192] sm:$0xff] %v550
      %553 = vst [vmem:[%s192 + $0x8] sm:$0xff] %v551
      %s554 = smul.u32 2, %s19
      %p555 = scmp.lt.s32.totalorder %s18, 1
      %s556 = scalar_select %p555, %s18, 1
      %p557 = scmp.lt.s32.totalorder %s554, 1
      %s558 = scalar_select %p557, %s554, 1
      %s559 = smul.addr %s556, 2
      %s560 = sadd.s32 %s558, %s559
      %s561 = smul.addr %s560, 8
      %s562 = scalar_lea.vmem %s3, %s561
      // Predicated region
      $region33: #{micm_forward.5} parent=31 // pred_check
        %p563 = pneg %p114
      $region34: #{micm_forward.5} parent=31 // pred_check_branch
        %565 = sbr.rel (%p563) target = $region36
      $region35: #{micm_forward.5} parent=31 // pred_region
        %s566 = smul.u32 2, %s19
      $region36: #{micm_forward.5} parent=31 // pred_fallthru
        _
    $region32: #{micm_forward.5} parent=5 // pred_fallthru
      _
    %p567 = scmp.le.s32.totalorder 2, %s9
    // Predicated region
    $region37: #{micm_forward.5} parent=5 // pred_check
      %p568 = pneg %p567
    $region38: #{micm_forward.5} parent=5 // pred_check_branch
      %570 = sbr.rel (%p568) target = $region40
    $region39: #{micm_forward.5} parent=5 // pred_region
      %s571 = ssub.s32 %s9, 2
      // Predicated region
      $region41: #{micm_forward.5} parent=39 // pred_check
        %p572 = pneg %p120
      $region42: #{micm_forward.5} parent=39 // pred_check_branch
        %574 = sbr.rel (%p572) target = $region44
      $region43: #{micm_forward.5} parent=39 // pred_region
        %s575 = smul.u32 2, %s21
        %p576 = scmp.lt.s32.totalorder %s20, 1
        %s577 = scalar_select %p576, %s20, 1
        %p578 = scmp.lt.s32.totalorder %s575, 1
        %s579 = scalar_select %p578, %s575, 1
        %s580 = smul.addr %s577, 2
        %s581 = sadd.s32 %s579, %s580
        %s582 = smul.addr %s581, 8
        %s583 = scalar_lea.vmem %s3, %s582
      $region44: #{micm_forward.5} parent=39 // pred_fallthru
        _
    $region40: #{micm_forward.5} parent=5 // pred_fallthru
      _
  $region6: #{micm_forward.5} parent=0 // loop_footer
    %s13 = sadd.s32 1, %s9
  $region7: #{micm_forward.5} parent=0 // loop_footer_branch
    %8 = sbr.rel target = $region3
  $region8: #{micm_forward.5} parent=0 // loop_exit
    _

// kernel: micm_forward.9
$region0: #{micm_forward.9}
  #allocation0 [shape = 'u32[]', space=smem, size = 0x4, offset = 0x4, fixed_abs, tag = 'smem constant byte address 0x4 - core index']
  #allocation1 [shape = 'u32[144,128]{1,0:T(1,128)}', space=vmem, size = 0x12000, scoped, tag = 'internal scratch']
  %s0 = inlined_call_operand.vmem [shape: bf16[2,18,128], index: 0, kind: input, shape index: {}]
  %s1 = inlined_call_operand.vmem [shape: bf16[3,128,128], index: 1, kind: input, shape index: {}]
  %s2 = inlined_call_operand.vmem [shape: f32[1,128], index: 2, kind: input, shape index: {}]
  %s3 = inlined_call_operand.vmem [shape: f32[2,16,128], index: 3, kind: input, shape index: {}]
  %s4 = inlined_call_operand.vmem [shape: f32[2,16,128], index: 4, kind: output, shape index: {}]
  %s5 = sld [smem:[#allocation0]]
  $region49: #{micm_forward.9} parent=0
    _
  %s7 = ssub.s32 1, %s5
  %s8 = scalar_select 0, %s7, %s5
  loop: start=0, step=1, limit=4
  $region2: #{micm_forward.9} parent=0 // loop_pre_header
    _
  $region3: #{micm_forward.9} parent=0 // loop_header
    %s10 = sphi 0, %s14
    %p11 = scmp.ge.s32.totalorder %s10, 4
    %s17 = sphi 0, %s29
    %s18 = sphi 0, %s25
    %s19 = sphi 0, %s17
    %s20 = sphi 0, %s18
    %s21 = sphi 0, %s19
    %s22 = sphi 0, %s20
    %s32 = sphi 0, %s34
    %s35 = sphi 0, %s32
    %s36 = sphi 0, %s35
    %s52 = sphi 0, %s36
    %s56 = sphi 0, %s56
    %s58 = sphi 0, %s56
    %s59 = sphi 0, %s58
    %s73 = sphi 0, %s59
    %s77 = sphi 0, %s77
    %s79 = sphi 0, %s77
    %s80 = sphi 0, %s79
    %s94 = sphi 0, %s80
    %s102 = sphi 0, %s104
    %s105 = sphi 0, %s102
    %s106 = sphi 0, %s105
    %s122 = sphi 0, %s106
    %s130 = sphi 0, %s132
    %s133 = sphi 0, %s130
    %s134 = sphi 0, %s133
    %s150 = sphi 0, %s134
  $region4: #{micm_forward.9} parent=0 // loop_header_branch
    %13 = sbr.rel (%p11) target = $region8
  $region5: #{micm_forward.9} parent=0 // loop_body
    %s15 = ssub.s32 %s10, 1
    %s16 = ssub.s32 %s10, 2
    %s23 = sadd.s32 1, %s18
    %p24 = scmp.ge.s32.totalorder %s23, 1
    %s25 = scalar_select %p24, 0, %s23
    %s26 = sadd.s32 1, %s17
    %s27 = scalar_select %p24, %s26, %s17
    %p28 = scmp.ge.s32.totalorder %s27, 2
    %s29 = scalar_select %p28, 0, %s27
    %s30 = ssub.s32 %s17, %s29
    %p31 = scmp.eq.s32.totalorder %s30, 0
    %s33 = sadd.s32 %s32, 1
    %s34 = scalar_select %p31, %s32, %s33
    %p37 = pneg %p31
    %p38 = scmp.eq.s32.totalorder %s10, 1
    %p39 = por %p37, %p38
    %p40 = scmp.ne.s32.totalorder %s32, %s35
    %p41 = scmp.eq.s32.totalorder %s10, 0
    %p42 = por %p40, %p41
    %p43 = scmp.ne.s32.totalorder %s32, %s35
    %p44 = scmp.eq.s32.totalorder %s15, 1
    %p45 = por %p43, %p44
    %p46 = scmp.ne.s32.totalorder %s35, %s36
    %p47 = scmp.eq.s32.totalorder %s15, 0
    %p48 = por %p46, %p47
    %p49 = scmp.ne.s32.totalorder %s35, %s36
    %p50 = scmp.eq.s32.totalorder %s16, 1
    %p51 = por %p49, %p50
    %p53 = scmp.ne.s32.totalorder %s36, %s52
    %p54 = scmp.eq.s32.totalorder %s16, 0
    %p55 = por %p53, %p54
    %s57 = sadd.s32 %s56, 1
    %p60 = scmp.eq.s32.totalorder %s10, 1
    %p61 = scmp.ne.s32.totalorder %s56, %s58
    %p62 = scmp.eq.s32.totalorder %s10, 0
    %p63 = por %p61, %p62
    %p64 = scmp.ne.s32.totalorder %s56, %s58
    %p65 = scmp.eq.s32.totalorder %s15, 1
    %p66 = por %p64, %p65
    %p67 = scmp.ne.s32.totalorder %s58, %s59
    %p68 = scmp.eq.s32.totalorder %s15, 0
    %p69 = por %p67, %p68
    %p70 = scmp.ne.s32.totalorder %s58, %s59
    %p71 = scmp.eq.s32.totalorder %s16, 1
    %p72 = por %p70, %p71
    %p74 = scmp.ne.s32.totalorder %s59, %s73
    %p75 = scmp.eq.s32.totalorder %s16, 0
    %p76 = por %p74, %p75
    %s78 = sadd.s32 %s77, 1
    %p81 = scmp.eq.s32.totalorder %s10, 1
    %p82 = scmp.ne.s32.totalorder %s77, %s79
    %p83 = scmp.eq.s32.totalorder %s10, 0
    %p84 = por %p82, %p83
    %p85 = scmp.ne.s32.totalorder %s77, %s79
    %p86 = scmp.eq.s32.totalorder %s15, 1
    %p87 = por %p85, %p86
    %p88 = scmp.ne.s32.totalorder %s79, %s80
    %p89 = scmp.eq.s32.totalorder %s15, 0
    %p90 = por %p88, %p89
    %p91 = scmp.ne.s32.totalorder %s79, %s80
    %p92 = scmp.eq.s32.totalorder %s16, 1
    %p93 = por %p91, %p92
    %p95 = scmp.ne.s32.totalorder %s80, %s94
    %p96 = scmp.eq.s32.totalorder %s16, 0
    %p97 = por %p95, %p96
    %s98 = ssub.s32 %s17, %s29
    %s99 = ssub.s32 %s18, %s25
    %s100 = sor.u32 %s98, %s99
    %p101 = scmp.eq.s32.totalorder %s100, 0
    %s103 = sadd.s32 %s102, 1
    %s104 = scalar_select %p101, %s102, %s103
    %p107 = pneg %p101
    %p108 = scmp.eq.s32.totalorder %s10, 1
    %p109 = por %p107, %p108
    %p110 = scmp.ne.s32.totalorder %s102, %s105
    %p111 = scmp.eq.s32.totalorder %s10, 0
    %p112 = por %p110, %p111
    %p113 = scmp.ne.s32.totalorder %s102, %s105
    %p114 = scmp.eq.s32.totalorder %s15, 1
    %p115 = por %p113, %p114
    %p116 = scmp.ne.s32.totalorder %s105, %s106
    %p117 = scmp.eq.s32.totalorder %s15, 0
    %p118 = por %p116, %p117
    %p119 = scmp.ne.s32.totalorder %s105, %s106
    %p120 = scmp.eq.s32.totalorder %s16, 1
    %p121 = por %p119, %p120
    %p123 = scmp.ne.s32.totalorder %s106, %s122
    %p124 = scmp.eq.s32.totalorder %s16, 0
    %p125 = por %p123, %p124
    %s126 = ssub.s32 %s17, %s29
    %s127 = ssub.s32 %s18, %s25
    %s128 = sor.u32 %s126, %s127
    %p129 = scmp.eq.s32.totalorder %s128, 0
    %s131 = sadd.s32 %s130, 1
    %s132 = scalar_select %p129, %s130, %s131
    %p135 = pneg %p129
    %p136 = scmp.eq.s32.totalorder %s10, 1
    %p137 = por %p135, %p136
    %p138 = scmp.ne.s32.totalorder %s130, %s133
    %p139 = scmp.eq.s32.totalorder %s10, 0
    %p140 = por %p138, %p139
    %p141 = scmp.ne.s32.totalorder %s130, %s133
    %p142 = scmp.eq.s32.totalorder %s15, 1
    %p143 = por %p141, %p142
    %p144 = scmp.ne.s32.totalorder %s133, %s134
    %p145 = scmp.eq.s32.totalorder %s15, 0
    %p146 = por %p144, %p145
    %p147 = scmp.ne.s32.totalorder %s133, %s134
    %p148 = scmp.eq.s32.totalorder %s16, 1
    %p149 = por %p147, %p148
    %p151 = scmp.ne.s32.totalorder %s134, %s150
    %p152 = scmp.eq.s32.totalorder %s16, 0
    %p153 = por %p151, %p152
    %p154 = scmp.le.s32.totalorder 1, %s10
    %p155 = scmp.lt.s32.totalorder %s10, 3
    %p156 = pnand %p154, %p155
    %p157 = pneg %p156
    // Predicated region
    $region9: #{micm_forward.9} parent=5 // pred_check
      _
    $region10: #{micm_forward.9} parent=5 // pred_check_branch
      %159 = sbr.rel (%p156) target = $region12
    $region11: #{micm_forward.9} parent=5 // pred_region
      %s160 = ssub.s32 %s10, 1
      // Predicated region
      $region13: #{micm_forward.9} parent=11 // pred_check
        %p161 = pneg %p69
      $region14: #{micm_forward.9} parent=11 // pred_check_branch
        %163 = sbr.rel (%p161) target = $region16
      $region15: #{micm_forward.9} parent=11 // pred_region
        _
      $region16: #{micm_forward.9} parent=11 // pred_fallthru
        _
      // Predicated region
      $region17: #{micm_forward.9} parent=11 // pred_check
        %p164 = pneg %p90
      $region18: #{micm_forward.9} parent=11 // pred_check_branch
        %166 = sbr.rel (%p164) target = $region20
      $region19: #{micm_forward.9} parent=11 // pred_region
        _
      $region20: #{micm_forward.9} parent=11 // pred_fallthru
        _
    $region12: #{micm_forward.9} parent=5 // pred_fallthru
      _
    %p167 = scmp.lt.s32.totalorder %s10, 2
    // Predicated region
    $region21: #{micm_forward.9} parent=5 // pred_check
      %p168 = pneg %p167
    $region22: #{micm_forward.9} parent=5 // pred_check_branch
      %170 = sbr.rel (%p168) target = $region24
    $region23: #{micm_forward.9} parent=5 // pred_region
      // Predicated region
      $region25: #{micm_forward.9} parent=23 // pred_check
        %p171 = pneg %p42
      $region26: #{micm_forward.9} parent=23 // pred_check_branch
        %173 = sbr.rel (%p171) target = $region28
      $region27: #{micm_forward.9} parent=23 // pred_region
        %p174 = scmp.lt.s32.totalorder %s17, 1
        %s175 = scalar_select %p174, %s17, 1
        %s176 = smul.addr %s175, 3
        %s177 = smul.addr %s176, 4
        %s178 = scalar_lea.vmem %s0, %s177
      $region28: #{micm_forward.9} parent=23 // pred_fallthru
        _
      // Predicated region
      $region29: #{micm_forward.9} parent=23 // pred_check
        %p179 = pneg %p112
      $region30: #{micm_forward.9} parent=23 // pred_check_branch
        %181 = sbr.rel (%p179) target = $region32
      $region31: #{micm_forward.9} parent=23 // pred_region
        %s182 = smul.u32 2, %s18
        %p183 = scmp.lt.s32.totalorder %s17, 1
        %s184 = scalar_select %p183, %s17, 1
        %p185 = scmp.lt.s32.totalorder %s182, 1
        %s186 = scalar_select %p185, %s182, 1
        %s187 = smul.addr %s184, 2
        %s188 = sadd.s32 %s186, %s187
        %s189 = smul.addr %s188, 8
        %s190 = scalar_lea.vmem %s3, %s189
        %s191 = smul.u32 2, %s18
      $region32: #{micm_forward.9} parent=23 // pred_fallthru
        _
    $region24: #{micm_forward.9} parent=5 // pred_fallthru
      _
    %p192 = scmp.le.s32.totalorder 1, %s10
    %p193 = scmp.lt.s32.totalorder %s10, 3
    %p194 = pnand %p192, %p193
    %p195 = pneg %p194
    // Predicated region
    $region33: #{micm_forward.9} parent=5 // pred_check
      _
    $region34: #{micm_forward.9} parent=5 // pred_check_branch
      %197 = sbr.rel (%p194) target = $region36
    $region35: #{micm_forward.9} parent=5 // pred_region
      %s198 = ssub.s32 %s10, 1
      %p199 = scmp.lt.s32.totalorder %s19, 1
      %s200 = scalar_select %p199, %s19, 1
      %s201 = smul.addr %s200, 3
      %s202 = smul.addr %s201, 4
      %s203 = scalar_lea.vmem %s0, %s202
      %p204 = pneg %p48
      %p205 = pneg %p45
      %p206 = pneg %p69
      %p207 = pneg %p66
      %p208 = pneg %p90
      %p209 = pneg %p87
      %s210 = smul.u32 2, %s20
      %p211 = scmp.lt.s32.totalorder %s19, 1
      %s212 = scalar_select %p211, %s19, 1
      %p213 = scmp.lt.s32.totalorder %s210, 1
      %s214 = scalar_select %p213, %s210, 1
      %s215 = smul.addr %s212, 2
      %s216 = sadd.s32 %s214, %s215
      %s217 = smul.addr %s216, 8
      %s218 = scalar_lea.vmem %s3, %s217
      %p219 = pneg %p118
      %p220 = pneg %p115
      %p221 = pneg %p146
      %p222 = pneg %p143
      %s223 = smul.u32 2, %s20
      %p224 = scmp.lt.s32.totalorder %s19, 1
      %s225 = scalar_select %p224, %s19, 1
      %p226 = scmp.lt.s32.totalorder %s223, 1
      %s227 = scalar_select %p226, %s223, 1
      %s228 = smul.addr %s225, 2
      %s229 = sadd.s32 %s227, %s228
      %s230 = smul.addr %s229, 8
      %s231 = scalar_lea.vmem %s4, %s230
      %p232 = scmp.lt.s32.totalorder %s19, 1
      %s233 = scalar_select %p232, %s19, 1
      %s234 = smul.addr %s233, 3
      %s235 = smul.addr %s234, 4
      %s236 = scalar_lea.vmem %s0, %s235
      %s237 = smul.u32 2, %s20
      %p238 = scmp.lt.s32.totalorder %s19, 1
      %s239 = scalar_select %p238, %s19, 1
      %p240 = scmp.lt.s32.totalorder %s237, 1
      %s241 = scalar_select %p240, %s237, 1
      %s242 = smul.addr %s239, 2
      %s243 = sadd.s32 %s241, %s242
      %s244 = smul.addr %s243, 8
      %s245 = scalar_lea.vmem %s3, %s244
      %s246 = smul.u32 2, %s20
      %s247 = smul.u32 2, %s20
      %p248 = scmp.lt.s32.totalorder %s19, 1
      %s249 = scalar_select %p248, %s19, 1
      %p250 = scmp.lt.s32.totalorder %s247, 1
      %s251 = scalar_select %p250, %s247, 1
      %s252 = smul.addr %s249, 2
      %s253 = sadd.s32 %s251, %s252
      %s254 = smul.addr %s253, 8
      %s255 = scalar_lea.vmem %s4, %s254
      %s256 = smul.u32 2, %s20
      %v258 = vld [vmem:[%s236] sm:$0xf]
      %v259 = vld [vmem:[%s236 + $0x4] sm:$0xf]
      %v260 = vld [vmem:[%s236 + $0x8] sm:$0x1]
      %v261 = vunpack.c.l.bf16 %v258
      %v262 = vunpack.c.l.bf16 %v259
      %v263 = vunpack.c.l.bf16 %v260
      %v264 = vmul.f32 %v261, 0.5
      %v265 = vmul.f32 %v262, 0.5
      %v266 = vmul.f32 %v263, 0.5
      %v267 = vmul.f32 %v261, 0.044715
      %v268 = vmul.f32 %v262, 0.044715
      %v269 = vmul.f32 %v263, 0.044715
      %v270 = vmul.f32 %v267, %v261
      %v271 = vmul.f32 %v268, %v262
      %v272 = vmul.f32 %v269, %v263
      %v273 = vmul.f32 %v270, %v261
      %v274 = vmul.f32 %v271, %v262
      %v275 = vmul.f32 %v272, %v263
      %v276 = vadd.f32 %v261, %v273
      %v277 = vadd.f32 %v262, %v274
      %v278 = vadd.f32 %v263, %v275
      %v279 = vmul.f32 %v276, 0.7978846
      %v280 = vmul.f32 %v277, 0.7978846
      %v281 = vmul.f32 %v278, 0.7978846
      %v282 = vtanh.pop %v279
      %v283 = vtanh.pop %v280
      %v284 = vtanh.pop %v281
      %v285 = vadd.f32 %v282, 1.0
      %v286 = vadd.f32 %v283, 1.0
      %v287 = vadd.f32 %v284, 1.0
      %v288 = vmul.f32 %v264, %v285
      %v289 = vmul.f32 %v265, %v286
      %v290 = vmul.f32 %v266, %v287
      %v291 = vpack.c.bf16 %v289, %v288
      %v292 = vld [vmem:[%s1] sm:$0xf]
      %v293 = vld [vmem:[%s1 + $0x4] sm:$0xf]
      %v294 = vld [vmem:[%s1 + $0x8] sm:$0xf]
      %v295 = vld [vmem:[%s1 + $0xc] sm:$0xf]
      %v296 = vld [vmem:[%s1 + $0x10] sm:$0xf]
      %v297 = vld [vmem:[%s1 + $0x14] sm:$0xf]
      %v298 = vld [vmem:[%s1 + $0x18] sm:$0xf]
      %v299 = vld [vmem:[%s1 + $0x1c] sm:$0xf]
      %v300 = vld [vmem:[%s1 + $0x20] sm:$0xf]
      %v301 = vld [vmem:[%s1 + $0x24] sm:$0xf]
      %v302 = vld [vmem:[%s1 + $0x28] sm:$0xf]
      %v303 = vld [vmem:[%s1 + $0x2c] sm:$0xf]
      %v304 = vld [vmem:[%s1 + $0x30] sm:$0xf]
      %v305 = vld [vmem:[%s1 + $0x34] sm:$0xf]
      %v306 = vld [vmem:[%s1 + $0x38] sm:$0xf]
      %v307 = vld [vmem:[%s1 + $0x3c] sm:$0xf]
      %v308 = vpack.c.bf16 %v290, %v290
      %s309 = scalar_lea.vmem %s1, 64
      %v310 = vld [vmem:[%s309] sm:$0xf]
      %v311 = vld [vmem:[%s309 + $0x4] sm:$0xf]
      %v312 = vld [vmem:[%s309 + $0x8] sm:$0xf]
      %v313 = vld [vmem:[%s309 + $0xc] sm:$0xf]
      %v314 = vld [vmem:[%s309 + $0x10] sm:$0xf]
      %v315 = vld [vmem:[%s309 + $0x14] sm:$0xf]
      %v316 = vld [vmem:[%s309 + $0x18] sm:$0xf]
      %v317 = vld [vmem:[%s309 + $0x1c] sm:$0xf]
      %v318 = vld [vmem:[%s309 + $0x20] sm:$0xf]
      %v319 = vld [vmem:[%s309 + $0x24] sm:$0xf]
      %v320 = vld [vmem:[%s309 + $0x28] sm:$0xf]
      %v321 = vld [vmem:[%s309 + $0x2c] sm:$0xf]
      %v322 = vld [vmem:[%s309 + $0x30] sm:$0xf]
      %v323 = vld [vmem:[%s309 + $0x34] sm:$0xf]
      %v324 = vld [vmem:[%s309 + $0x38] sm:$0xf]
      %v325 = vld [vmem:[%s309 + $0x3c] sm:$0xf]
      %vm326 = vsmask.f32 7424
      %v328 = vshrl.u32 %v291, 16
      %v330 = vshll.u32 %v291, 16
      %v332 = vrot.slane %v330, 1
      %v333 = vor.u32 %v328, %v332
      %v335 = vshll.u32 %v308, 16
      %v337 = vrot.slane %v335, 1
      %v338 = vsel %vm326, %v333, %v337
      %v356 = vunpack.c.l.b16 %v310
      %v357 = vunpack.c.l.b16 %v311
      %v358 = vunpack.c.l.b16 %v312
      %v359 = vunpack.c.l.b16 %v313
      %v360 = vunpack.c.l.b16 %v314
      %v361 = vunpack.c.l.b16 %v315
      %v362 = vunpack.c.l.b16 %v316
      %v363 = vunpack.c.l.b16 %v317
      %v364 = vunpack.c.l.b16 %v318
      %v365 = vunpack.c.l.b16 %v319
      %v366 = vunpack.c.l.b16 %v320
      %v367 = vunpack.c.l.b16 %v321
      %v368 = vunpack.c.l.b16 %v322
      %v369 = vunpack.c.l.b16 %v323
      %v370 = vunpack.c.l.b16 %v324
      %v371 = vunpack.c.l.b16 %v325
      %v372 = vpack.c.b16 %v357, %v356
      %v373 = vpack.c.b16 %v359, %v358
      %v374 = vpack.c.b16 %v361, %v360
      %v375 = vpack.c.b16 %v363, %v362
      %v376 = vpack.c.b16 %v365, %v364
      %v377 = vpack.c.b16 %v367, %v366
      %v378 = vpack.c.b16 %v369, %v368
      %v379 = vpack.c.b16 %v371, %v370
      %388 = vmatprep.subr.bf16.mxu0 0
      %389 = vmatpush1.bf16.msra.mxu0 %v379
      %390 = vmatprep.subr.bf16.mxu0 0
      %391 = vmatpush1.bf16.msra.mxu0 %v378
      %392 = vmatprep.subr.bf16.mxu0 0
      %393 = vmatpush1.bf16.msra.mxu0 %v377
      %394 = vmatprep.subr.bf16.mxu0 0
      %395 = vmatpush1.bf16.msra.mxu0 %v376
      %396 = vmatprep.subr.bf16.mxu0 0
      %397 = vmatpush1.bf16.msra.mxu0 %v375
      %398 = vmatprep.subr.bf16.mxu0 0
      %399 = vmatpush1.bf16.msra.mxu0 %v374
      %400 = vmatprep.subr.bf16.mxu0 0
      %401 = vmatpush1.bf16.msra.mxu0 %v373
      %402 = vmatprep.subr.bf16.mxu0 0
      %403 = vmatpush1.bf16.msra.mxu0 %v372
      %404 = vmatprep.subr.bf16.mxu0 0
      %405 = vmatpush2.bf16.msra.mxu0 0
      %406 = vmatprep.subr.bf16.mxu0 0
      %407 = vmatpush2.bf16.msra.mxu0 0
      %408 = vmatprep.subr.bf16.mxu0 0
      %409 = vmatpush2.bf16.msra.mxu0 0
      %410 = vmatprep.subr.bf16.mxu0 0
      %411 = vmatpush2.bf16.msra.mxu0 0
      %412 = vmatprep.subr.bf16.mxu0 0
      %413 = vmatpush2.bf16.msra.mxu0 0
      %414 = vmatprep.subr.bf16.mxu0 0
      %415 = vmatpush2.bf16.msra.mxu0 0
      %416 = vmatprep.subr.bf16.mxu0 0
      %417 = vmatpush2.bf16.msra.mxu0 0
      %418 = vmatprep.subr.bf16.mxu0 0
      %419 = vmatpush2.bf16.msra.mxu0 0
      %420 = vmatprep.mubr.bf16.mxu0 0
      %421 = vmatmul.mubr.bf16.gmra.mxu0 %v338
      %v422 = vpop.f32.mrf.mxu0
      %v423 = vadd.f32 0.0, %v422
      %v424 = vpop.f32.mrf.mxu0
      %v425 = vpop.f32.mrf.mxu0
      %v426 = vadd.f32 0.0, %v425
      %v427 = vpop.f32.mrf.mxu0
      %428 = vdwg.mxu0
      %v445 = vunpack.c.l.b16 %v292
      %v446 = vunpack.c.l.b16 %v293
      %v447 = vunpack.c.l.b16 %v294
      %v448 = vunpack.c.l.b16 %v295
      %v449 = vunpack.c.l.b16 %v296
      %v450 = vunpack.c.l.b16 %v297
      %v451 = vunpack.c.l.b16 %v298
      %v452 = vunpack.c.l.b16 %v299
      %v453 = vunpack.c.l.b16 %v300
      %v454 = vunpack.c.l.b16 %v301
      %v455 = vunpack.c.l.b16 %v302
      %v456 = vunpack.c.l.b16 %v303
      %v457 = vunpack.c.l.b16 %v304
      %v458 = vunpack.c.l.b16 %v305
      %v459 = vunpack.c.l.b16 %v306
      %v460 = vunpack.c.l.b16 %v307
      %v461 = vpack.c.b16 %v446, %v445
      %v462 = vpack.c.b16 %v448, %v447
      %v463 = vpack.c.b16 %v450, %v449
      %v464 = vpack.c.b16 %v452, %v451
      %v465 = vpack.c.b16 %v454, %v453
      %v466 = vpack.c.b16 %v456, %v455
      %v467 = vpack.c.b16 %v458, %v457
      %v468 = vpack.c.b16 %v460, %v459
      %477 = vmatprep.subr.bf16.mxu0 0
      %478 = vmatpush1.bf16.msra.mxu0 %v468
      %479 = vmatprep.subr.bf16.mxu0 0
      %480 = vmatpush1.bf16.msra.mxu0 %v467
      %481 = vmatprep.subr.bf16.mxu0 0
      %482 = vmatpush1.bf16.msra.mxu0 %v466
      %483 = vmatprep.subr.bf16.mxu0 0
      %484 = vmatpush1.bf16.msra.mxu0 %v465
      %485 = vmatprep.subr.bf16.mxu0 0
      %486 = vmatpush1.bf16.msra.mxu0 %v464
      %487 = vmatprep.subr.bf16.mxu0 0
      %488 = vmatpush1.bf16.msra.mxu0 %v463
      %489 = vmatprep.subr.bf16.mxu0 0
      %490 = vmatpush1.bf16.msra.mxu0 %v462
      %491 = vmatprep.subr.bf16.mxu0 0
      %492 = vmatpush1.bf16.msra.mxu0 %v461
      %493 = vmatprep.subr.bf16.mxu0 0
      %494 = vmatpush2.bf16.msra.mxu0 0
      %495 = vmatprep.subr.bf16.mxu0 0
      %496 = vmatpush2.bf16.msra.mxu0 0
      %497 = vmatprep.subr.bf16.mxu0 0
      %498 = vmatpush2.bf16.msra.mxu0 0
      %499 = vmatprep.subr.bf16.mxu0 0
      %500 = vmatpush2.bf16.msra.mxu0 0
      %501 = vmatprep.subr.bf16.mxu0 0
      %502 = vmatpush2.bf16.msra.mxu0 0
      %503 = vmatprep.subr.bf16.mxu0 0
      %504 = vmatpush2.bf16.msra.mxu0 0
      %505 = vmatprep.subr.bf16.mxu0 0
      %506 = vmatpush2.bf16.msra.mxu0 0
      %507 = vmatprep.subr.bf16.mxu0 0
      %508 = vmatpush2.bf16.msra.mxu0 0
      %509 = vmatprep.mubr.bf16.mxu0 0
      %510 = vmatmul.mubr.bf16.gmra.mxu0 %v291
      %v511 = vpop.f32.mrf.mxu0
      %v512 = vadd.f32 %v423, %v511
      %v513 = vpop.f32.mrf.mxu0
      %v514 = vpop.f32.mrf.mxu0
      %v515 = vadd.f32 %v426, %v514
      %v516 = vpop.f32.mrf.mxu0
      %517 = vdwg.mxu0
      %s518 = scalar_lea.vmem %s1, 128
      %v519 = vld [vmem:[%s518] sm:$0xf]
      %v520 = vld [vmem:[%s518 + $0x4] sm:$0xf]
      %v521 = vld [vmem:[%s518 + $0x8] sm:$0xf]
      %v522 = vld [vmem:[%s518 + $0xc] sm:$0xf]
      %v523 = vld [vmem:[%s518 + $0x10] sm:$0xf]
      %v524 = vld [vmem:[%s518 + $0x14] sm:$0xf]
      %v525 = vld [vmem:[%s518 + $0x18] sm:$0xf]
      %v526 = vld [vmem:[%s518 + $0x1c] sm:$0xf]
      %v527 = vld [vmem:[%s518 + $0x20] sm:$0xf]
      %v528 = vld [vmem:[%s518 + $0x24] sm:$0xf]
      %v529 = vld [vmem:[%s518 + $0x28] sm:$0xf]
      %v530 = vld [vmem:[%s518 + $0x2c] sm:$0xf]
      %v531 = vld [vmem:[%s518 + $0x30] sm:$0xf]
      %v532 = vld [vmem:[%s518 + $0x34] sm:$0xf]
      %v533 = vld [vmem:[%s518 + $0x38] sm:$0xf]
      %v534 = vld [vmem:[%s518 + $0x3c] sm:$0xf]
      %vm537 = vcmask 1046528
      %v538 = vrot.slane %v291, 1
      %v539 = vrot.slane %v308, 1
      %v540 = vsel %vm537, %v538, %v539
      %v558 = vunpack.c.l.b16 %v519
      %v559 = vunpack.c.l.b16 %v520
      %v560 = vunpack.c.l.b16 %v521
      %v561 = vunpack.c.l.b16 %v522
      %v562 = vunpack.c.l.b16 %v523
      %v563 = vunpack.c.l.b16 %v524
      %v564 = vunpack.c.l.b16 %v525
      %v565 = vunpack.c.l.b16 %v526
      %v566 = vunpack.c.l.b16 %v527
      %v567 = vunpack.c.l.b16 %v528
      %v568 = vunpack.c.l.b16 %v529
      %v569 = vunpack.c.l.b16 %v530
      %v570 = vunpack.c.l.b16 %v531
      %v571 = vunpack.c.l.b16 %v532
      %v572 = vunpack.c.l.b16 %v533
      %v573 = vunpack.c.l.b16 %v534
      %v574 = vpack.c.b16 %v559, %v558
      %v575 = vpack.c.b16 %v561, %v560
      %v576 = vpack.c.b16 %v563, %v562
      %v577 = vpack.c.b16 %v565, %v564
      %v578 = vpack.c.b16 %v567, %v566
      %v579 = vpack.c.b16 %v569, %v568
      %v580 = vpack.c.b16 %v571, %v570
      %v581 = vpack.c.b16 %v573, %v572
      %590 = vmatprep.subr.bf16.mxu0 0
      %591 = vmatpush1.bf16.msra.mxu0 %v581
      %592 = vmatprep.subr.bf16.mxu0 0
      %593 = vmatpush1.bf16.msra.mxu0 %v580
      %594 = vmatprep.subr.bf16.mxu0 0
      %595 = vmatpush1.bf16.msra.mxu0 %v579
      %596 = vmatprep.subr.bf16.mxu0 0
      %597 = vmatpush1.bf16.msra.mxu0 %v578
      %598 = vmatprep.subr.bf16.mxu0 0
      %599 = vmatpush1.bf16.msra.mxu0 %v577
      %600 = vmatprep.subr.bf16.mxu0 0
      %601 = vmatpush1.bf16.msra.mxu0 %v576
      %602 = vmatprep.subr.bf16.mxu0 0
      %603 = vmatpush1.bf16.msra.mxu0 %v575
      %604 = vmatprep.subr.bf16.mxu0 0
      %605 = vmatpush1.bf16.msra.mxu0 %v574
      %606 = vmatprep.subr.bf16.mxu0 0
      %607 = vmatpush2.bf16.msra.mxu0 0
      %608 = vmatprep.subr.bf16.mxu0 0
      %609 = vmatpush2.bf16.msra.mxu0 0
      %610 = vmatprep.subr.bf16.mxu0 0
      %611 = vmatpush2.bf16.msra.mxu0 0
      %612 = vmatprep.subr.bf16.mxu0 0
      %613 = vmatpush2.bf16.msra.mxu0 0
      %614 = vmatprep.subr.bf16.mxu0 0
      %615 = vmatpush2.bf16.msra.mxu0 0
      %616 = vmatprep.subr.bf16.mxu0 0
      %617 = vmatpush2.bf16.msra.mxu0 0
      %618 = vmatprep.subr.bf16.mxu0 0
      %619 = vmatpush2.bf16.msra.mxu0 0
      %620 = vmatprep.subr.bf16.mxu0 0
      %621 = vmatpush2.bf16.msra.mxu0 0
      %622 = vmatprep.mubr.bf16.mxu0 0
      %623 = vmatmul.mubr.bf16.gmra.mxu0 %v540
      %v624 = vpop.f32.mrf.mxu0
      %v625 = vadd.f32 0.0, %v624
      %v626 = vpop.f32.mrf.mxu0
      %v627 = vpop.f32.mrf.mxu0
      %v628 = vadd.f32 0.0, %v627
      %v629 = vpop.f32.mrf.mxu0
      %630 = vdwg.mxu0
      %v631 = vadd.f32 %v512, %v625
      %v632 = vadd.f32 %v515, %v628
      %v633 = vld [vmem:[%s2] sm:$0x1]
      %v635 = vlaneseq
      %v636 = vshrl.u32 %v635, 7
      %v637 = vsub.s32 0, %v636
      %v638 = vrot.slane %v633, %v637
      %v640 = vadd.f32 %v631, %v638
      %v641 = vadd.f32 %v632, %v638
      %v642 = vld [vmem:[%s245] sm:$0xff]
      %v643 = vld [vmem:[%s245 + $0x8] sm:$0xff]
      %v644 = vadd.f32 %v640, %v642
      %v645 = vadd.f32 %v641, %v643
      %646 = vst [vmem:[%s255] sm:$0xff] %v644
      %647 = vst [vmem:[%s255 + $0x8] sm:$0xff] %v645
      %s648 = smul.u32 2, %s20
      %p649 = scmp.lt.s32.totalorder %s19, 1
      %s650 = scalar_select %p649, %s19, 1
      %p651 = scmp.lt.s32.totalorder %s648, 1
      %s652 = scalar_select %p651, %s648, 1
      %s653 = smul.addr %s650, 2
      %s654 = sadd.s32 %s652, %s653
      %s655 = smul.addr %s654, 8
      %s656 = scalar_lea.vmem %s4, %s655
      // Predicated region
      $region37: #{micm_forward.9} parent=35 // pred_check
        %p657 = pneg %p143
      $region38: #{micm_forward.9} parent=35 // pred_check_branch
        %659 = sbr.rel (%p657) target = $region40
      $region39: #{micm_forward.9} parent=35 // pred_region
        %s660 = smul.u32 2, %s20
      $region40: #{micm_forward.9} parent=35 // pred_fallthru
        _
    $region36: #{micm_forward.9} parent=5 // pred_fallthru
      _
    %p661 = scmp.le.s32.totalorder 2, %s10
    // Predicated region
    $region41: #{micm_forward.9} parent=5 // pred_check
      %p662 = pneg %p661
    $region42: #{micm_forward.9} parent=5 // pred_check_branch
      %664 = sbr.rel (%p662) target = $region44
    $region43: #{micm_forward.9} parent=5 // pred_region
      %s665 = ssub.s32 %s10, 2
      // Predicated region
      $region45: #{micm_forward.9} parent=43 // pred_check
        %p666 = pneg %p149
      $region46: #{micm_forward.9} parent=43 // pred_check_branch
        %668 = sbr.rel (%p666) target = $region48
      $region47: #{micm_forward.9} parent=43 // pred_region
        %s669 = smul.u32 2, %s22
        %p670 = scmp.lt.s32.totalorder %s21, 1
        %s671 = scalar_select %p670, %s21, 1
        %p672 = scmp.lt.s32.totalorder %s669, 1
        %s673 = scalar_select %p672, %s669, 1
        %s674 = smul.addr %s671, 2
        %s675 = sadd.s32 %s673, %s674
        %s676 = smul.addr %s675, 8
        %s677 = scalar_lea.vmem %s4, %s676
      $region48: #{micm_forward.9} parent=43 // pred_fallthru
        _
    $region44: #{micm_forward.9} parent=5 // pred_fallthru
      _
  $region6: #{micm_forward.9} parent=0 // loop_footer
    %s14 = sadd.s32 1, %s10
  $region7: #{micm_forward.9} parent=0 // loop_footer_branch
    %9 = sbr.rel target = $region3
  $region8: #{micm_forward.9} parent=0 // loop_exit
    _

</llo_original>
